<compile_context>
chip_gen: v7x
topology: tpu7x:2x2x1
jax: 0.10.0
libtpu: 0.0.40
codegen_flags: <defaults>
</compile_context>

<pallas_src>
import jax
import jax.numpy as jnp
from jax.experimental import pallas as pl
from jax.experimental.pallas import tpu as pltpu


# ----------------------------------------------------------------------------
# Dilation / effective-kernel computation (matches the PyTorch module exactly)
# ----------------------------------------------------------------------------
def _dilation_for(H, W, kh, kw):
    if kh == 1 or kh >= H:
        d0, ke0 = 1, kh
    else:
        d0 = (H - 1) // kh + 1
        ke0 = d0 * (kh - 1) + 1
    if kw == 1 or kw >= W:
        d1, ke1 = 1, kw
    else:
        d1 = (W - 1) // kw + 1
        ke1 = d1 * (kw - 1) + 1
    return d0, d1, ke0, ke1


# ----------------------------------------------------------------------------
# Pallas kernel: fused im2col + matmul + bias for one batch element
# ----------------------------------------------------------------------------
def _make_conv_kernel(H, W, Cin, Np, kh, kw, d0, d1):
    M = H * W
    n_taps = kh * kw

    def kernel(x_ref, w_ref, b_ref, o_ref):
        # x_ref : (1, Hp, Wp, Cin)   bf16, circularly padded NHWC image
        # w_ref : (kh*kw, Cin, Np)   bf16, tap-major weights, Cout padded to Np
        # b_ref : (1, Np)            f32 bias (zeros if no bias)
        # o_ref : (1, M, Np)         f32 output (M = H*W rows, lane-dense Np)
        def tap(t):
            i, j = divmod(t, kw)
            # Shifted dilated window of the padded image (static slice offsets).
            patch = x_ref[0, i * d0:i * d0 + H, j * d1:j * d1 + W, :]
            # Collapse spatial dims; last (lane) dim Cin is unchanged so the
            # reshape is a free tile re-indexing.
            patch = patch.reshape(M, Cin)
            return jnp.dot(patch, w_ref[t], preferred_element_type=jnp.float32)

        # Tap 0 initializes the output block (bias folded in); remaining taps
        # accumulate in place.  The block is written back to HBM exactly once.
        o_ref[0] = b_ref[...] + tap(0)
        for t in range(1, n_taps):        # static, fully unrolled tap loop
            o_ref[0] += tap(t)

    return kernel


def _tiled_vmem_bytes(shape, itemsize):
    """Approximate VMEM footprint of one buffer of `shape` in tiled layout."""
    sub_tile = 8 if itemsize == 4 else 16
    lead = 1
    for d in shape[:-2]:
        lead *= d
    sub = -(-shape[-2] // sub_tile) * sub_tile
    lane = -(-shape[-1] // 128) * 128
    return lead * sub * lane * itemsize


def _pallas_dilated_circ_conv(x_pad, w_taps, bias_pad, H, W, d0, d1, kh, kw):
    B, Hp, Wp, Cin = x_pad.shape
    _, _, Np = w_taps.shape
    M = H * W

    kernel = _make_conv_kernel(H, W, Cin, Np, kh, kw, d0, d1)

    # Explicit VMEM budget: double-buffered in/out + (invariant) weights/bias.
    needed = (2 * _tiled_vmem_bytes((1, Hp, Wp, Cin), 2)
              + 2 * _tiled_vmem_bytes((kh * kw, Cin, Np), 2)
              + 2 * _tiled_vmem_bytes((1, 1, Np), 4)
              + 2 * _tiled_vmem_bytes((1, M, Np), 4))
    # Clamp so the same setting is legal on v5e/v6e (128 MiB) and v7x (64 MiB).
    vmem_limit = int(min(max(2 * needed, 32 * 1024 * 1024), 64 * 1024 * 1024))

    cost = pl.CostEstimate(
        flops=2 * B * M * Np * Cin * kh * kw,
        transcendentals=0,
        bytes_accessed=int(x_pad.size * x_pad.dtype.itemsize
                           + w_taps.size * w_taps.dtype.itemsize
                           + bias_pad.size * 4
                           + B * M * Np * 4),
    )

    return pl.pallas_call(
        kernel,
        out_shape=jax.ShapeDtypeStruct((B, M, Np), jnp.float32),
        grid_spec=pltpu.PrefetchScalarGridSpec(
            num_scalar_prefetch=0,
            grid=(B,),
            in_specs=[
                pl.BlockSpec((1, Hp, Wp, Cin), lambda b: (b, 0, 0, 0)),
                pl.BlockSpec((kh * kw, Cin, Np), lambda b: (0, 0, 0)),
                pl.BlockSpec((1, Np), lambda b: (0, 0)),
            ],
            out_specs=pl.BlockSpec((1, M, Np), lambda b: (b, 0, 0)),
        ),
        compiler_params=pltpu.CompilerParams(
            dimension_semantics=("parallel",),   # lets v7x shard batch over 2 TCs
            vmem_limit_bytes=vmem_limit,
        ),
        cost_estimate=cost,
    )(x_pad, w_taps, bias_pad)


# ----------------------------------------------------------------------------
# Parameter setup (plain JAX glue): permutation init + Bjorck projection
# ----------------------------------------------------------------------------
def init_params(key, out_channels, in_channels, kernel_size, init="permutation"):
    kh, kw = kernel_size
    kp, kv = jax.random.split(key)
    max_c = max(out_channels, in_channels)
    min_c = min(out_channels, in_channels)
    perm = jax.random.permutation(kp, max_c)[:min_c]
    if init == "identical":
        perm = jnp.sort(perm)
    elif init == "reverse":
        perm = jnp.sort(perm)[::-1]
    matrix = jnp.zeros((out_channels, in_channels), jnp.float32)
    if out_channels < in_channels:
        matrix = matrix.at[:, perm].set(jnp.eye(min_c, dtype=jnp.float32))
    else:
        matrix = matrix.at[perm, :].set(jnp.eye(min_c, dtype=jnp.float32))
    params = jnp.zeros((out_channels, in_channels, kh, kw), jnp.float32)
    params = params.at[:, :, kh // 2, kw // 2].set(matrix)
    v_vec = jax.random.normal(kv, (1, in_channels, kh, kw), jnp.float32)
    return params, v_vec


def bjorck_project(params, v_vec, steps=10, order=1, iters=20, thres=1e-6):
    """Power iteration + Bjorck orthonormalization of the circular-conv kernel.

    The circular-conv algebra on the kh x kw torus block-diagonalizes under the
    2D DFT, so the spatial-domain Bjorck iteration is performed equivalently as
    a per-frequency complex matrix iteration.
    """
    # TODO(synk): thres-based early stopping not implemented; fixed step/iter counts used.
    del order, thres  # order=1 Taylor expansion implemented
    co, ci, kh, kw = params.shape
    Wf = jnp.fft.fft2(params, axes=(-2, -1))  # (co, ci, kh, kw), complex

    # --- power iteration for the operator spectral norm (scale) ---
    def pi_body(_, v):
        vf = jnp.fft.fft2(v, axes=(-2, -1))
        uf = jnp.einsum("oikl,bikl->bokl", Wf, vf)
        vf2 = jnp.einsum("oikl,bokl->bikl", jnp.conj(Wf), uf)
        v2 = jnp.real(jnp.fft.ifft2(vf2, axes=(-2, -1)))
        return v2 / (jnp.linalg.norm(v2) + 1e-12)

    v = jax.lax.fori_loop(0, steps, pi_body, v_vec)
    vf = jnp.fft.fft2(v, axes=(-2, -1))
    uf = jnp.einsum("oikl,bikl->bokl", Wf, vf)
    u = jnp.real(jnp.fft.ifft2(uf, axes=(-2, -1)))
    scale = jnp.linalg.norm(u) / (jnp.linalg.norm(v) + 1e-12)

    # --- Bjorck orthonormalization (order 1): A <- 1.5 A - 0.5 A A^H A ---
    Af = jnp.transpose(Wf / scale, (2, 3, 0, 1))  # (kh, kw, co, ci)

    def bj_body(_, A):
        AHA = jnp.einsum("...ij,...ik->...jk", jnp.conj(A), A)
        return 1.5 * A - 0.5 * jnp.einsum("...ij,...jk->...ik", A, AHA)

    Af = jax.lax.fori_loop(0, iters, bj_body, Af)
    weight = jnp.real(jnp.fft.ifft2(jnp.transpose(Af, (2, 3, 0, 1)), axes=(-2, -1)))
    return weight.astype(jnp.float32), v


# ----------------------------------------------------------------------------
# Forward pass: dilation computation, circular pad, fused Pallas dilated conv
# ----------------------------------------------------------------------------
def dilated_bjorck_conv2d_forward(x, weight, bias=None, compute_dtype=jnp.bfloat16):
    """x: (B, C_in, H, W) NCHW float32; weight: (C_out, C_in, kh, kw).

    Returns the NCHW output (module semantics).  The kernel itself computes a
    channels-last (B, H*W, Np) result; only one cheap transpose remains in the
    wrapper (layout plumbing, not compute).
    """
    B, Cin, H, W = x.shape
    Cout, _, kh, kw = weight.shape

    d0, d1, ke0, ke1 = _dilation_for(H, W, kh, kw)
    pad_t, pad_b = ke0 // 2, (ke0 - 1) // 2
    pad_l, pad_r = ke1 // 2, (ke1 - 1) // 2
    # TODO(synk): if ke0/ke1 ever exceed H/W, wrap-pad widths exceed the axis
    # size; that regime would need a tiled circular pad.

    # NCHW -> NHWC, circular pad, single cast to the MXU compute dtype.
    x_nhwc = jnp.transpose(x, (0, 2, 3, 1))
    x_pad = jnp.pad(x_nhwc, ((0, 0), (pad_t, pad_b), (pad_l, pad_r), (0, 0)),
                    mode="wrap").astype(compute_dtype)

    # Weights: (Cout, Cin, kh, kw) -> tap-major (kh*kw, Cin, Np) with Cout
    # zero-padded up to a multiple of 128 for lane-dense output stores.
    Np = max(128, ((Cout + 127) // 128) * 128)
    w_taps = jnp.transpose(weight, (2, 3, 1, 0)).reshape(kh * kw, Cin, Cout)
    w_taps = jnp.pad(w_taps, ((0, 0), (0, 0), (0, Np - Cout))).astype(compute_dtype)

    bias_pad = jnp.zeros((1, Np), jnp.float32)
    if bias is not None:
        bias_pad = bias_pad.at[0, :Cout].set(bias.astype(jnp.float32))

    out_flat = _pallas_dilated_circ_conv(x_pad, w_taps, bias_pad,
                                         H, W, d0, d1, kh, kw)   # (B, H*W, Np) f32
    out = out_flat[:, :, :Cout].reshape(B, H, W, Cout).transpose(0, 3, 1, 2)
    return out


# ----------------------------------------------------------------------------
if __name__ == "__main__":
    key = jax.random.PRNGKey(0)
    k_param, k_x = jax.random.split(key)

    B, Cin, Cout, H, W, ksize = 2, 4, 4, 16, 16, 3

    params, v_vec = init_params(k_param, Cout, Cin, (ksize, ksize), init="permutation")
    weight, _ = bjorck_project(params, v_vec, steps=10, order=1, iters=20, thres=1e-6)

    x = jax.random.normal(k_x, (B, Cin, H, W), jnp.float32)

    out = dilated_bjorck_conv2d_forward(x, weight, bias=None)
    out = jax.block_until_ready(out)
    assert out.shape == (B, Cout, H, W)

    # References: plain-JAX dilated conv on the circularly padded NCHW input.
    d0, d1, ke0, ke1 = _dilation_for(H, W, ksize, ksize)
    x_pad_ref = jnp.pad(
        x, ((0, 0), (0, 0), (ke0 // 2, (ke0 - 1) // 2), (ke1 // 2, (ke1 - 1) // 2)),
        mode="wrap")
    conv = lambda xx, ww: jax.lax.conv_general_dilated(
        xx, ww, window_strides=(1, 1), padding="VALID", rhs_dilation=(d0, d1),
        dimension_numbers=("NCHW", "OIHW", "NCHW"))

    ref_f32 = conv(x_pad_ref, weight)
    # Same conv on bf16-rounded operands (kernel computes bf16 x bf16 -> f32 acc).
    ref_bf16 = conv(x_pad_ref.astype(jnp.bfloat16).astype(jnp.float32),
                    weight.astype(jnp.bfloat16).astype(jnp.float32))

    assert jnp.allclose(out, ref_bf16, atol=2e-3, rtol=2e-3), \
        "mismatch vs bf16-rounded reference conv"
    assert jnp.allclose(out, ref_f32, atol=5e-2, rtol=5e-2), \
        "mismatch vs f32 reference conv"

    print("KERNEL_OK")
</pallas_src>

<mosaic_0001>
module attributes {stable_mosaic.version = 11 : i64} {
  func.func @kernel(%arg0: i32, %arg1: memref<1x28x28x4xbf16, #tpu.memory_space<vmem>>, %arg2: memref<9x4x128xbf16, #tpu.memory_space<vmem>>, %arg3: memref<1x128xf32, #tpu.memory_space<vmem>>, %arg4: memref<1x256x128xf32, #tpu.memory_space<vmem>>) attributes {dimension_semantics = [#tpu.dimension_semantics<parallel>], iteration_bounds = array<i64: 2>, scalar_prefetch = 0 : i64, scratch_operands = 0 : i64, tpu.core_type = #tpu.core_type<tc>, window_params = [{transform_indices = @transform_0, window_bounds = array<i64: 1, 28, 28, 4>}, {pipeline_mode = #tpu.pipeline_mode<synchronous>, transform_indices = @transform_1, window_bounds = array<i64: 9, 4, 128>}, {pipeline_mode = #tpu.pipeline_mode<synchronous>, transform_indices = @transform_2, window_bounds = array<i64: 1, 128>}, {transform_indices = @transform_3, window_bounds = array<i64: 1, 256, 128>}]} {
    %c0 = arith.constant 0 : index
    %c0_0 = arith.constant 0 : index
    %0 = vector.load %arg3[%c0, %c0_0] : memref<1x128xf32, #tpu.memory_space<vmem>>, vector<1x128xf32>
    %c0_1 = arith.constant 0 : index
    %c0_2 = arith.constant 0 : index
    %c0_3 = arith.constant 0 : index
    %c0_4 = arith.constant 0 : index
    %1 = vector.load %arg1[%c0_1, %c0_2, %c0_3, %c0_4] : memref<1x28x28x4xbf16, #tpu.memory_space<vmem>>, vector<1x16x16x4xbf16>
    %2 = vector.shape_cast %1 : vector<1x16x16x4xbf16> to vector<16x16x4xbf16>
    %3 = vector.shape_cast %2 : vector<16x16x4xbf16> to vector<256x4xbf16>
    %c0_5 = arith.constant 0 : index
    %c0_6 = arith.constant 0 : index
    %c0_7 = arith.constant 0 : index
    %4 = vector.load %arg2[%c0_5, %c0_6, %c0_7] : memref<9x4x128xbf16, #tpu.memory_space<vmem>>, vector<1x4x128xbf16>
    %5 = vector.shape_cast %4 : vector<1x4x128xbf16> to vector<4x128xbf16>
    %cst = arith.constant dense<0.000000e+00> : vector<256x128xf32>
    %6 = tpu.matmul %3, %5, %cst {dimension_numbers = #tpu.dot_dimension_numbers<[1], [0], [0], [1], [0, 0, 1, 1], [], []>} : vector<256x4xbf16>, vector<4x128xbf16>, vector<256x128xf32> -> vector<256x128xf32>
    %7 = vector.broadcast %0 : vector<1x128xf32> to vector<256x128xf32>
    %8 = arith.addf %7, %6 : vector<256x128xf32>
    %c0_8 = arith.constant 0 : index
    %c0_9 = arith.constant 0 : index
    %c0_10 = arith.constant 0 : index
    %9 = vector.load %arg4[%c0_8, %c0_9, %c0_10] : memref<1x256x128xf32, #tpu.memory_space<vmem>>, vector<1x256x128xf32>
    %10 = vector.shape_cast %9 : vector<1x256x128xf32> to vector<256x128xf32>
    %11 = vector.shape_cast %8 : vector<256x128xf32> to vector<1x256x128xf32>
    tpu.vector_store %arg4[%c0_8, %c0_9, %c0_10], %11 {strides = array<i32>} : memref<1x256x128xf32, #tpu.memory_space<vmem>>, vector<1x256x128xf32>,
    %c0_11 = arith.constant 0 : index
    %c0_12 = arith.constant 0 : index
    %c0_13 = arith.constant 0 : index
    %12 = vector.load %arg4[%c0_11, %c0_12, %c0_13] : memref<1x256x128xf32, #tpu.memory_space<vmem>>, vector<1x256x128xf32>
    %13 = vector.shape_cast %12 : vector<1x256x128xf32> to vector<256x128xf32>
    %c0_14 = arith.constant 0 : index
    %c0_15 = arith.constant 0 : index
    %c6 = arith.constant 6 : index
    %c0_16 = arith.constant 0 : index
    %14 = vector.load %arg1[%c0_14, %c0_15, %c6, %c0_16] : memref<1x28x28x4xbf16, #tpu.memory_space<vmem>>, vector<1x16x16x4xbf16>
    %15 = vector.shape_cast %14 : vector<1x16x16x4xbf16> to vector<16x16x4xbf16>
    %16 = vector.shape_cast %15 : vector<16x16x4xbf16> to vector<256x4xbf16>
    %c1 = arith.constant 1 : index
    %c0_17 = arith.constant 0 : index
    %c0_18 = arith.constant 0 : index
    %17 = vector.load %arg2[%c1, %c0_17, %c0_18] : memref<9x4x128xbf16, #tpu.memory_space<vmem>>, vector<1x4x128xbf16>
    %18 = vector.shape_cast %17 : vector<1x4x128xbf16> to vector<4x128xbf16>
    %cst_19 = arith.constant dense<0.000000e+00> : vector<256x128xf32>
    %19 = tpu.matmul %16, %18, %cst_19 {dimension_numbers = #tpu.dot_dimension_numbers<[1], [0], [0], [1], [0, 0, 1, 1], [], []>} : vector<256x4xbf16>, vector<4x128xbf16>, vector<256x128xf32> -> vector<256x128xf32>
    %20 = arith.addf %13, %19 : vector<256x128xf32>
    %c0_20 = arith.constant 0 : index
    %c0_21 = arith.constant 0 : index
    %c0_22 = arith.constant 0 : index
    %21 = vector.load %arg4[%c0_20, %c0_21, %c0_22] : memref<1x256x128xf32, #tpu.memory_space<vmem>>, vector<1x256x128xf32>
    %22 = vector.shape_cast %21 : vector<1x256x128xf32> to vector<256x128xf32>
    %23 = vector.shape_cast %20 : vector<256x128xf32> to vector<1x256x128xf32>
    tpu.vector_store %arg4[%c0_20, %c0_21, %c0_22], %23 {strides = array<i32>} : memref<1x256x128xf32, #tpu.memory_space<vmem>>, vector<1x256x128xf32>,
    %c0_23 = arith.constant 0 : index
    %c0_24 = arith.constant 0 : index
    %c0_25 = arith.constant 0 : index
    %24 = vector.load %arg4[%c0_23, %c0_24, %c0_25] : memref<1x256x128xf32, #tpu.memory_space<vmem>>, vector<1x256x128xf32>
    %25 = vector.shape_cast %24 : vector<1x256x128xf32> to vector<256x128xf32>
    %c0_26 = arith.constant 0 : index
    %c0_27 = arith.constant 0 : index
    %c12 = arith.constant 12 : index
    %c0_28 = arith.constant 0 : index
    %26 = vector.load %arg1[%c0_26, %c0_27, %c12, %c0_28] : memref<1x28x28x4xbf16, #tpu.memory_space<vmem>>, vector<1x16x16x4xbf16>
    %27 = vector.shape_cast %26 : vector<1x16x16x4xbf16> to vector<16x16x4xbf16>
    %28 = vector.shape_cast %27 : vector<16x16x4xbf16> to vector<256x4xbf16>
    %c2 = arith.constant 2 : index
    %c0_29 = arith.constant 0 : index
    %c0_30 = arith.constant 0 : index
    %29 = vector.load %arg2[%c2, %c0_29, %c0_30] : memref<9x4x128xbf16, #tpu.memory_space<vmem>>, vector<1x4x128xbf16>
    %30 = vector.shape_cast %29 : vector<1x4x128xbf16> to vector<4x128xbf16>
    %cst_31 = arith.constant dense<0.000000e+00> : vector<256x128xf32>
    %31 = tpu.matmul %28, %30, %cst_31 {dimension_numbers = #tpu.dot_dimension_numbers<[1], [0], [0], [1], [0, 0, 1, 1], [], []>} : vector<256x4xbf16>, vector<4x128xbf16>, vector<256x128xf32> -> vector<256x128xf32>
    %32 = arith.addf %25, %31 : vector<256x128xf32>
    %c0_32 = arith.constant 0 : index
    %c0_33 = arith.constant 0 : index
    %c0_34 = arith.constant 0 : index
    %33 = vector.load %arg4[%c0_32, %c0_33, %c0_34] : memref<1x256x128xf32, #tpu.memory_space<vmem>>, vector<1x256x128xf32>
    %34 = vector.shape_cast %33 : vector<1x256x128xf32> to vector<256x128xf32>
    %35 = vector.shape_cast %32 : vector<256x128xf32> to vector<1x256x128xf32>
    tpu.vector_store %arg4[%c0_32, %c0_33, %c0_34], %35 {strides = array<i32>} : memref<1x256x128xf32, #tpu.memory_space<vmem>>, vector<1x256x128xf32>,
    %c0_35 = arith.constant 0 : index
    %c0_36 = arith.constant 0 : index
    %c0_37 = arith.constant 0 : index
    %36 = vector.load %arg4[%c0_35, %c0_36, %c0_37] : memref<1x256x128xf32, #tpu.memory_space<vmem>>, vector<1x256x128xf32>
    %37 = vector.shape_cast %36 : vector<1x256x128xf32> to vector<256x128xf32>
    %c0_38 = arith.constant 0 : index
    %c6_39 = arith.constant 6 : index
    %c0_40 = arith.constant 0 : index
    %c0_41 = arith.constant 0 : index
    %38 = vector.load %arg1[%c0_38, %c6_39, %c0_40, %c0_41] : memref<1x28x28x4xbf16, #tpu.memory_space<vmem>>, vector<1x16x16x4xbf16>
    %39 = vector.shape_cast %38 : vector<1x16x16x4xbf16> to vector<16x16x4xbf16>
    %40 = vector.shape_cast %39 : vector<16x16x4xbf16> to vector<256x4xbf16>
    %c3 = arith.constant 3 : index
    %c0_42 = arith.constant 0 : index
    %c0_43 = arith.constant 0 : index
    %41 = vector.load %arg2[%c3, %c0_42, %c0_43] : memref<9x4x128xbf16, #tpu.memory_space<vmem>>, vector<1x4x128xbf16>
    %42 = vector.shape_cast %41 : vector<1x4x128xbf16> to vector<4x128xbf16>
    %cst_44 = arith.constant dense<0.000000e+00> : vector<256x128xf32>
    %43 = tpu.matmul %40, %42, %cst_44 {dimension_numbers = #tpu.dot_dimension_numbers<[1], [0], [0], [1], [0, 0, 1, 1], [], []>} : vector<256x4xbf16>, vector<4x128xbf16>, vector<256x128xf32> -> vector<256x128xf32>
    %44 = arith.addf %37, %43 : vector<256x128xf32>
    %c0_45 = arith.constant 0 : index
    %c0_46 = arith.constant 0 : index
    %c0_47 = arith.constant 0 : index
    %45 = vector.load %arg4[%c0_45, %c0_46, %c0_47] : memref<1x256x128xf32, #tpu.memory_space<vmem>>, vector<1x256x128xf32>
    %46 = vector.shape_cast %45 : vector<1x256x128xf32> to vector<256x128xf32>
    %47 = vector.shape_cast %44 : vector<256x128xf32> to vector<1x256x128xf32>
    tpu.vector_store %arg4[%c0_45, %c0_46, %c0_47], %47 {strides = array<i32>} : memref<1x256x128xf32, #tpu.memory_space<vmem>>, vector<1x256x128xf32>,
    %c0_48 = arith.constant 0 : index
    %c0_49 = arith.constant 0 : index
    %c0_50 = arith.constant 0 : index
    %48 = vector.load %arg4[%c0_48, %c0_49, %c0_50] : memref<1x256x128xf32, #tpu.memory_space<vmem>>, vector<1x256x128xf32>
    %49 = vector.shape_cast %48 : vector<1x256x128xf32> to vector<256x128xf32>
    %c0_51 = arith.constant 0 : index
    %c6_52 = arith.constant 6 : index
    %c6_53 = arith.constant 6 : index
    %c0_54 = arith.constant 0 : index
    %50 = vector.load %arg1[%c0_51, %c6_52, %c6_53, %c0_54] : memref<1x28x28x4xbf16, #tpu.memory_space<vmem>>, vector<1x16x16x4xbf16>
    %51 = vector.shape_cast %50 : vector<1x16x16x4xbf16> to vector<16x16x4xbf16>
    %52 = vector.shape_cast %51 : vector<16x16x4xbf16> to vector<256x4xbf16>
    %c4 = arith.constant 4 : index
    %c0_55 = arith.constant 0 : index
    %c0_56 = arith.constant 0 : index
    %53 = vector.load %arg2[%c4, %c0_55, %c0_56] : memref<9x4x128xbf16, #tpu.memory_space<vmem>>, vector<1x4x128xbf16>
    %54 = vector.shape_cast %53 : vector<1x4x128xbf16> to vector<4x128xbf16>
    %cst_57 = arith.constant dense<0.000000e+00> : vector<256x128xf32>
    %55 = tpu.matmul %52, %54, %cst_57 {dimension_numbers = #tpu.dot_dimension_numbers<[1], [0], [0], [1], [0, 0, 1, 1], [], []>} : vector<256x4xbf16>, vector<4x128xbf16>, vector<256x128xf32> -> vector<256x128xf32>
    %56 = arith.addf %49, %55 : vector<256x128xf32>
    %c0_58 = arith.constant 0 : index
    %c0_59 = arith.constant 0 : index
    %c0_60 = arith.constant 0 : index
    %57 = vector.load %arg4[%c0_58, %c0_59, %c0_60] : memref<1x256x128xf32, #tpu.memory_space<vmem>>, vector<1x256x128xf32>
    %58 = vector.shape_cast %57 : vector<1x256x128xf32> to vector<256x128xf32>
    %59 = vector.shape_cast %56 : vector<256x128xf32> to vector<1x256x128xf32>
    tpu.vector_store %arg4[%c0_58, %c0_59, %c0_60], %59 {strides = array<i32>} : memref<1x256x128xf32, #tpu.memory_space<vmem>>, vector<1x256x128xf32>,
    %c0_61 = arith.constant 0 : index
    %c0_62 = arith.constant 0 : index
    %c0_63 = arith.constant 0 : index
    %60 = vector.load %arg4[%c0_61, %c0_62, %c0_63] : memref<1x256x128xf32, #tpu.memory_space<vmem>>, vector<1x256x128xf32>
    %61 = vector.shape_cast %60 : vector<1x256x128xf32> to vector<256x128xf32>
    %c0_64 = arith.constant 0 : index
    %c6_65 = arith.constant 6 : index
    %c12_66 = arith.constant 12 : index
    %c0_67 = arith.constant 0 : index
    %62 = vector.load %arg1[%c0_64, %c6_65, %c12_66, %c0_67] : memref<1x28x28x4xbf16, #tpu.memory_space<vmem>>, vector<1x16x16x4xbf16>
    %63 = vector.shape_cast %62 : vector<1x16x16x4xbf16> to vector<16x16x4xbf16>
    %64 = vector.shape_cast %63 : vector<16x16x4xbf16> to vector<256x4xbf16>
    %c5 = arith.constant 5 : index
    %c0_68 = arith.constant 0 : index
    %c0_69 = arith.constant 0 : index
    %65 = vector.load %arg2[%c5, %c0_68, %c0_69] : memref<9x4x128xbf16, #tpu.memory_space<vmem>>, vector<1x4x128xbf16>
    %66 = vector.shape_cast %65 : vector<1x4x128xbf16> to vector<4x128xbf16>
    %cst_70 = arith.constant dense<0.000000e+00> : vector<256x128xf32>
    %67 = tpu.matmul %64, %66, %cst_70 {dimension_numbers = #tpu.dot_dimension_numbers<[1], [0], [0], [1], [0, 0, 1, 1], [], []>} : vector<256x4xbf16>, vector<4x128xbf16>, vector<256x128xf32> -> vector<256x128xf32>
    %68 = arith.addf %61, %67 : vector<256x128xf32>
    %c0_71 = arith.constant 0 : index
    %c0_72 = arith.constant 0 : index
    %c0_73 = arith.constant 0 : index
    %69 = vector.load %arg4[%c0_71, %c0_72, %c0_73] : memref<1x256x128xf32, #tpu.memory_space<vmem>>, vector<1x256x128xf32>
    %70 = vector.shape_cast %69 : vector<1x256x128xf32> to vector<256x128xf32>
    %71 = vector.shape_cast %68 : vector<256x128xf32> to vector<1x256x128xf32>
    tpu.vector_store %arg4[%c0_71, %c0_72, %c0_73], %71 {strides = array<i32>} : memref<1x256x128xf32, #tpu.memory_space<vmem>>, vector<1x256x128xf32>,
    %c0_74 = arith.constant 0 : index
    %c0_75 = arith.constant 0 : index
    %c0_76 = arith.constant 0 : index
    %72 = vector.load %arg4[%c0_74, %c0_75, %c0_76] : memref<1x256x128xf32, #tpu.memory_space<vmem>>, vector<1x256x128xf32>
    %73 = vector.shape_cast %72 : vector<1x256x128xf32> to vector<256x128xf32>
    %c0_77 = arith.constant 0 : index
    %c12_78 = arith.constant 12 : index
    %c0_79 = arith.constant 0 : index
    %c0_80 = arith.constant 0 : index
    %74 = vector.load %arg1[%c0_77, %c12_78, %c0_79, %c0_80] : memref<1x28x28x4xbf16, #tpu.memory_space<vmem>>, vector<1x16x16x4xbf16>
    %75 = vector.shape_cast %74 : vector<1x16x16x4xbf16> to vector<16x16x4xbf16>
    %76 = vector.shape_cast %75 : vector<16x16x4xbf16> to vector<256x4xbf16>
    %c6_81 = arith.constant 6 : index
    %c0_82 = arith.constant 0 : index
    %c0_83 = arith.constant 0 : index
    %77 = vector.load %arg2[%c6_81, %c0_82, %c0_83] : memref<9x4x128xbf16, #tpu.memory_space<vmem>>, vector<1x4x128xbf16>
    %78 = vector.shape_cast %77 : vector<1x4x128xbf16> to vector<4x128xbf16>
    %cst_84 = arith.constant dense<0.000000e+00> : vector<256x128xf32>
    %79 = tpu.matmul %76, %78, %cst_84 {dimension_numbers = #tpu.dot_dimension_numbers<[1], [0], [0], [1], [0, 0, 1, 1], [], []>} : vector<256x4xbf16>, vector<4x128xbf16>, vector<256x128xf32> -> vector<256x128xf32>
    %80 = arith.addf %73, %79 : vector<256x128xf32>
    %c0_85 = arith.constant 0 : index
    %c0_86 = arith.constant 0 : index
    %c0_87 = arith.constant 0 : index
    %81 = vector.load %arg4[%c0_85, %c0_86, %c0_87] : memref<1x256x128xf32, #tpu.memory_space<vmem>>, vector<1x256x128xf32>
    %82 = vector.shape_cast %81 : vector<1x256x128xf32> to vector<256x128xf32>
    %83 = vector.shape_cast %80 : vector<256x128xf32> to vector<1x256x128xf32>
    tpu.vector_store %arg4[%c0_85, %c0_86, %c0_87], %83 {strides = array<i32>} : memref<1x256x128xf32, #tpu.memory_space<vmem>>, vector<1x256x128xf32>,
    %c0_88 = arith.constant 0 : index
    %c0_89 = arith.constant 0 : index
    %c0_90 = arith.constant 0 : index
    %84 = vector.load %arg4[%c0_88, %c0_89, %c0_90] : memref<1x256x128xf32, #tpu.memory_space<vmem>>, vector<1x256x128xf32>
    %85 = vector.shape_cast %84 : vector<1x256x128xf32> to vector<256x128xf32>
    %c0_91 = arith.constant 0 : index
    %c12_92 = arith.constant 12 : index
    %c6_93 = arith.constant 6 : index
    %c0_94 = arith.constant 0 : index
    %86 = vector.load %arg1[%c0_91, %c12_92, %c6_93, %c0_94] : memref<1x28x28x4xbf16, #tpu.memory_space<vmem>>, vector<1x16x16x4xbf16>
    %87 = vector.shape_cast %86 : vector<1x16x16x4xbf16> to vector<16x16x4xbf16>
    %88 = vector.shape_cast %87 : vector<16x16x4xbf16> to vector<256x4xbf16>
    %c7 = arith.constant 7 : index
    %c0_95 = arith.constant 0 : index
    %c0_96 = arith.constant 0 : index
    %89 = vector.load %arg2[%c7, %c0_95, %c0_96] : memref<9x4x128xbf16, #tpu.memory_space<vmem>>, vector<1x4x128xbf16>
    %90 = vector.shape_cast %89 : vector<1x4x128xbf16> to vector<4x128xbf16>
    %cst_97 = arith.constant dense<0.000000e+00> : vector<256x128xf32>
    %91 = tpu.matmul %88, %90, %cst_97 {dimension_numbers = #tpu.dot_dimension_numbers<[1], [0], [0], [1], [0, 0, 1, 1], [], []>} : vector<256x4xbf16>, vector<4x128xbf16>, vector<256x128xf32> -> vector<256x128xf32>
    %92 = arith.addf %85, %91 : vector<256x128xf32>
    %c0_98 = arith.constant 0 : index
    %c0_99 = arith.constant 0 : index
    %c0_100 = arith.constant 0 : index
    %93 = vector.load %arg4[%c0_98, %c0_99, %c0_100] : memref<1x256x128xf32, #tpu.memory_space<vmem>>, vector<1x256x128xf32>
    %94 = vector.shape_cast %93 : vector<1x256x128xf32> to vector<256x128xf32>
    %95 = vector.shape_cast %92 : vector<256x128xf32> to vector<1x256x128xf32>
    tpu.vector_store %arg4[%c0_98, %c0_99, %c0_100], %95 {strides = array<i32>} : memref<1x256x128xf32, #tpu.memory_space<vmem>>, vector<1x256x128xf32>,
    %c0_101 = arith.constant 0 : index
    %c0_102 = arith.constant 0 : index
    %c0_103 = arith.constant 0 : index
    %96 = vector.load %arg4[%c0_101, %c0_102, %c0_103] : memref<1x256x128xf32, #tpu.memory_space<vmem>>, vector<1x256x128xf32>
    %97 = vector.shape_cast %96 : vector<1x256x128xf32> to vector<256x128xf32>
    %c0_104 = arith.constant 0 : index
    %c12_105 = arith.constant 12 : index
    %c12_106 = arith.constant 12 : index
    %c0_107 = arith.constant 0 : index
    %98 = vector.load %arg1[%c0_104, %c12_105, %c12_106, %c0_107] : memref<1x28x28x4xbf16, #tpu.memory_space<vmem>>, vector<1x16x16x4xbf16>
    %99 = vector.shape_cast %98 : vector<1x16x16x4xbf16> to vector<16x16x4xbf16>
    %100 = vector.shape_cast %99 : vector<16x16x4xbf16> to vector<256x4xbf16>
    %c8 = arith.constant 8 : index
    %c0_108 = arith.constant 0 : index
    %c0_109 = arith.constant 0 : index
    %101 = vector.load %arg2[%c8, %c0_108, %c0_109] : memref<9x4x128xbf16, #tpu.memory_space<vmem>>, vector<1x4x128xbf16>
    %102 = vector.shape_cast %101 : vector<1x4x128xbf16> to vector<4x128xbf16>
    %cst_110 = arith.constant dense<0.000000e+00> : vector<256x128xf32>
    %103 = tpu.matmul %100, %102, %cst_110 {dimension_numbers = #tpu.dot_dimension_numbers<[1], [0], [0], [1], [0, 0, 1, 1], [], []>} : vector<256x4xbf16>, vector<4x128xbf16>, vector<256x128xf32> -> vector<256x128xf32>
    %104 = arith.addf %97, %103 : vector<256x128xf32>
    %c0_111 = arith.constant 0 : index
    %c0_112 = arith.constant 0 : index
    %c0_113 = arith.constant 0 : index
    %105 = vector.load %arg4[%c0_111, %c0_112, %c0_113] : memref<1x256x128xf32, #tpu.memory_space<vmem>>, vector<1x256x128xf32>
    %106 = vector.shape_cast %105 : vector<1x256x128xf32> to vector<256x128xf32>
    %107 = vector.shape_cast %104 : vector<256x128xf32> to vector<1x256x128xf32>
    tpu.vector_store %arg4[%c0_111, %c0_112, %c0_113], %107 {strides = array<i32>} : memref<1x256x128xf32, #tpu.memory_space<vmem>>, vector<1x256x128xf32>,
    return
  }
  func.func @transform_0(%arg0: i32) -> (i32, i32, i32, i32) {
    %c0_i32 = arith.constant 0 : i32
    %c0_i32_0 = arith.constant 0 : i32
    %c0_i32_1 = arith.constant 0 : i32
    %c0_i32_2 = arith.constant 0 : i32
    return %arg0, %c0_i32, %c0_i32_0, %c0_i32_1 : i32, i32, i32, i32
  }
  func.func @transform_1(%arg0: i32) -> (i32, i32, i32) {
    %c0_i32 = arith.constant 0 : i32
    %c0_i32_0 = arith.constant 0 : i32
    %c0_i32_1 = arith.constant 0 : i32
    %c0_i32_2 = arith.constant 0 : i32
    return %c0_i32, %c0_i32_0, %c0_i32_1 : i32, i32, i32
  }
  func.func @transform_2(%arg0: i32) -> (i32, i32) {
    %c0_i32 = arith.constant 0 : i32
    %c0_i32_0 = arith.constant 0 : i32
    %c0_i32_1 = arith.constant 0 : i32
    return %c0_i32, %c0_i32_0 : i32, i32
  }
  func.func @transform_3(%arg0: i32) -> (i32, i32, i32) {
    %c0_i32 = arith.constant 0 : i32
    %c0_i32_0 = arith.constant 0 : i32
    %c0_i32_1 = arith.constant 0 : i32
    return %arg0, %c0_i32, %c0_i32_0 : i32, i32, i32
  }
}

</mosaic_0001>

<llo_original>
// kernel: tpu_custom_call.1
$region0: #{tpu_custom_call.1}
  #allocation0 [shape = 'u32[]', space=smem, size = 0x4, offset = 0x4, fixed_abs, tag = 'smem constant byte address 0x4 - core index']
  #allocation1 [shape = 'u32[144,128]{1,0:T(1,128)}', space=vmem, size = 0x12000, scoped, tag = 'internal scratch']
  %s0 = inlined_call_operand.vmem [shape: bf16[2,28,28,4], index: 0, kind: input, shape index: {}]
  %s1 = inlined_call_operand.vmem [shape: bf16[9,4,128], index: 1, kind: input, shape index: {}]
  %s2 = inlined_call_operand.vmem [shape: f32[1,128], index: 2, kind: input, shape index: {}]
  %s3 = inlined_call_operand.hbm [shape: f32[2,256,128], index: 3, kind: output, shape index: {}]
  %s4 = sld [smem:[#allocation0]]
  $region45: #{tpu_custom_call.1} parent=0
    _
  %s6 = ssub.s32 1, %s4
  %s7 = scalar_select 0, %s6, %s4
  $region1: #{tpu_custom_call.1} parent=0
    #allocation2 [shape = 'u8[262144]{0}', space=vmem, size = 0x40000, scoped, tag = 'output window, operand 0']
    #allocation3 [shape = 's32[2]{0}', space=sflag, size = 0x8, scoped, tag = 'scoped memory for tpu_custom_call.1']
    %8 = vsyncpa [#allocation3], 0
    %s9 = scalar_lea.sflag [#allocation3], 1
    %10 = vsyncpa %s9, 0
    loop: start=0, step=1, limit=4
    $region2: #{tpu_custom_call.1} parent=1 // loop_pre_header
      _
    $region3: #{tpu_custom_call.1} parent=1 // loop_header
      %s12 = sphi 0, %s16
      %p13 = scmp.ge.s32.totalorder %s12, 4
      %s22 = sphi 0, %s24
      %s25 = sphi 0, %s22
      %s26 = sphi 0, %s25
      %s42 = sphi 0, %s26
      %s46 = sphi 0, %s46
      %s48 = sphi 0, %s46
      %s49 = sphi 0, %s48
      %s63 = sphi 0, %s49
      %s67 = sphi 0, %s67
      %s69 = sphi 0, %s67
      %s70 = sphi 0, %s69
      %s84 = sphi 0, %s70
      %s90 = sphi 0, %s92
      %s93 = sphi 0, %s90
      %s94 = sphi 0, %s93
      %s110 = sphi 0, %s94
    $region4: #{tpu_custom_call.1} parent=1 // loop_header_branch
      %15 = sbr.rel (%p13) target = $region8
    $region5: #{tpu_custom_call.1} parent=1 // loop_body
      %s17 = ssub.s32 %s12, 1
      %s18 = ssub.s32 %s12, 2
      %s19 = sadd.s32 %s12, 1
      %s20 = ssub.s32 %s12, %s19
      %p21 = scmp.eq.s32.totalorder %s20, 0
      %s23 = sadd.s32 %s22, 1
      %s24 = scalar_select %p21, %s22, %s23
      %p27 = pneg %p21
      %p28 = scmp.eq.s32.totalorder %s12, 1
      %p29 = por %p27, %p28
      %p30 = scmp.ne.s32.totalorder %s22, %s25
      %p31 = scmp.eq.s32.totalorder %s12, 0
      %p32 = por %p30, %p31
      %p33 = scmp.ne.s32.totalorder %s22, %s25
      %p34 = scmp.eq.s32.totalorder %s17, 1
      %p35 = por %p33, %p34
      %p36 = scmp.ne.s32.totalorder %s25, %s26
      %p37 = scmp.eq.s32.totalorder %s17, 0
      %p38 = por %p36, %p37
      %p39 = scmp.ne.s32.totalorder %s25, %s26
      %p40 = scmp.eq.s32.totalorder %s18, 1
      %p41 = por %p39, %p40
      %p43 = scmp.ne.s32.totalorder %s26, %s42
      %p44 = scmp.eq.s32.totalorder %s18, 0
      %p45 = por %p43, %p44
      %s47 = sadd.s32 %s46, 1
      %p50 = scmp.eq.s32.totalorder %s12, 1
      %p51 = scmp.ne.s32.totalorder %s46, %s48
      %p52 = scmp.eq.s32.totalorder %s12, 0
      %p53 = por %p51, %p52
      %p54 = scmp.ne.s32.totalorder %s46, %s48
      %p55 = scmp.eq.s32.totalorder %s17, 1
      %p56 = por %p54, %p55
      %p57 = scmp.ne.s32.totalorder %s48, %s49
      %p58 = scmp.eq.s32.totalorder %s17, 0
      %p59 = por %p57, %p58
      %p60 = scmp.ne.s32.totalorder %s48, %s49
      %p61 = scmp.eq.s32.totalorder %s18, 1
      %p62 = por %p60, %p61
      %p64 = scmp.ne.s32.totalorder %s49, %s63
      %p65 = scmp.eq.s32.totalorder %s18, 0
      %p66 = por %p64, %p65
      %s68 = sadd.s32 %s67, 1
      %p71 = scmp.eq.s32.totalorder %s12, 1
      %p72 = scmp.ne.s32.totalorder %s67, %s69
      %p73 = scmp.eq.s32.totalorder %s12, 0
      %p74 = por %p72, %p73
      %p75 = scmp.ne.s32.totalorder %s67, %s69
      %p76 = scmp.eq.s32.totalorder %s17, 1
      %p77 = por %p75, %p76
      %p78 = scmp.ne.s32.totalorder %s69, %s70
      %p79 = scmp.eq.s32.totalorder %s17, 0
      %p80 = por %p78, %p79
      %p81 = scmp.ne.s32.totalorder %s69, %s70
      %p82 = scmp.eq.s32.totalorder %s18, 1
      %p83 = por %p81, %p82
      %p85 = scmp.ne.s32.totalorder %s70, %s84
      %p86 = scmp.eq.s32.totalorder %s18, 0
      %p87 = por %p85, %p86
      %s88 = ssub.s32 %s12, %s19
      %p89 = scmp.eq.s32.totalorder %s88, 0
      %s91 = sadd.s32 %s90, 1
      %s92 = scalar_select %p89, %s90, %s91
      %p95 = pneg %p89
      %p96 = scmp.eq.s32.totalorder %s12, 1
      %p97 = por %p95, %p96
      %p98 = scmp.ne.s32.totalorder %s90, %s93
      %p99 = scmp.eq.s32.totalorder %s12, 0
      %p100 = por %p98, %p99
      %p101 = scmp.ne.s32.totalorder %s90, %s93
      %p102 = scmp.eq.s32.totalorder %s17, 1
      %p103 = por %p101, %p102
      %p104 = scmp.ne.s32.totalorder %s93, %s94
      %p105 = scmp.eq.s32.totalorder %s17, 0
      %p106 = por %p104, %p105
      %p107 = scmp.ne.s32.totalorder %s93, %s94
      %p108 = scmp.eq.s32.totalorder %s18, 1
      %p109 = por %p107, %p108
      %p111 = scmp.ne.s32.totalorder %s94, %s110
      %p112 = scmp.eq.s32.totalorder %s18, 0
      %p113 = por %p111, %p112
      %p114 = scmp.le.s32.totalorder 1, %s12
      %p115 = scmp.lt.s32.totalorder %s12, 3
      %p116 = pnand %p114, %p115
      %p117 = pneg %p116
      // Predicated region
      $region9: #{tpu_custom_call.1} parent=5 // pred_check
        _
      $region10: #{tpu_custom_call.1} parent=5 // pred_check_branch
        %119 = sbr.rel (%p116) target = $region12
      $region11: #{tpu_custom_call.1} parent=5 // pred_region
        %s120 = ssub.s32 %s12, 1
        // Predicated region
        $region13: #{tpu_custom_call.1} parent=11 // pred_check
          %p121 = pneg %p59
        $region14: #{tpu_custom_call.1} parent=11 // pred_check_branch
          %123 = sbr.rel (%p121) target = $region16
        $region15: #{tpu_custom_call.1} parent=11 // pred_region
          _
        $region16: #{tpu_custom_call.1} parent=11 // pred_fallthru
          _
        // Predicated region
        $region17: #{tpu_custom_call.1} parent=11 // pred_check
          %p124 = pneg %p80
        $region18: #{tpu_custom_call.1} parent=11 // pred_check_branch
          %126 = sbr.rel (%p124) target = $region20
        $region19: #{tpu_custom_call.1} parent=11 // pred_region
          _
        $region20: #{tpu_custom_call.1} parent=11 // pred_fallthru
          _
      $region12: #{tpu_custom_call.1} parent=5 // pred_fallthru
        _
      %p127 = scmp.lt.s32.totalorder %s12, 2
      // Predicated region
      $region21: #{tpu_custom_call.1} parent=5 // pred_check
        %p128 = pneg %p127
      $region22: #{tpu_custom_call.1} parent=5 // pred_check_branch
        %130 = sbr.rel (%p128) target = $region24
      $region23: #{tpu_custom_call.1} parent=5 // pred_region
        // Predicated region
        $region25: #{tpu_custom_call.1} parent=23 // pred_check
          %p131 = pneg %p32
        $region26: #{tpu_custom_call.1} parent=23 // pred_check_branch
          %133 = sbr.rel (%p131) target = $region28
        $region27: #{tpu_custom_call.1} parent=23 // pred_region
          %p134 = scmp.lt.s32.totalorder %s12, 1
          %s135 = scalar_select %p134, %s12, 1
          %s136 = smul.addr %s135, 112
          %s137 = smul.addr %s136, 4
          %s138 = scalar_lea.vmem %s0, %s137
        $region28: #{tpu_custom_call.1} parent=23 // pred_fallthru
          _
      $region24: #{tpu_custom_call.1} parent=5 // pred_fallthru
        _
      %p139 = scmp.le.s32.totalorder 1, %s12
      %p140 = scmp.lt.s32.totalorder %s12, 3
      %p141 = pnand %p139, %p140
      %p142 = pneg %p141
      // Predicated region
      $region29: #{tpu_custom_call.1} parent=5 // pred_check
        _
      $region30: #{tpu_custom_call.1} parent=5 // pred_check_branch
        %144 = sbr.rel (%p141) target = $region32
      $region31: #{tpu_custom_call.1} parent=5 // pred_region
        %s145 = ssub.s32 %s12, 1
        %p146 = scmp.lt.s32.totalorder %s17, 1
        %s147 = scalar_select %p146, %s17, 1
        %s148 = smul.addr %s147, 112
        %s149 = smul.addr %s148, 4
        %s150 = scalar_lea.vmem %s0, %s149
        %p151 = pneg %p38
        %p152 = pneg %p35
        %p153 = pneg %p59
        %p154 = pneg %p56
        %p155 = pneg %p80
        %p156 = pneg %p77
        %p157 = pneg %p106
        %p158 = pneg %p103
        %s159 = sand.u32 %s93, 1
        %s160 = scalar_lea.sflag [#allocation3], %s159
        %s161 = sand.u32 %s93, 1
        %s162 = smul.addr %s161, 256
        %s163 = scalar_lea.vmem [#allocation2], %s162
        %p164 = scmp.lt.s32.totalorder %s17, 1
        %s165 = scalar_select %p164, %s17, 1
        %s166 = smul.addr %s165, 112
        %s167 = smul.addr %s166, 4
        %s168 = scalar_lea.vmem %s0, %s167
        %v170 = vld [vmem:[%s2] sm:$0x1]
        %v171 = vld [vmem:[%s168] sm:$0xf]
        %v172 = vld [vmem:[%s168 + $0x4] sm:$0xf]
        %v173 = vld [vmem:[%s168 + $0x10] sm:$0xf]
        %v174 = vld [vmem:[%s168 + $0x14] sm:$0xf]
        %v175 = vld [vmem:[%s168 + $0x20] sm:$0xf]
        %v176 = vld [vmem:[%s168 + $0x24] sm:$0xf]
        %v177 = vld [vmem:[%s168 + $0x30] sm:$0xf]
        %v178 = vld [vmem:[%s168 + $0x34] sm:$0xf]
        %v179 = vld [vmem:[%s168 + $0x40] sm:$0xf]
        %v180 = vld [vmem:[%s168 + $0x44] sm:$0xf]
        %v181 = vld [vmem:[%s168 + $0x50] sm:$0xf]
        %v182 = vld [vmem:[%s168 + $0x54] sm:$0xf]
        %v183 = vld [vmem:[%s168 + $0x60] sm:$0xf]
        %v184 = vld [vmem:[%s168 + $0x64] sm:$0xf]
        %v185 = vld [vmem:[%s168 + $0x70] sm:$0xf]
        %v186 = vld [vmem:[%s168 + $0x74] sm:$0xf]
        %v187 = vld [vmem:[%s168 + $0x80] sm:$0xf]
        %v188 = vld [vmem:[%s168 + $0x84] sm:$0xf]
        %v189 = vld [vmem:[%s168 + $0x90] sm:$0xf]
        %v190 = vld [vmem:[%s168 + $0x94] sm:$0xf]
        %v191 = vld [vmem:[%s168 + $0xa0] sm:$0xf]
        %v192 = vld [vmem:[%s168 + $0xa4] sm:$0xf]
        %v193 = vld [vmem:[%s168 + $0xb0] sm:$0xf]
        %v194 = vld [vmem:[%s168 + $0xb4] sm:$0xf]
        %v195 = vld [vmem:[%s168 + $0xc0] sm:$0xf]
        %v196 = vld [vmem:[%s168 + $0xc4] sm:$0xf]
        %v197 = vld [vmem:[%s168 + $0xd0] sm:$0xf]
        %v198 = vld [vmem:[%s168 + $0xd4] sm:$0xf]
        %v199 = vld [vmem:[%s168 + $0xe0] sm:$0xf]
        %v200 = vld [vmem:[%s168 + $0xe4] sm:$0xf]
        %v201 = vld [vmem:[%s168 + $0xf0] sm:$0xf]
        %v202 = vld [vmem:[%s168 + $0xf4] sm:$0xf]
        %v203 = vld [vmem:[%s1] sm:$0x3]
        %v236 = vunpack.c.l.b16 %v171
        %v237 = vunpack.c.l.b16 %v172
        %v238 = vunpack.c.l.b16 %v173
        %v239 = vunpack.c.l.b16 %v174
        %v240 = vunpack.c.l.b16 %v175
        %v241 = vunpack.c.l.b16 %v176
        %v242 = vunpack.c.l.b16 %v177
        %v243 = vunpack.c.l.b16 %v178
        %v244 = vunpack.c.l.b16 %v179
        %v245 = vunpack.c.l.b16 %v180
        %v246 = vunpack.c.l.b16 %v181
        %v247 = vunpack.c.l.b16 %v182
        %v248 = vunpack.c.l.b16 %v183
        %v249 = vunpack.c.l.b16 %v184
        %v250 = vunpack.c.l.b16 %v185
        %v251 = vunpack.c.l.b16 %v186
        %v252 = vunpack.c.l.b16 %v187
        %v253 = vunpack.c.l.b16 %v188
        %v254 = vunpack.c.l.b16 %v189
        %v255 = vunpack.c.l.b16 %v190
        %v256 = vunpack.c.l.b16 %v191
        %v257 = vunpack.c.l.b16 %v192
        %v258 = vunpack.c.l.b16 %v193
        %v259 = vunpack.c.l.b16 %v194
        %v260 = vunpack.c.l.b16 %v195
        %v261 = vunpack.c.l.b16 %v196
        %v262 = vunpack.c.l.b16 %v197
        %v263 = vunpack.c.l.b16 %v198
        %v264 = vunpack.c.l.b16 %v199
        %v265 = vunpack.c.l.b16 %v200
        %v266 = vunpack.c.l.b16 %v201
        %v267 = vunpack.c.l.b16 %v202
        %v268 = vpack.c.b16 %v237, %v236
        %v269 = vpack.c.b16 %v239, %v238
        %v270 = vpack.c.b16 %v241, %v240
        %v271 = vpack.c.b16 %v243, %v242
        %v272 = vpack.c.b16 %v245, %v244
        %v273 = vpack.c.b16 %v247, %v246
        %v274 = vpack.c.b16 %v249, %v248
        %v275 = vpack.c.b16 %v251, %v250
        %v276 = vpack.c.b16 %v253, %v252
        %v277 = vpack.c.b16 %v255, %v254
        %v278 = vpack.c.b16 %v257, %v256
        %v279 = vpack.c.b16 %v259, %v258
        %v280 = vpack.c.b16 %v261, %v260
        %v281 = vpack.c.b16 %v263, %v262
        %v282 = vpack.c.b16 %v265, %v264
        %v283 = vpack.c.b16 %v267, %v266
        %vm284 = vcmask 31744
        %v286 = vsel %vm284, %v268, 0
        %v289 = vsel %vm284, %v269, 0
        %v292 = vsel %vm284, %v270, 0
        %v295 = vsel %vm284, %v271, 0
        %v298 = vsel %vm284, %v272, 0
        %v301 = vsel %vm284, %v273, 0
        %v304 = vsel %vm284, %v274, 0
        %v307 = vsel %vm284, %v275, 0
        %v310 = vsel %vm284, %v276, 0
        %v313 = vsel %vm284, %v277, 0
        %v316 = vsel %vm284, %v278, 0
        %v319 = vsel %vm284, %v279, 0
        %v322 = vsel %vm284, %v280, 0
        %v325 = vsel %vm284, %v281, 0
        %v328 = vsel %vm284, %v282, 0
        %v331 = vsel %vm284, %v283, 0
        %vm333 = vcmask 1041408
        %v335 = vsel %vm333, %v203, 0
        %337 = vmatprep.subr.bf16.mxu0 0
        %338 = vmatpush1.bf16.msra.mxu0 %v335
        %339 = vmatprep.subr.bf16.mxu0 0
        %340 = vmatpush1.bf16.msra.mxu0 0
        %341 = vmatprep.subr.bf16.mxu0 0
        %342 = vmatpush1.bf16.msra.mxu0 0
        %343 = vmatprep.subr.bf16.mxu0 0
        %344 = vmatpush1.bf16.msra.mxu0 0
        %345 = vmatprep.subr.bf16.mxu0 0
        %346 = vmatpush1.bf16.msra.mxu0 0
        %347 = vmatprep.subr.bf16.mxu0 0
        %348 = vmatpush1.bf16.msra.mxu0 0
        %349 = vmatprep.subr.bf16.mxu0 0
        %350 = vmatpush1.bf16.msra.mxu0 0
        %351 = vmatprep.subr.bf16.mxu0 0
        %352 = vmatpush1.bf16.msra.mxu0 0
        %353 = vmatprep.subr.bf16.mxu0 0
        %354 = vmatpush1.bf16.msra.mxu0 0
        %355 = vmatprep.subr.bf16.mxu0 0
        %356 = vmatpush1.bf16.msra.mxu0 0
        %357 = vmatprep.subr.bf16.mxu0 0
        %358 = vmatpush1.bf16.msra.mxu0 0
        %359 = vmatprep.subr.bf16.mxu0 0
        %360 = vmatpush1.bf16.msra.mxu0 0
        %361 = vmatprep.subr.bf16.mxu0 0
        %362 = vmatpush1.bf16.msra.mxu0 0
        %363 = vmatprep.subr.bf16.mxu0 0
        %364 = vmatpush1.bf16.msra.mxu0 0
        %365 = vmatprep.subr.bf16.mxu0 0
        %366 = vmatpush1.bf16.msra.mxu0 0
        %367 = vmatprep.subr.bf16.mxu0 0
        %368 = vmatpush1.bf16.msra.mxu0 0
        %369 = vmatprep.mubr.bf16.mxu0 0
        %370 = vmatmul.mubr.bf16.gmra.mrb[0].mxu0 %v286
        %v371 = vpop.f32.mrb[0].mxu0
        %v372 = vadd.f32 0.0, %v371
        %v373 = vpop.f32.mrb[0].mxu0
        %v374 = vpop.f32.mrb[0].mxu0
        %v375 = vadd.f32 0.0, %v374
        %v376 = vpop.f32.mrb[0].mxu0
        %377 = vmatprep.mubr.bf16.mxu0 0
        %378 = vmatmul.mubr.bf16.gmra.mrb[0].mxu0 %v289
        %v379 = vpop.f32.mrb[0].mxu0
        %v380 = vadd.f32 0.0, %v379
        %v381 = vpop.f32.mrb[0].mxu0
        %v382 = vpop.f32.mrb[0].mxu0
        %v383 = vadd.f32 0.0, %v382
        %v384 = vpop.f32.mrb[0].mxu0
        %385 = vmatprep.mubr.bf16.mxu0 0
        %386 = vmatmul.mubr.bf16.gmra.mrb[0].mxu0 %v292
        %v387 = vpop.f32.mrb[0].mxu0
        %v388 = vadd.f32 0.0, %v387
        %v389 = vpop.f32.mrb[0].mxu0
        %v390 = vpop.f32.mrb[0].mxu0
        %v391 = vadd.f32 0.0, %v390
        %v392 = vpop.f32.mrb[0].mxu0
        %393 = vmatprep.mubr.bf16.mxu0 0
        %394 = vmatmul.mubr.bf16.gmra.mrb[0].mxu0 %v295
        %v395 = vpop.f32.mrb[0].mxu0
        %v396 = vadd.f32 0.0, %v395
        %v397 = vpop.f32.mrb[0].mxu0
        %v398 = vpop.f32.mrb[0].mxu0
        %v399 = vadd.f32 0.0, %v398
        %v400 = vpop.f32.mrb[0].mxu0
        %401 = vmatprep.mubr.bf16.mxu0 0
        %402 = vmatmul.mubr.bf16.gmra.mrb[0].mxu0 %v298
        %v403 = vpop.f32.mrb[0].mxu0
        %v404 = vadd.f32 0.0, %v403
        %v405 = vpop.f32.mrb[0].mxu0
        %v406 = vpop.f32.mrb[0].mxu0
        %v407 = vadd.f32 0.0, %v406
        %v408 = vpop.f32.mrb[0].mxu0
        %409 = vmatprep.mubr.bf16.mxu0 0
        %410 = vmatmul.mubr.bf16.gmra.mrb[0].mxu0 %v301
        %v411 = vpop.f32.mrb[0].mxu0
        %v412 = vadd.f32 0.0, %v411
        %v413 = vpop.f32.mrb[0].mxu0
        %v414 = vpop.f32.mrb[0].mxu0
        %v415 = vadd.f32 0.0, %v414
        %v416 = vpop.f32.mrb[0].mxu0
        %417 = vmatprep.mubr.bf16.mxu0 0
        %418 = vmatmul.mubr.bf16.gmra.mrb[0].mxu0 %v304
        %v419 = vpop.f32.mrb[0].mxu0
        %v420 = vadd.f32 0.0, %v419
        %v421 = vpop.f32.mrb[0].mxu0
        %v422 = vpop.f32.mrb[0].mxu0
        %v423 = vadd.f32 0.0, %v422
        %v424 = vpop.f32.mrb[0].mxu0
        %425 = vmatprep.mubr.bf16.mxu0 0
        %426 = vmatmul.mubr.bf16.gmra.mrb[0].mxu0 %v307
        %v427 = vpop.f32.mrb[0].mxu0
        %v428 = vadd.f32 0.0, %v427
        %v429 = vpop.f32.mrb[0].mxu0
        %v430 = vpop.f32.mrb[0].mxu0
        %v431 = vadd.f32 0.0, %v430
        %v432 = vpop.f32.mrb[0].mxu0
        %433 = vmatprep.mubr.bf16.mxu0 0
        %434 = vmatmul.mubr.bf16.gmra.mrb[0].mxu0 %v310
        %v435 = vpop.f32.mrb[0].mxu0
        %v436 = vadd.f32 0.0, %v435
        %v437 = vpop.f32.mrb[0].mxu0
        %v438 = vpop.f32.mrb[0].mxu0
        %v439 = vadd.f32 0.0, %v438
        %v440 = vpop.f32.mrb[0].mxu0
        %441 = vmatprep.mubr.bf16.mxu0 0
        %442 = vmatmul.mubr.bf16.gmra.mrb[0].mxu0 %v313
        %v443 = vpop.f32.mrb[0].mxu0
        %v444 = vadd.f32 0.0, %v443
        %v445 = vpop.f32.mrb[0].mxu0
        %v446 = vpop.f32.mrb[0].mxu0
        %v447 = vadd.f32 0.0, %v446
        %v448 = vpop.f32.mrb[0].mxu0
        %449 = vmatprep.mubr.bf16.mxu0 0
        %450 = vmatmul.mubr.bf16.gmra.mrb[0].mxu0 %v316
        %v451 = vpop.f32.mrb[0].mxu0
        %v452 = vadd.f32 0.0, %v451
        %v453 = vpop.f32.mrb[0].mxu0
        %v454 = vpop.f32.mrb[0].mxu0
        %v455 = vadd.f32 0.0, %v454
        %v456 = vpop.f32.mrb[0].mxu0
        %457 = vmatprep.mubr.bf16.mxu0 0
        %458 = vmatmul.mubr.bf16.gmra.mrb[0].mxu0 %v319
        %v459 = vpop.f32.mrb[0].mxu0
        %v460 = vadd.f32 0.0, %v459
        %v461 = vpop.f32.mrb[0].mxu0
        %v462 = vpop.f32.mrb[0].mxu0
        %v463 = vadd.f32 0.0, %v462
        %v464 = vpop.f32.mrb[0].mxu0
        %465 = vmatprep.mubr.bf16.mxu0 0
        %466 = vmatmul.mubr.bf16.gmra.mrb[0].mxu0 %v322
        %v467 = vpop.f32.mrb[0].mxu0
        %v468 = vadd.f32 0.0, %v467
        %v469 = vpop.f32.mrb[0].mxu0
        %v470 = vpop.f32.mrb[0].mxu0
        %v471 = vadd.f32 0.0, %v470
        %v472 = vpop.f32.mrb[0].mxu0
        %473 = vmatprep.mubr.bf16.mxu0 0
        %474 = vmatmul.mubr.bf16.gmra.mrb[0].mxu0 %v325
        %v475 = vpop.f32.mrb[0].mxu0
        %v476 = vadd.f32 0.0, %v475
        %v477 = vpop.f32.mrb[0].mxu0
        %v478 = vpop.f32.mrb[0].mxu0
        %v479 = vadd.f32 0.0, %v478
        %v480 = vpop.f32.mrb[0].mxu0
        %481 = vmatprep.mubr.bf16.mxu0 0
        %482 = vmatmul.mubr.bf16.gmra.mrb[0].mxu0 %v328
        %v483 = vpop.f32.mrb[0].mxu0
        %v484 = vadd.f32 0.0, %v483
        %v485 = vpop.f32.mrb[0].mxu0
        %v486 = vpop.f32.mrb[0].mxu0
        %v487 = vadd.f32 0.0, %v486
        %v488 = vpop.f32.mrb[0].mxu0
        %489 = vmatprep.mubr.bf16.mxu0 0
        %490 = vmatmul.mubr.bf16.gmra.mrb[0].mxu0 %v331
        %v491 = vpop.f32.mrb[0].mxu0
        %v492 = vadd.f32 0.0, %v491
        %v493 = vpop.f32.mrb[0].mxu0
        %v494 = vpop.f32.mrb[0].mxu0
        %v495 = vadd.f32 0.0, %v494
        %v496 = vpop.f32.mrb[0].mxu0
        %497 = vdwg.mxu0
        %v499 = vlaneseq
        %v500 = vshrl.u32 %v499, 7
        %v501 = vsub.s32 0, %v500
        %v502 = vrot.slane %v170, %v501
        %v504 = vadd.f32 %v502, %v372
        %v505 = vadd.f32 %v502, %v375
        %v506 = vadd.f32 %v502, %v380
        %v507 = vadd.f32 %v502, %v383
        %v508 = vadd.f32 %v502, %v388
        %v509 = vadd.f32 %v502, %v391
        %v510 = vadd.f32 %v502, %v396
        %v511 = vadd.f32 %v502, %v399
        %v512 = vadd.f32 %v502, %v404
        %v513 = vadd.f32 %v502, %v407
        %v514 = vadd.f32 %v502, %v412
        %v515 = vadd.f32 %v502, %v415
        %v516 = vadd.f32 %v502, %v420
        %v517 = vadd.f32 %v502, %v423
        %v518 = vadd.f32 %v502, %v428
        %v519 = vadd.f32 %v502, %v431
        %v520 = vadd.f32 %v502, %v436
        %v521 = vadd.f32 %v502, %v439
        %v522 = vadd.f32 %v502, %v444
        %v523 = vadd.f32 %v502, %v447
        %v524 = vadd.f32 %v502, %v452
        %v525 = vadd.f32 %v502, %v455
        %v526 = vadd.f32 %v502, %v460
        %v527 = vadd.f32 %v502, %v463
        %v528 = vadd.f32 %v502, %v468
        %v529 = vadd.f32 %v502, %v471
        %v530 = vadd.f32 %v502, %v476
        %v531 = vadd.f32 %v502, %v479
        %v532 = vadd.f32 %v502, %v484
        %v533 = vadd.f32 %v502, %v487
        %v534 = vadd.f32 %v502, %v492
        %v535 = vadd.f32 %v502, %v495
        %536 = vst [vmem:[%s163] sm:$0xff] %v504
        %537 = vst [vmem:[%s163 + $0x8] sm:$0xff] %v505
        %538 = vst [vmem:[%s163 + $0x10] sm:$0xff] %v506
        %539 = vst [vmem:[%s163 + $0x18] sm:$0xff] %v507
        %540 = vst [vmem:[%s163 + $0x20] sm:$0xff] %v508
        %541 = vst [vmem:[%s163 + $0x28] sm:$0xff] %v509
        %542 = vst [vmem:[%s163 + $0x30] sm:$0xff] %v510
        %543 = vst [vmem:[%s163 + $0x38] sm:$0xff] %v511
        %544 = vst [vmem:[%s163 + $0x40] sm:$0xff] %v512
        %545 = vst [vmem:[%s163 + $0x48] sm:$0xff] %v513
        %546 = vst [vmem:[%s163 + $0x50] sm:$0xff] %v514
        %547 = vst [vmem:[%s163 + $0x58] sm:$0xff] %v515
        %548 = vst [vmem:[%s163 + $0x60] sm:$0xff] %v516
        %549 = vst [vmem:[%s163 + $0x68] sm:$0xff] %v517
        %550 = vst [vmem:[%s163 + $0x70] sm:$0xff] %v518
        %551 = vst [vmem:[%s163 + $0x78] sm:$0xff] %v519
        %552 = vst [vmem:[%s163 + $0x80] sm:$0xff] %v520
        %553 = vst [vmem:[%s163 + $0x88] sm:$0xff] %v521
        %554 = vst [vmem:[%s163 + $0x90] sm:$0xff] %v522
        %555 = vst [vmem:[%s163 + $0x98] sm:$0xff] %v523
        %556 = vst [vmem:[%s163 + $0xa0] sm:$0xff] %v524
        %557 = vst [vmem:[%s163 + $0xa8] sm:$0xff] %v525
        %558 = vst [vmem:[%s163 + $0xb0] sm:$0xff] %v526
        %559 = vst [vmem:[%s163 + $0xb8] sm:$0xff] %v527
        %560 = vst [vmem:[%s163 + $0xc0] sm:$0xff] %v528
        %561 = vst [vmem:[%s163 + $0xc8] sm:$0xff] %v529
        %562 = vst [vmem:[%s163 + $0xd0] sm:$0xff] %v530
        %563 = vst [vmem:[%s163 + $0xd8] sm:$0xff] %v531
        %564 = vst [vmem:[%s163 + $0xe0] sm:$0xff] %v532
        %565 = vst [vmem:[%s163 + $0xe8] sm:$0xff] %v533
        %566 = vst [vmem:[%s163 + $0xf0] sm:$0xff] %v534
        %567 = vst [vmem:[%s163 + $0xf8] sm:$0xff] %v535
        %v568 = vld [vmem:[%s163] sm:$0xff]
        %v569 = vld [vmem:[%s163 + $0x8] sm:$0xff]
        %v570 = vld [vmem:[%s163 + $0x10] sm:$0xff]
        %v571 = vld [vmem:[%s163 + $0x18] sm:$0xff]
        %v572 = vld [vmem:[%s163 + $0x20] sm:$0xff]
        %v573 = vld [vmem:[%s163 + $0x28] sm:$0xff]
        %v574 = vld [vmem:[%s163 + $0x30] sm:$0xff]
        %v575 = vld [vmem:[%s163 + $0x38] sm:$0xff]
        %v576 = vld [vmem:[%s163 + $0x40] sm:$0xff]
        %v577 = vld [vmem:[%s163 + $0x48] sm:$0xff]
        %v578 = vld [vmem:[%s163 + $0x50] sm:$0xff]
        %v579 = vld [vmem:[%s163 + $0x58] sm:$0xff]
        %v580 = vld [vmem:[%s163 + $0x60] sm:$0xff]
        %v581 = vld [vmem:[%s163 + $0x68] sm:$0xff]
        %v582 = vld [vmem:[%s163 + $0x70] sm:$0xff]
        %v583 = vld [vmem:[%s163 + $0x78] sm:$0xff]
        %v584 = vld [vmem:[%s163 + $0x80] sm:$0xff]
        %v585 = vld [vmem:[%s163 + $0x88] sm:$0xff]
        %v586 = vld [vmem:[%s163 + $0x90] sm:$0xff]
        %v587 = vld [vmem:[%s163 + $0x98] sm:$0xff]
        %v588 = vld [vmem:[%s163 + $0xa0] sm:$0xff]
        %v589 = vld [vmem:[%s163 + $0xa8] sm:$0xff]
        %v590 = vld [vmem:[%s163 + $0xb0] sm:$0xff]
        %v591 = vld [vmem:[%s163 + $0xb8] sm:$0xff]
        %v592 = vld [vmem:[%s163 + $0xc0] sm:$0xff]
        %v593 = vld [vmem:[%s163 + $0xc8] sm:$0xff]
        %v594 = vld [vmem:[%s163 + $0xd0] sm:$0xff]
        %v595 = vld [vmem:[%s163 + $0xd8] sm:$0xff]
        %v596 = vld [vmem:[%s163 + $0xe0] sm:$0xff]
        %v597 = vld [vmem:[%s163 + $0xe8] sm:$0xff]
        %v598 = vld [vmem:[%s163 + $0xf0] sm:$0xff]
        %v599 = vld [vmem:[%s163 + $0xf8] sm:$0xff]
        %v600 = vld [vmem:[%s168] sm:$0x8]
        %v601 = vld [vmem:[%s168 + $0x4] sm:$0xf]
        %v602 = vld [vmem:[%s168 + $0x8] sm:$0x7]
        %v603 = vld [vmem:[%s168 + $0x10] sm:$0x8]
        %v604 = vld [vmem:[%s168 + $0x14] sm:$0xf]
        %v605 = vld [vmem:[%s168 + $0x18] sm:$0x7]
        %v606 = vld [vmem:[%s168 + $0x20] sm:$0x8]
        %v607 = vld [vmem:[%s168 + $0x24] sm:$0xf]
        %v608 = vld [vmem:[%s168 + $0x28] sm:$0x7]
        %v609 = vld [vmem:[%s168 + $0x30] sm:$0x8]
        %v610 = vld [vmem:[%s168 + $0x34] sm:$0xf]
        %v611 = vld [vmem:[%s168 + $0x38] sm:$0x7]
        %v612 = vld [vmem:[%s168 + $0x40] sm:$0x8]
        %v613 = vld [vmem:[%s168 + $0x44] sm:$0xf]
        %v614 = vld [vmem:[%s168 + $0x48] sm:$0x7]
        %v615 = vld [vmem:[%s168 + $0x50] sm:$0x8]
        %v616 = vld [vmem:[%s168 + $0x54] sm:$0xf]
        %v617 = vld [vmem:[%s168 + $0x58] sm:$0x7]
        %v618 = vld [vmem:[%s168 + $0x60] sm:$0x8]
        %v619 = vld [vmem:[%s168 + $0x64] sm:$0xf]
        %v620 = vld [vmem:[%s168 + $0x68] sm:$0x7]
        %v621 = vld [vmem:[%s168 + $0x70] sm:$0x8]
        %v622 = vld [vmem:[%s168 + $0x74] sm:$0xf]
        %v623 = vld [vmem:[%s168 + $0x78] sm:$0x7]
        %v624 = vld [vmem:[%s168 + $0x80] sm:$0x8]
        %v625 = vld [vmem:[%s168 + $0x84] sm:$0xf]
        %v626 = vld [vmem:[%s168 + $0x88] sm:$0x7]
        %v627 = vld [vmem:[%s168 + $0x90] sm:$0x8]
        %v628 = vld [vmem:[%s168 + $0x94] sm:$0xf]
        %v629 = vld [vmem:[%s168 + $0x98] sm:$0x7]
        %v630 = vld [vmem:[%s168 + $0xa0] sm:$0x8]
        %v631 = vld [vmem:[%s168 + $0xa4] sm:$0xf]
        %v632 = vld [vmem:[%s168 + $0xa8] sm:$0x7]
        %v633 = vld [vmem:[%s168 + $0xb0] sm:$0x8]
        %v634 = vld [vmem:[%s168 + $0xb4] sm:$0xf]
        %v635 = vld [vmem:[%s168 + $0xb8] sm:$0x7]
        %v636 = vld [vmem:[%s168 + $0xc0] sm:$0x8]
        %v637 = vld [vmem:[%s168 + $0xc4] sm:$0xf]
        %v638 = vld [vmem:[%s168 + $0xc8] sm:$0x7]
        %v639 = vld [vmem:[%s168 + $0xd0] sm:$0x8]
        %v640 = vld [vmem:[%s168 + $0xd4] sm:$0xf]
        %v641 = vld [vmem:[%s168 + $0xd8] sm:$0x7]
        %v642 = vld [vmem:[%s168 + $0xe0] sm:$0x8]
        %v643 = vld [vmem:[%s168 + $0xe4] sm:$0xf]
        %v644 = vld [vmem:[%s168 + $0xe8] sm:$0x7]
        %v645 = vld [vmem:[%s168 + $0xf0] sm:$0x8]
        %v646 = vld [vmem:[%s168 + $0xf4] sm:$0xf]
        %v647 = vld [vmem:[%s168 + $0xf8] sm:$0x7]
        %vm696 = vcmask 1040384
        %vm697 = vcmask 1044484
        %vm698 = vmor %vm696, %vm697
        %v699 = vrot.slane %v600, 7
        %v700 = vrot.slane %v699, 4
        %v701 = vrot.slane %v601, 7
        %v702 = vsel %vm698, %v700, %v701
        %v703 = vrot.slane %v701, 4
        %v704 = vrot.slane %v602, 7
        %v705 = vsel %vm698, %v703, %v704
        %v706 = vrot.slane %v603, 7
        %v707 = vrot.slane %v706, 4
        %v708 = vrot.slane %v604, 7
        %v709 = vsel %vm698, %v707, %v708
        %v710 = vrot.slane %v708, 4
        %v711 = vrot.slane %v605, 7
        %v712 = vsel %vm698, %v710, %v711
        %v713 = vrot.slane %v606, 7
        %v714 = vrot.slane %v713, 4
        %v715 = vrot.slane %v607, 7
        %v716 = vsel %vm698, %v714, %v715
        %v717 = vrot.slane %v715, 4
        %v718 = vrot.slane %v608, 7
        %v719 = vsel %vm698, %v717, %v718
        %v720 = vrot.slane %v609, 7
        %v721 = vrot.slane %v720, 4
        %v722 = vrot.slane %v610, 7
        %v723 = vsel %vm698, %v721, %v722
        %v724 = vrot.slane %v722, 4
        %v725 = vrot.slane %v611, 7
        %v726 = vsel %vm698, %v724, %v725
        %v727 = vrot.slane %v612, 7
        %v728 = vrot.slane %v727, 4
        %v729 = vrot.slane %v613, 7
        %v730 = vsel %vm698, %v728, %v729
        %v731 = vrot.slane %v729, 4
        %v732 = vrot.slane %v614, 7
        %v733 = vsel %vm698, %v731, %v732
        %v734 = vrot.slane %v615, 7
        %v735 = vrot.slane %v734, 4
        %v736 = vrot.slane %v616, 7
        %v737 = vsel %vm698, %v735, %v736
        %v738 = vrot.slane %v736, 4
        %v739 = vrot.slane %v617, 7
        %v740 = vsel %vm698, %v738, %v739
        %v741 = vrot.slane %v618, 7
        %v742 = vrot.slane %v741, 4
        %v743 = vrot.slane %v619, 7
        %v744 = vsel %vm698, %v742, %v743
        %v745 = vrot.slane %v743, 4
        %v746 = vrot.slane %v620, 7
        %v747 = vsel %vm698, %v745, %v746
        %v748 = vrot.slane %v621, 7
        %v749 = vrot.slane %v748, 4
        %v750 = vrot.slane %v622, 7
        %v751 = vsel %vm698, %v749, %v750
        %v752 = vrot.slane %v750, 4
        %v753 = vrot.slane %v623, 7
        %v754 = vsel %vm698, %v752, %v753
        %v755 = vrot.slane %v624, 7
        %v756 = vrot.slane %v755, 4
        %v757 = vrot.slane %v625, 7
        %v758 = vsel %vm698, %v756, %v757
        %v759 = vrot.slane %v757, 4
        %v760 = vrot.slane %v626, 7
        %v761 = vsel %vm698, %v759, %v760
        %v762 = vrot.slane %v627, 7
        %v763 = vrot.slane %v762, 4
        %v764 = vrot.slane %v628, 7
        %v765 = vsel %vm698, %v763, %v764
        %v766 = vrot.slane %v764, 4
        %v767 = vrot.slane %v629, 7
        %v768 = vsel %vm698, %v766, %v767
        %v769 = vrot.slane %v630, 7
        %v770 = vrot.slane %v769, 4
        %v771 = vrot.slane %v631, 7
        %v772 = vsel %vm698, %v770, %v771
        %v773 = vrot.slane %v771, 4
        %v774 = vrot.slane %v632, 7
        %v775 = vsel %vm698, %v773, %v774
        %v776 = vrot.slane %v633, 7
        %v777 = vrot.slane %v776, 4
        %v778 = vrot.slane %v634, 7
        %v779 = vsel %vm698, %v777, %v778
        %v780 = vrot.slane %v778, 4
        %v781 = vrot.slane %v635, 7
        %v782 = vsel %vm698, %v780, %v781
        %v783 = vrot.slane %v636, 7
        %v784 = vrot.slane %v783, 4
        %v785 = vrot.slane %v637, 7
        %v786 = vsel %vm698, %v784, %v785
        %v787 = vrot.slane %v785, 4
        %v788 = vrot.slane %v638, 7
        %v789 = vsel %vm698, %v787, %v788
        %v790 = vrot.slane %v639, 7
        %v791 = vrot.slane %v790, 4
        %v792 = vrot.slane %v640, 7
        %v793 = vsel %vm698, %v791, %v792
        %v794 = vrot.slane %v792, 4
        %v795 = vrot.slane %v641, 7
        %v796 = vsel %vm698, %v794, %v795
        %v797 = vrot.slane %v642, 7
        %v798 = vrot.slane %v797, 4
        %v799 = vrot.slane %v643, 7
        %v800 = vsel %vm698, %v798, %v799
        %v801 = vrot.slane %v799, 4
        %v802 = vrot.slane %v644, 7
        %v803 = vsel %vm698, %v801, %v802
        %v804 = vrot.slane %v645, 7
        %v805 = vrot.slane %v804, 4
        %v806 = vrot.slane %v646, 7
        %v807 = vsel %vm698, %v805, %v806
        %v808 = vrot.slane %v806, 4
        %v809 = vrot.slane %v647, 7
        %v810 = vsel %vm698, %v808, %v809
        %s811 = scalar_lea.vmem %s1, 2
        %v812 = vld [vmem:[%s811] sm:$0x3]
        %v813 = vunpack.c.l.b16 %v702
        %v814 = vunpack.c.l.b16 %v705
        %v815 = vunpack.c.l.b16 %v709
        %v816 = vunpack.c.l.b16 %v712
        %v817 = vunpack.c.l.b16 %v716
        %v818 = vunpack.c.l.b16 %v719
        %v819 = vunpack.c.l.b16 %v723
        %v820 = vunpack.c.l.b16 %v726
        %v821 = vunpack.c.l.b16 %v730
        %v822 = vunpack.c.l.b16 %v733
        %v823 = vunpack.c.l.b16 %v737
        %v824 = vunpack.c.l.b16 %v740
        %v825 = vunpack.c.l.b16 %v744
        %v826 = vunpack.c.l.b16 %v747
        %v827 = vunpack.c.l.b16 %v751
        %v828 = vunpack.c.l.b16 %v754
        %v829 = vunpack.c.l.b16 %v758
        %v830 = vunpack.c.l.b16 %v761
        %v831 = vunpack.c.l.b16 %v765
        %v832 = vunpack.c.l.b16 %v768
        %v833 = vunpack.c.l.b16 %v772
        %v834 = vunpack.c.l.b16 %v775
        %v835 = vunpack.c.l.b16 %v779
        %v836 = vunpack.c.l.b16 %v782
        %v837 = vunpack.c.l.b16 %v786
        %v838 = vunpack.c.l.b16 %v789
        %v839 = vunpack.c.l.b16 %v793
        %v840 = vunpack.c.l.b16 %v796
        %v841 = vunpack.c.l.b16 %v800
        %v842 = vunpack.c.l.b16 %v803
        %v843 = vunpack.c.l.b16 %v807
        %v844 = vunpack.c.l.b16 %v810
        %v845 = vpack.c.b16 %v814, %v813
        %v846 = vpack.c.b16 %v816, %v815
        %v847 = vpack.c.b16 %v818, %v817
        %v848 = vpack.c.b16 %v820, %v819
        %v849 = vpack.c.b16 %v822, %v821
        %v850 = vpack.c.b16 %v824, %v823
        %v851 = vpack.c.b16 %v826, %v825
        %v852 = vpack.c.b16 %v828, %v827
        %v853 = vpack.c.b16 %v830, %v829
        %v854 = vpack.c.b16 %v832, %v831
        %v855 = vpack.c.b16 %v834, %v833
        %v856 = vpack.c.b16 %v836, %v835
        %v857 = vpack.c.b16 %v838, %v837
        %v858 = vpack.c.b16 %v840, %v839
        %v859 = vpack.c.b16 %v842, %v841
        %v860 = vpack.c.b16 %v844, %v843
        %v862 = vsel %vm284, %v845, 0
        %v865 = vsel %vm284, %v846, 0
        %v868 = vsel %vm284, %v847, 0
        %v871 = vsel %vm284, %v848, 0
        %v874 = vsel %vm284, %v849, 0
        %v877 = vsel %vm284, %v850, 0
        %v880 = vsel %vm284, %v851, 0
        %v883 = vsel %vm284, %v852, 0
        %v886 = vsel %vm284, %v853, 0
        %v889 = vsel %vm284, %v854, 0
        %v892 = vsel %vm284, %v855, 0
        %v895 = vsel %vm284, %v856, 0
        %v898 = vsel %vm284, %v857, 0
        %v901 = vsel %vm284, %v858, 0
        %v904 = vsel %vm284, %v859, 0
        %v907 = vsel %vm284, %v860, 0
        %v910 = vsel %vm333, %v812, 0
        %912 = vmatprep.subr.bf16.mxu0 0
        %913 = vmatpush1.bf16.msra.mxu0 %v910
        %914 = vmatprep.subr.bf16.mxu0 0
        %915 = vmatpush1.bf16.msra.mxu0 0
        %916 = vmatprep.subr.bf16.mxu0 0
        %917 = vmatpush1.bf16.msra.mxu0 0
        %918 = vmatprep.subr.bf16.mxu0 0
        %919 = vmatpush1.bf16.msra.mxu0 0
        %920 = vmatprep.subr.bf16.mxu0 0
        %921 = vmatpush1.bf16.msra.mxu0 0
        %922 = vmatprep.subr.bf16.mxu0 0
        %923 = vmatpush1.bf16.msra.mxu0 0
        %924 = vmatprep.subr.bf16.mxu0 0
        %925 = vmatpush1.bf16.msra.mxu0 0
        %926 = vmatprep.subr.bf16.mxu0 0
        %927 = vmatpush1.bf16.msra.mxu0 0
        %928 = vmatprep.subr.bf16.mxu0 0
        %929 = vmatpush1.bf16.msra.mxu0 0
        %930 = vmatprep.subr.bf16.mxu0 0
        %931 = vmatpush1.bf16.msra.mxu0 0
        %932 = vmatprep.subr.bf16.mxu0 0
        %933 = vmatpush1.bf16.msra.mxu0 0
        %934 = vmatprep.subr.bf16.mxu0 0
        %935 = vmatpush1.bf16.msra.mxu0 0
        %936 = vmatprep.subr.bf16.mxu0 0
        %937 = vmatpush1.bf16.msra.mxu0 0
        %938 = vmatprep.subr.bf16.mxu0 0
        %939 = vmatpush1.bf16.msra.mxu0 0
        %940 = vmatprep.subr.bf16.mxu0 0
        %941 = vmatpush1.bf16.msra.mxu0 0
        %942 = vmatprep.subr.bf16.mxu0 0
        %943 = vmatpush1.bf16.msra.mxu0 0
        %944 = vmatprep.mubr.bf16.mxu0 0
        %945 = vmatmul.mubr.bf16.gmra.mrb[0].mxu0 %v862
        %v946 = vpop.f32.mrb[0].mxu0
        %v947 = vadd.f32 0.0, %v946
        %v948 = vpop.f32.mrb[0].mxu0
        %v949 = vpop.f32.mrb[0].mxu0
        %v950 = vadd.f32 0.0, %v949
        %v951 = vpop.f32.mrb[0].mxu0
        %952 = vmatprep.mubr.bf16.mxu0 0
        %953 = vmatmul.mubr.bf16.gmra.mrb[0].mxu0 %v865
        %v954 = vpop.f32.mrb[0].mxu0
        %v955 = vadd.f32 0.0, %v954
        %v956 = vpop.f32.mrb[0].mxu0
        %v957 = vpop.f32.mrb[0].mxu0
        %v958 = vadd.f32 0.0, %v957
        %v959 = vpop.f32.mrb[0].mxu0
        %960 = vmatprep.mubr.bf16.mxu0 0
        %961 = vmatmul.mubr.bf16.gmra.mrb[0].mxu0 %v868
        %v962 = vpop.f32.mrb[0].mxu0
        %v963 = vadd.f32 0.0, %v962
        %v964 = vpop.f32.mrb[0].mxu0
        %v965 = vpop.f32.mrb[0].mxu0
        %v966 = vadd.f32 0.0, %v965
        %v967 = vpop.f32.mrb[0].mxu0
        %968 = vmatprep.mubr.bf16.mxu0 0
        %969 = vmatmul.mubr.bf16.gmra.mrb[0].mxu0 %v871
        %v970 = vpop.f32.mrb[0].mxu0
        %v971 = vadd.f32 0.0, %v970
        %v972 = vpop.f32.mrb[0].mxu0
        %v973 = vpop.f32.mrb[0].mxu0
        %v974 = vadd.f32 0.0, %v973
        %v975 = vpop.f32.mrb[0].mxu0
        %976 = vmatprep.mubr.bf16.mxu0 0
        %977 = vmatmul.mubr.bf16.gmra.mrb[0].mxu0 %v874
        %v978 = vpop.f32.mrb[0].mxu0
        %v979 = vadd.f32 0.0, %v978
        %v980 = vpop.f32.mrb[0].mxu0
        %v981 = vpop.f32.mrb[0].mxu0
        %v982 = vadd.f32 0.0, %v981
        %v983 = vpop.f32.mrb[0].mxu0
        %984 = vmatprep.mubr.bf16.mxu0 0
        %985 = vmatmul.mubr.bf16.gmra.mrb[0].mxu0 %v877
        %v986 = vpop.f32.mrb[0].mxu0
        %v987 = vadd.f32 0.0, %v986
        %v988 = vpop.f32.mrb[0].mxu0
        %v989 = vpop.f32.mrb[0].mxu0
        %v990 = vadd.f32 0.0, %v989
        %v991 = vpop.f32.mrb[0].mxu0
        %992 = vmatprep.mubr.bf16.mxu0 0
        %993 = vmatmul.mubr.bf16.gmra.mrb[0].mxu0 %v880
        %v994 = vpop.f32.mrb[0].mxu0
        %v995 = vadd.f32 0.0, %v994
        %v996 = vpop.f32.mrb[0].mxu0
        %v997 = vpop.f32.mrb[0].mxu0
        %v998 = vadd.f32 0.0, %v997
        %v999 = vpop.f32.mrb[0].mxu0
        %1000 = vmatprep.mubr.bf16.mxu0 0
        %1001 = vmatmul.mubr.bf16.gmra.mrb[0].mxu0 %v883
        %v1002 = vpop.f32.mrb[0].mxu0
        %v1003 = vadd.f32 0.0, %v1002
        %v1004 = vpop.f32.mrb[0].mxu0
        %v1005 = vpop.f32.mrb[0].mxu0
        %v1006 = vadd.f32 0.0, %v1005
        %v1007 = vpop.f32.mrb[0].mxu0
        %1008 = vmatprep.mubr.bf16.mxu0 0
        %1009 = vmatmul.mubr.bf16.gmra.mrb[0].mxu0 %v886
        %v1010 = vpop.f32.mrb[0].mxu0
        %v1011 = vadd.f32 0.0, %v1010
        %v1012 = vpop.f32.mrb[0].mxu0
        %v1013 = vpop.f32.mrb[0].mxu0
        %v1014 = vadd.f32 0.0, %v1013
        %v1015 = vpop.f32.mrb[0].mxu0
        %1016 = vmatprep.mubr.bf16.mxu0 0
        %1017 = vmatmul.mubr.bf16.gmra.mrb[0].mxu0 %v889
        %v1018 = vpop.f32.mrb[0].mxu0
        %v1019 = vadd.f32 0.0, %v1018
        %v1020 = vpop.f32.mrb[0].mxu0
        %v1021 = vpop.f32.mrb[0].mxu0
        %v1022 = vadd.f32 0.0, %v1021
        %v1023 = vpop.f32.mrb[0].mxu0
        %1024 = vmatprep.mubr.bf16.mxu0 0
        %1025 = vmatmul.mubr.bf16.gmra.mrb[0].mxu0 %v892
        %v1026 = vpop.f32.mrb[0].mxu0
        %v1027 = vadd.f32 0.0, %v1026
        %v1028 = vpop.f32.mrb[0].mxu0
        %v1029 = vpop.f32.mrb[0].mxu0
        %v1030 = vadd.f32 0.0, %v1029
        %v1031 = vpop.f32.mrb[0].mxu0
        %1032 = vmatprep.mubr.bf16.mxu0 0
        %1033 = vmatmul.mubr.bf16.gmra.mrb[0].mxu0 %v895
        %v1034 = vpop.f32.mrb[0].mxu0
        %v1035 = vadd.f32 0.0, %v1034
        %v1036 = vpop.f32.mrb[0].mxu0
        %v1037 = vpop.f32.mrb[0].mxu0
        %v1038 = vadd.f32 0.0, %v1037
        %v1039 = vpop.f32.mrb[0].mxu0
        %1040 = vmatprep.mubr.bf16.mxu0 0
        %1041 = vmatmul.mubr.bf16.gmra.mrb[0].mxu0 %v898
        %v1042 = vpop.f32.mrb[0].mxu0
        %v1043 = vadd.f32 0.0, %v1042
        %v1044 = vpop.f32.mrb[0].mxu0
        %v1045 = vpop.f32.mrb[0].mxu0
        %v1046 = vadd.f32 0.0, %v1045
        %v1047 = vpop.f32.mrb[0].mxu0
        %1048 = vmatprep.mubr.bf16.mxu0 0
        %1049 = vmatmul.mubr.bf16.gmra.mrb[0].mxu0 %v901
        %v1050 = vpop.f32.mrb[0].mxu0
        %v1051 = vadd.f32 0.0, %v1050
        %v1052 = vpop.f32.mrb[0].mxu0
        %v1053 = vpop.f32.mrb[0].mxu0
        %v1054 = vadd.f32 0.0, %v1053
        %v1055 = vpop.f32.mrb[0].mxu0
        %1056 = vmatprep.mubr.bf16.mxu0 0
        %1057 = vmatmul.mubr.bf16.gmra.mrb[0].mxu0 %v904
        %v1058 = vpop.f32.mrb[0].mxu0
        %v1059 = vadd.f32 0.0, %v1058
        %v1060 = vpop.f32.mrb[0].mxu0
        %v1061 = vpop.f32.mrb[0].mxu0
        %v1062 = vadd.f32 0.0, %v1061
        %v1063 = vpop.f32.mrb[0].mxu0
        %1064 = vmatprep.mubr.bf16.mxu0 0
        %1065 = vmatmul.mubr.bf16.gmra.mrb[0].mxu0 %v907
        %v1066 = vpop.f32.mrb[0].mxu0
        %v1067 = vadd.f32 0.0, %v1066
        %v1068 = vpop.f32.mrb[0].mxu0
        %v1069 = vpop.f32.mrb[0].mxu0
        %v1070 = vadd.f32 0.0, %v1069
        %v1071 = vpop.f32.mrb[0].mxu0
        %1072 = vdwg.mxu0
        %v1073 = vadd.f32 %v568, %v947
        %v1074 = vadd.f32 %v569, %v950
        %v1075 = vadd.f32 %v570, %v955
        %v1076 = vadd.f32 %v571, %v958
        %v1077 = vadd.f32 %v572, %v963
        %v1078 = vadd.f32 %v573, %v966
        %v1079 = vadd.f32 %v574, %v971
        %v1080 = vadd.f32 %v575, %v974
        %v1081 = vadd.f32 %v576, %v979
        %v1082 = vadd.f32 %v577, %v982
        %v1083 = vadd.f32 %v578, %v987
        %v1084 = vadd.f32 %v579, %v990
        %v1085 = vadd.f32 %v580, %v995
        %v1086 = vadd.f32 %v581, %v998
        %v1087 = vadd.f32 %v582, %v1003
        %v1088 = vadd.f32 %v583, %v1006
        %v1089 = vadd.f32 %v584, %v1011
        %v1090 = vadd.f32 %v585, %v1014
        %v1091 = vadd.f32 %v586, %v1019
        %v1092 = vadd.f32 %v587, %v1022
        %v1093 = vadd.f32 %v588, %v1027
        %v1094 = vadd.f32 %v589, %v1030
        %v1095 = vadd.f32 %v590, %v1035
        %v1096 = vadd.f32 %v591, %v1038
        %v1097 = vadd.f32 %v592, %v1043
        %v1098 = vadd.f32 %v593, %v1046
        %v1099 = vadd.f32 %v594, %v1051
        %v1100 = vadd.f32 %v595, %v1054
        %v1101 = vadd.f32 %v596, %v1059
        %v1102 = vadd.f32 %v597, %v1062
        %v1103 = vadd.f32 %v598, %v1067
        %v1104 = vadd.f32 %v599, %v1070
        %1105 = vst [vmem:[%s163] sm:$0xff] %v1073
        %1106 = vst [vmem:[%s163 + $0x8] sm:$0xff] %v1074
        %1107 = vst [vmem:[%s163 + $0x10] sm:$0xff] %v1075
        %1108 = vst [vmem:[%s163 + $0x18] sm:$0xff] %v1076
        %1109 = vst [vmem:[%s163 + $0x20] sm:$0xff] %v1077
        %1110 = vst [vmem:[%s163 + $0x28] sm:$0xff] %v1078
        %1111 = vst [vmem:[%s163 + $0x30] sm:$0xff] %v1079
        %1112 = vst [vmem:[%s163 + $0x38] sm:$0xff] %v1080
        %1113 = vst [vmem:[%s163 + $0x40] sm:$0xff] %v1081
        %1114 = vst [vmem:[%s163 + $0x48] sm:$0xff] %v1082
        %1115 = vst [vmem:[%s163 + $0x50] sm:$0xff] %v1083
        %1116 = vst [vmem:[%s163 + $0x58] sm:$0xff] %v1084
        %1117 = vst [vmem:[%s163 + $0x60] sm:$0xff] %v1085
        %1118 = vst [vmem:[%s163 + $0x68] sm:$0xff] %v1086
        %1119 = vst [vmem:[%s163 + $0x70] sm:$0xff] %v1087
        %1120 = vst [vmem:[%s163 + $0x78] sm:$0xff] %v1088
        %1121 = vst [vmem:[%s163 + $0x80] sm:$0xff] %v1089
        %1122 = vst [vmem:[%s163 + $0x88] sm:$0xff] %v1090
        %1123 = vst [vmem:[%s163 + $0x90] sm:$0xff] %v1091
        %1124 = vst [vmem:[%s163 + $0x98] sm:$0xff] %v1092
        %1125 = vst [vmem:[%s163 + $0xa0] sm:$0xff] %v1093
        %1126 = vst [vmem:[%s163 + $0xa8] sm:$0xff] %v1094
        %1127 = vst [vmem:[%s163 + $0xb0] sm:$0xff] %v1095
        %1128 = vst [vmem:[%s163 + $0xb8] sm:$0xff] %v1096
        %1129 = vst [vmem:[%s163 + $0xc0] sm:$0xff] %v1097
        %1130 = vst [vmem:[%s163 + $0xc8] sm:$0xff] %v1098
        %1131 = vst [vmem:[%s163 + $0xd0] sm:$0xff] %v1099
        %1132 = vst [vmem:[%s163 + $0xd8] sm:$0xff] %v1100
        %1133 = vst [vmem:[%s163 + $0xe0] sm:$0xff] %v1101
        %1134 = vst [vmem:[%s163 + $0xe8] sm:$0xff] %v1102
        %1135 = vst [vmem:[%s163 + $0xf0] sm:$0xff] %v1103
        %1136 = vst [vmem:[%s163 + $0xf8] sm:$0xff] %v1104
        %v1137 = vld [vmem:[%s163] sm:$0xff]
        %v1138 = vld [vmem:[%s163 + $0x8] sm:$0xff]
        %v1139 = vld [vmem:[%s163 + $0x10] sm:$0xff]
        %v1140 = vld [vmem:[%s163 + $0x18] sm:$0xff]
        %v1141 = vld [vmem:[%s163 + $0x20] sm:$0xff]
        %v1142 = vld [vmem:[%s163 + $0x28] sm:$0xff]
        %v1143 = vld [vmem:[%s163 + $0x30] sm:$0xff]
        %v1144 = vld [vmem:[%s163 + $0x38] sm:$0xff]
        %v1145 = vld [vmem:[%s163 + $0x40] sm:$0xff]
        %v1146 = vld [vmem:[%s163 + $0x48] sm:$0xff]
        %v1147 = vld [vmem:[%s163 + $0x50] sm:$0xff]
        %v1148 = vld [vmem:[%s163 + $0x58] sm:$0xff]
        %v1149 = vld [vmem:[%s163 + $0x60] sm:$0xff]
        %v1150 = vld [vmem:[%s163 + $0x68] sm:$0xff]
        %v1151 = vld [vmem:[%s163 + $0x70] sm:$0xff]
        %v1152 = vld [vmem:[%s163 + $0x78] sm:$0xff]
        %v1153 = vld [vmem:[%s163 + $0x80] sm:$0xff]
        %v1154 = vld [vmem:[%s163 + $0x88] sm:$0xff]
        %v1155 = vld [vmem:[%s163 + $0x90] sm:$0xff]
        %v1156 = vld [vmem:[%s163 + $0x98] sm:$0xff]
        %v1157 = vld [vmem:[%s163 + $0xa0] sm:$0xff]
        %v1158 = vld [vmem:[%s163 + $0xa8] sm:$0xff]
        %v1159 = vld [vmem:[%s163 + $0xb0] sm:$0xff]
        %v1160 = vld [vmem:[%s163 + $0xb8] sm:$0xff]
        %v1161 = vld [vmem:[%s163 + $0xc0] sm:$0xff]
        %v1162 = vld [vmem:[%s163 + $0xc8] sm:$0xff]
        %v1163 = vld [vmem:[%s163 + $0xd0] sm:$0xff]
        %v1164 = vld [vmem:[%s163 + $0xd8] sm:$0xff]
        %v1165 = vld [vmem:[%s163 + $0xe0] sm:$0xff]
        %v1166 = vld [vmem:[%s163 + $0xe8] sm:$0xff]
        %v1167 = vld [vmem:[%s163 + $0xf0] sm:$0xff]
        %v1168 = vld [vmem:[%s163 + $0xf8] sm:$0xff]
        %v1169 = vld [vmem:[%s168 + $0x4] sm:$0xc]
        %v1170 = vld [vmem:[%s168 + $0x8] sm:$0xf]
        %v1171 = vld [vmem:[%s168 + $0xc] sm:$0x3]
        %v1172 = vld [vmem:[%s168 + $0x14] sm:$0xc]
        %v1173 = vld [vmem:[%s168 + $0x18] sm:$0xf]
        %v1174 = vld [vmem:[%s168 + $0x1c] sm:$0x3]
        %v1175 = vld [vmem:[%s168 + $0x24] sm:$0xc]
        %v1176 = vld [vmem:[%s168 + $0x28] sm:$0xf]
        %v1177 = vld [vmem:[%s168 + $0x2c] sm:$0x3]
        %v1178 = vld [vmem:[%s168 + $0x34] sm:$0xc]
        %v1179 = vld [vmem:[%s168 + $0x38] sm:$0xf]
        %v1180 = vld [vmem:[%s168 + $0x3c] sm:$0x3]
        %v1181 = vld [vmem:[%s168 + $0x44] sm:$0xc]
        %v1182 = vld [vmem:[%s168 + $0x48] sm:$0xf]
        %v1183 = vld [vmem:[%s168 + $0x4c] sm:$0x3]
        %v1184 = vld [vmem:[%s168 + $0x54] sm:$0xc]
        %v1185 = vld [vmem:[%s168 + $0x58] sm:$0xf]
        %v1186 = vld [vmem:[%s168 + $0x5c] sm:$0x3]
        %v1187 = vld [vmem:[%s168 + $0x64] sm:$0xc]
        %v1188 = vld [vmem:[%s168 + $0x68] sm:$0xf]
        %v1189 = vld [vmem:[%s168 + $0x6c] sm:$0x3]
        %v1190 = vld [vmem:[%s168 + $0x74] sm:$0xc]
        %v1191 = vld [vmem:[%s168 + $0x78] sm:$0xf]
        %v1192 = vld [vmem:[%s168 + $0x7c] sm:$0x3]
        %v1193 = vld [vmem:[%s168 + $0x84] sm:$0xc]
        %v1194 = vld [vmem:[%s168 + $0x88] sm:$0xf]
        %v1195 = vld [vmem:[%s168 + $0x8c] sm:$0x3]
        %v1196 = vld [vmem:[%s168 + $0x94] sm:$0xc]
        %v1197 = vld [vmem:[%s168 + $0x98] sm:$0xf]
        %v1198 = vld [vmem:[%s168 + $0x9c] sm:$0x3]
        %v1199 = vld [vmem:[%s168 + $0xa4] sm:$0xc]
        %v1200 = vld [vmem:[%s168 + $0xa8] sm:$0xf]
        %v1201 = vld [vmem:[%s168 + $0xac] sm:$0x3]
        %v1202 = vld [vmem:[%s168 + $0xb4] sm:$0xc]
        %v1203 = vld [vmem:[%s168 + $0xb8] sm:$0xf]
        %v1204 = vld [vmem:[%s168 + $0xbc] sm:$0x3]
        %v1205 = vld [vmem:[%s168 + $0xc4] sm:$0xc]
        %v1206 = vld [vmem:[%s168 + $0xc8] sm:$0xf]
        %v1207 = vld [vmem:[%s168 + $0xcc] sm:$0x3]
        %v1208 = vld [vmem:[%s168 + $0xd4] sm:$0xc]
        %v1209 = vld [vmem:[%s168 + $0xd8] sm:$0xf]
        %v1210 = vld [vmem:[%s168 + $0xdc] sm:$0x3]
        %v1211 = vld [vmem:[%s168 + $0xe4] sm:$0xc]
        %v1212 = vld [vmem:[%s168 + $0xe8] sm:$0xf]
        %v1213 = vld [vmem:[%s168 + $0xec] sm:$0x3]
        %v1214 = vld [vmem:[%s168 + $0xf4] sm:$0xc]
        %v1215 = vld [vmem:[%s168 + $0xf8] sm:$0xf]
        %v1216 = vld [vmem:[%s168 + $0xfc] sm:$0x3]
        %vm1265 = vcmask 1041408
        %vm1266 = vcmask 1045508
        %vm1267 = vmor %vm1265, %vm1266
        %v1268 = vrot.slane %v1169, 6
        %v1269 = vrot.slane %v1268, 4
        %v1270 = vrot.slane %v1170, 6
        %v1271 = vsel %vm1267, %v1269, %v1270
        %v1272 = vrot.slane %v1270, 4
        %v1273 = vrot.slane %v1171, 6
        %v1274 = vsel %vm1267, %v1272, %v1273
        %v1275 = vrot.slane %v1172, 6
        %v1276 = vrot.slane %v1275, 4
        %v1277 = vrot.slane %v1173, 6
        %v1278 = vsel %vm1267, %v1276, %v1277
        %v1279 = vrot.slane %v1277, 4
        %v1280 = vrot.slane %v1174, 6
        %v1281 = vsel %vm1267, %v1279, %v1280
        %v1282 = vrot.slane %v1175, 6
        %v1283 = vrot.slane %v1282, 4
        %v1284 = vrot.slane %v1176, 6
        %v1285 = vsel %vm1267, %v1283, %v1284
        %v1286 = vrot.slane %v1284, 4
        %v1287 = vrot.slane %v1177, 6
        %v1288 = vsel %vm1267, %v1286, %v1287
        %v1289 = vrot.slane %v1178, 6
        %v1290 = vrot.slane %v1289, 4
        %v1291 = vrot.slane %v1179, 6
        %v1292 = vsel %vm1267, %v1290, %v1291
        %v1293 = vrot.slane %v1291, 4
        %v1294 = vrot.slane %v1180, 6
        %v1295 = vsel %vm1267, %v1293, %v1294
        %v1296 = vrot.slane %v1181, 6
        %v1297 = vrot.slane %v1296, 4
        %v1298 = vrot.slane %v1182, 6
        %v1299 = vsel %vm1267, %v1297, %v1298
        %v1300 = vrot.slane %v1298, 4
        %v1301 = vrot.slane %v1183, 6
        %v1302 = vsel %vm1267, %v1300, %v1301
        %v1303 = vrot.slane %v1184, 6
        %v1304 = vrot.slane %v1303, 4
        %v1305 = vrot.slane %v1185, 6
        %v1306 = vsel %vm1267, %v1304, %v1305
        %v1307 = vrot.slane %v1305, 4
        %v1308 = vrot.slane %v1186, 6
        %v1309 = vsel %vm1267, %v1307, %v1308
        %v1310 = vrot.slane %v1187, 6
        %v1311 = vrot.slane %v1310, 4
        %v1312 = vrot.slane %v1188, 6
        %v1313 = vsel %vm1267, %v1311, %v1312
        %v1314 = vrot.slane %v1312, 4
        %v1315 = vrot.slane %v1189, 6
        %v1316 = vsel %vm1267, %v1314, %v1315
        %v1317 = vrot.slane %v1190, 6
        %v1318 = vrot.slane %v1317, 4
        %v1319 = vrot.slane %v1191, 6
        %v1320 = vsel %vm1267, %v1318, %v1319
        %v1321 = vrot.slane %v1319, 4
        %v1322 = vrot.slane %v1192, 6
        %v1323 = vsel %vm1267, %v1321, %v1322
        %v1324 = vrot.slane %v1193, 6
        %v1325 = vrot.slane %v1324, 4
        %v1326 = vrot.slane %v1194, 6
        %v1327 = vsel %vm1267, %v1325, %v1326
        %v1328 = vrot.slane %v1326, 4
        %v1329 = vrot.slane %v1195, 6
        %v1330 = vsel %vm1267, %v1328, %v1329
        %v1331 = vrot.slane %v1196, 6
        %v1332 = vrot.slane %v1331, 4
        %v1333 = vrot.slane %v1197, 6
        %v1334 = vsel %vm1267, %v1332, %v1333
        %v1335 = vrot.slane %v1333, 4
        %v1336 = vrot.slane %v1198, 6
        %v1337 = vsel %vm1267, %v1335, %v1336
        %v1338 = vrot.slane %v1199, 6
        %v1339 = vrot.slane %v1338, 4
        %v1340 = vrot.slane %v1200, 6
        %v1341 = vsel %vm1267, %v1339, %v1340
        %v1342 = vrot.slane %v1340, 4
        %v1343 = vrot.slane %v1201, 6
        %v1344 = vsel %vm1267, %v1342, %v1343
        %v1345 = vrot.slane %v1202, 6
        %v1346 = vrot.slane %v1345, 4
        %v1347 = vrot.slane %v1203, 6
        %v1348 = vsel %vm1267, %v1346, %v1347
        %v1349 = vrot.slane %v1347, 4
        %v1350 = vrot.slane %v1204, 6
        %v1351 = vsel %vm1267, %v1349, %v1350
        %v1352 = vrot.slane %v1205, 6
        %v1353 = vrot.slane %v1352, 4
        %v1354 = vrot.slane %v1206, 6
        %v1355 = vsel %vm1267, %v1353, %v1354
        %v1356 = vrot.slane %v1354, 4
        %v1357 = vrot.slane %v1207, 6
        %v1358 = vsel %vm1267, %v1356, %v1357
        %v1359 = vrot.slane %v1208, 6
        %v1360 = vrot.slane %v1359, 4
        %v1361 = vrot.slane %v1209, 6
        %v1362 = vsel %vm1267, %v1360, %v1361
        %v1363 = vrot.slane %v1361, 4
        %v1364 = vrot.slane %v1210, 6
        %v1365 = vsel %vm1267, %v1363, %v1364
        %v1366 = vrot.slane %v1211, 6
        %v1367 = vrot.slane %v1366, 4
        %v1368 = vrot.slane %v1212, 6
        %v1369 = vsel %vm1267, %v1367, %v1368
        %v1370 = vrot.slane %v1368, 4
        %v1371 = vrot.slane %v1213, 6
        %v1372 = vsel %vm1267, %v1370, %v1371
        %v1373 = vrot.slane %v1214, 6
        %v1374 = vrot.slane %v1373, 4
        %v1375 = vrot.slane %v1215, 6
        %v1376 = vsel %vm1267, %v1374, %v1375
        %v1377 = vrot.slane %v1375, 4
        %v1378 = vrot.slane %v1216, 6
        %v1379 = vsel %vm1267, %v1377, %v1378
        %s1380 = scalar_lea.vmem %s1, 4
        %v1381 = vld [vmem:[%s1380] sm:$0x3]
        %v1382 = vunpack.c.l.b16 %v1271
        %v1383 = vunpack.c.l.b16 %v1274
        %v1384 = vunpack.c.l.b16 %v1278
        %v1385 = vunpack.c.l.b16 %v1281
        %v1386 = vunpack.c.l.b16 %v1285
        %v1387 = vunpack.c.l.b16 %v1288
        %v1388 = vunpack.c.l.b16 %v1292
        %v1389 = vunpack.c.l.b16 %v1295
        %v1390 = vunpack.c.l.b16 %v1299
        %v1391 = vunpack.c.l.b16 %v1302
        %v1392 = vunpack.c.l.b16 %v1306
        %v1393 = vunpack.c.l.b16 %v1309
        %v1394 = vunpack.c.l.b16 %v1313
        %v1395 = vunpack.c.l.b16 %v1316
        %v1396 = vunpack.c.l.b16 %v1320
        %v1397 = vunpack.c.l.b16 %v1323
        %v1398 = vunpack.c.l.b16 %v1327
        %v1399 = vunpack.c.l.b16 %v1330
        %v1400 = vunpack.c.l.b16 %v1334
        %v1401 = vunpack.c.l.b16 %v1337
        %v1402 = vunpack.c.l.b16 %v1341
        %v1403 = vunpack.c.l.b16 %v1344
        %v1404 = vunpack.c.l.b16 %v1348
        %v1405 = vunpack.c.l.b16 %v1351
        %v1406 = vunpack.c.l.b16 %v1355
        %v1407 = vunpack.c.l.b16 %v1358
        %v1408 = vunpack.c.l.b16 %v1362
        %v1409 = vunpack.c.l.b16 %v1365
        %v1410 = vunpack.c.l.b16 %v1369
        %v1411 = vunpack.c.l.b16 %v1372
        %v1412 = vunpack.c.l.b16 %v1376
        %v1413 = vunpack.c.l.b16 %v1379
        %v1414 = vpack.c.b16 %v1383, %v1382
        %v1415 = vpack.c.b16 %v1385, %v1384
        %v1416 = vpack.c.b16 %v1387, %v1386
        %v1417 = vpack.c.b16 %v1389, %v1388
        %v1418 = vpack.c.b16 %v1391, %v1390
        %v1419 = vpack.c.b16 %v1393, %v1392
        %v1420 = vpack.c.b16 %v1395, %v1394
        %v1421 = vpack.c.b16 %v1397, %v1396
        %v1422 = vpack.c.b16 %v1399, %v1398
        %v1423 = vpack.c.b16 %v1401, %v1400
        %v1424 = vpack.c.b16 %v1403, %v1402
        %v1425 = vpack.c.b16 %v1405, %v1404
        %v1426 = vpack.c.b16 %v1407, %v1406
        %v1427 = vpack.c.b16 %v1409, %v1408
        %v1428 = vpack.c.b16 %v1411, %v1410
        %v1429 = vpack.c.b16 %v1413, %v1412
        %v1431 = vsel %vm284, %v1414, 0
        %v1434 = vsel %vm284, %v1415, 0
        %v1437 = vsel %vm284, %v1416, 0
        %v1440 = vsel %vm284, %v1417, 0
        %v1443 = vsel %vm284, %v1418, 0
        %v1446 = vsel %vm284, %v1419, 0
        %v1449 = vsel %vm284, %v1420, 0
        %v1452 = vsel %vm284, %v1421, 0
        %v1455 = vsel %vm284, %v1422, 0
        %v1458 = vsel %vm284, %v1423, 0
        %v1461 = vsel %vm284, %v1424, 0
        %v1464 = vsel %vm284, %v1425, 0
        %v1467 = vsel %vm284, %v1426, 0
        %v1470 = vsel %vm284, %v1427, 0
        %v1473 = vsel %vm284, %v1428, 0
        %v1476 = vsel %vm284, %v1429, 0
        %v1479 = vsel %vm333, %v1381, 0
        %1481 = vmatprep.subr.bf16.mxu0 0
        %1482 = vmatpush1.bf16.msra.mxu0 %v1479
        %1483 = vmatprep.subr.bf16.mxu0 0
        %1484 = vmatpush1.bf16.msra.mxu0 0
        %1485 = vmatprep.subr.bf16.mxu0 0
        %1486 = vmatpush1.bf16.msra.mxu0 0
        %1487 = vmatprep.subr.bf16.mxu0 0
        %1488 = vmatpush1.bf16.msra.mxu0 0
        %1489 = vmatprep.subr.bf16.mxu0 0
        %1490 = vmatpush1.bf16.msra.mxu0 0
        %1491 = vmatprep.subr.bf16.mxu0 0
        %1492 = vmatpush1.bf16.msra.mxu0 0
        %1493 = vmatprep.subr.bf16.mxu0 0
        %1494 = vmatpush1.bf16.msra.mxu0 0
        %1495 = vmatprep.subr.bf16.mxu0 0
        %1496 = vmatpush1.bf16.msra.mxu0 0
        %1497 = vmatprep.subr.bf16.mxu0 0
        %1498 = vmatpush1.bf16.msra.mxu0 0
        %1499 = vmatprep.subr.bf16.mxu0 0
        %1500 = vmatpush1.bf16.msra.mxu0 0
        %1501 = vmatprep.subr.bf16.mxu0 0
        %1502 = vmatpush1.bf16.msra.mxu0 0
        %1503 = vmatprep.subr.bf16.mxu0 0
        %1504 = vmatpush1.bf16.msra.mxu0 0
        %1505 = vmatprep.subr.bf16.mxu0 0
        %1506 = vmatpush1.bf16.msra.mxu0 0
        %1507 = vmatprep.subr.bf16.mxu0 0
        %1508 = vmatpush1.bf16.msra.mxu0 0
        %1509 = vmatprep.subr.bf16.mxu0 0
        %1510 = vmatpush1.bf16.msra.mxu0 0
        %1511 = vmatprep.subr.bf16.mxu0 0
        %1512 = vmatpush1.bf16.msra.mxu0 0
        %1513 = vmatprep.mubr.bf16.mxu0 0
        %1514 = vmatmul.mubr.bf16.gmra.mrb[0].mxu0 %v1431
        %v1515 = vpop.f32.mrb[0].mxu0
        %v1516 = vadd.f32 0.0, %v1515
        %v1517 = vpop.f32.mrb[0].mxu0
        %v1518 = vpop.f32.mrb[0].mxu0
        %v1519 = vadd.f32 0.0, %v1518
        %v1520 = vpop.f32.mrb[0].mxu0
        %1521 = vmatprep.mubr.bf16.mxu0 0
        %1522 = vmatmul.mubr.bf16.gmra.mrb[0].mxu0 %v1434
        %v1523 = vpop.f32.mrb[0].mxu0
        %v1524 = vadd.f32 0.0, %v1523
        %v1525 = vpop.f32.mrb[0].mxu0
        %v1526 = vpop.f32.mrb[0].mxu0
        %v1527 = vadd.f32 0.0, %v1526
        %v1528 = vpop.f32.mrb[0].mxu0
        %1529 = vmatprep.mubr.bf16.mxu0 0
        %1530 = vmatmul.mubr.bf16.gmra.mrb[0].mxu0 %v1437
        %v1531 = vpop.f32.mrb[0].mxu0
        %v1532 = vadd.f32 0.0, %v1531
        %v1533 = vpop.f32.mrb[0].mxu0
        %v1534 = vpop.f32.mrb[0].mxu0
        %v1535 = vadd.f32 0.0, %v1534
        %v1536 = vpop.f32.mrb[0].mxu0
        %1537 = vmatprep.mubr.bf16.mxu0 0
        %1538 = vmatmul.mubr.bf16.gmra.mrb[0].mxu0 %v1440
        %v1539 = vpop.f32.mrb[0].mxu0
        %v1540 = vadd.f32 0.0, %v1539
        %v1541 = vpop.f32.mrb[0].mxu0
        %v1542 = vpop.f32.mrb[0].mxu0
        %v1543 = vadd.f32 0.0, %v1542
        %v1544 = vpop.f32.mrb[0].mxu0
        %1545 = vmatprep.mubr.bf16.mxu0 0
        %1546 = vmatmul.mubr.bf16.gmra.mrb[0].mxu0 %v1443
        %v1547 = vpop.f32.mrb[0].mxu0
        %v1548 = vadd.f32 0.0, %v1547
        %v1549 = vpop.f32.mrb[0].mxu0
        %v1550 = vpop.f32.mrb[0].mxu0
        %v1551 = vadd.f32 0.0, %v1550
        %v1552 = vpop.f32.mrb[0].mxu0
        %1553 = vmatprep.mubr.bf16.mxu0 0
        %1554 = vmatmul.mubr.bf16.gmra.mrb[0].mxu0 %v1446
        %v1555 = vpop.f32.mrb[0].mxu0
        %v1556 = vadd.f32 0.0, %v1555
        %v1557 = vpop.f32.mrb[0].mxu0
        %v1558 = vpop.f32.mrb[0].mxu0
        %v1559 = vadd.f32 0.0, %v1558
        %v1560 = vpop.f32.mrb[0].mxu0
        %1561 = vmatprep.mubr.bf16.mxu0 0
        %1562 = vmatmul.mubr.bf16.gmra.mrb[0].mxu0 %v1449
        %v1563 = vpop.f32.mrb[0].mxu0
        %v1564 = vadd.f32 0.0, %v1563
        %v1565 = vpop.f32.mrb[0].mxu0
        %v1566 = vpop.f32.mrb[0].mxu0
        %v1567 = vadd.f32 0.0, %v1566
        %v1568 = vpop.f32.mrb[0].mxu0
        %1569 = vmatprep.mubr.bf16.mxu0 0
        %1570 = vmatmul.mubr.bf16.gmra.mrb[0].mxu0 %v1452
        %v1571 = vpop.f32.mrb[0].mxu0
        %v1572 = vadd.f32 0.0, %v1571
        %v1573 = vpop.f32.mrb[0].mxu0
        %v1574 = vpop.f32.mrb[0].mxu0
        %v1575 = vadd.f32 0.0, %v1574
        %v1576 = vpop.f32.mrb[0].mxu0
        %1577 = vmatprep.mubr.bf16.mxu0 0
        %1578 = vmatmul.mubr.bf16.gmra.mrb[0].mxu0 %v1455
        %v1579 = vpop.f32.mrb[0].mxu0
        %v1580 = vadd.f32 0.0, %v1579
        %v1581 = vpop.f32.mrb[0].mxu0
        %v1582 = vpop.f32.mrb[0].mxu0
        %v1583 = vadd.f32 0.0, %v1582
        %v1584 = vpop.f32.mrb[0].mxu0
        %1585 = vmatprep.mubr.bf16.mxu0 0
        %1586 = vmatmul.mubr.bf16.gmra.mrb[0].mxu0 %v1458
        %v1587 = vpop.f32.mrb[0].mxu0
        %v1588 = vadd.f32 0.0, %v1587
        %v1589 = vpop.f32.mrb[0].mxu0
        %v1590 = vpop.f32.mrb[0].mxu0
        %v1591 = vadd.f32 0.0, %v1590
        %v1592 = vpop.f32.mrb[0].mxu0
        %1593 = vmatprep.mubr.bf16.mxu0 0
        %1594 = vmatmul.mubr.bf16.gmra.mrb[0].mxu0 %v1461
        %v1595 = vpop.f32.mrb[0].mxu0
        %v1596 = vadd.f32 0.0, %v1595
        %v1597 = vpop.f32.mrb[0].mxu0
        %v1598 = vpop.f32.mrb[0].mxu0
        %v1599 = vadd.f32 0.0, %v1598
        %v1600 = vpop.f32.mrb[0].mxu0
        %1601 = vmatprep.mubr.bf16.mxu0 0
        %1602 = vmatmul.mubr.bf16.gmra.mrb[0].mxu0 %v1464
        %v1603 = vpop.f32.mrb[0].mxu0
        %v1604 = vadd.f32 0.0, %v1603
        %v1605 = vpop.f32.mrb[0].mxu0
        %v1606 = vpop.f32.mrb[0].mxu0
        %v1607 = vadd.f32 0.0, %v1606
        %v1608 = vpop.f32.mrb[0].mxu0
        %1609 = vmatprep.mubr.bf16.mxu0 0
        %1610 = vmatmul.mubr.bf16.gmra.mrb[0].mxu0 %v1467
        %v1611 = vpop.f32.mrb[0].mxu0
        %v1612 = vadd.f32 0.0, %v1611
        %v1613 = vpop.f32.mrb[0].mxu0
        %v1614 = vpop.f32.mrb[0].mxu0
        %v1615 = vadd.f32 0.0, %v1614
        %v1616 = vpop.f32.mrb[0].mxu0
        %1617 = vmatprep.mubr.bf16.mxu0 0
        %1618 = vmatmul.mubr.bf16.gmra.mrb[0].mxu0 %v1470
        %v1619 = vpop.f32.mrb[0].mxu0
        %v1620 = vadd.f32 0.0, %v1619
        %v1621 = vpop.f32.mrb[0].mxu0
        %v1622 = vpop.f32.mrb[0].mxu0
        %v1623 = vadd.f32 0.0, %v1622
        %v1624 = vpop.f32.mrb[0].mxu0
        %1625 = vmatprep.mubr.bf16.mxu0 0
        %1626 = vmatmul.mubr.bf16.gmra.mrb[0].mxu0 %v1473
        %v1627 = vpop.f32.mrb[0].mxu0
        %v1628 = vadd.f32 0.0, %v1627
        %v1629 = vpop.f32.mrb[0].mxu0
        %v1630 = vpop.f32.mrb[0].mxu0
        %v1631 = vadd.f32 0.0, %v1630
        %v1632 = vpop.f32.mrb[0].mxu0
        %1633 = vmatprep.mubr.bf16.mxu0 0
        %1634 = vmatmul.mubr.bf16.gmra.mrb[0].mxu0 %v1476
        %v1635 = vpop.f32.mrb[0].mxu0
        %v1636 = vadd.f32 0.0, %v1635
        %v1637 = vpop.f32.mrb[0].mxu0
        %v1638 = vpop.f32.mrb[0].mxu0
        %v1639 = vadd.f32 0.0, %v1638
        %v1640 = vpop.f32.mrb[0].mxu0
        %1641 = vdwg.mxu0
        %v1642 = vadd.f32 %v1137, %v1516
        %v1643 = vadd.f32 %v1138, %v1519
        %v1644 = vadd.f32 %v1139, %v1524
        %v1645 = vadd.f32 %v1140, %v1527
        %v1646 = vadd.f32 %v1141, %v1532
        %v1647 = vadd.f32 %v1142, %v1535
        %v1648 = vadd.f32 %v1143, %v1540
        %v1649 = vadd.f32 %v1144, %v1543
        %v1650 = vadd.f32 %v1145, %v1548
        %v1651 = vadd.f32 %v1146, %v1551
        %v1652 = vadd.f32 %v1147, %v1556
        %v1653 = vadd.f32 %v1148, %v1559
        %v1654 = vadd.f32 %v1149, %v1564
        %v1655 = vadd.f32 %v1150, %v1567
        %v1656 = vadd.f32 %v1151, %v1572
        %v1657 = vadd.f32 %v1152, %v1575
        %v1658 = vadd.f32 %v1153, %v1580
        %v1659 = vadd.f32 %v1154, %v1583
        %v1660 = vadd.f32 %v1155, %v1588
        %v1661 = vadd.f32 %v1156, %v1591
        %v1662 = vadd.f32 %v1157, %v1596
        %v1663 = vadd.f32 %v1158, %v1599
        %v1664 = vadd.f32 %v1159, %v1604
        %v1665 = vadd.f32 %v1160, %v1607
        %v1666 = vadd.f32 %v1161, %v1612
        %v1667 = vadd.f32 %v1162, %v1615
        %v1668 = vadd.f32 %v1163, %v1620
        %v1669 = vadd.f32 %v1164, %v1623
        %v1670 = vadd.f32 %v1165, %v1628
        %v1671 = vadd.f32 %v1166, %v1631
        %v1672 = vadd.f32 %v1167, %v1636
        %v1673 = vadd.f32 %v1168, %v1639
        %1674 = vst [vmem:[%s163] sm:$0xff] %v1642
        %1675 = vst [vmem:[%s163 + $0x8] sm:$0xff] %v1643
        %1676 = vst [vmem:[%s163 + $0x10] sm:$0xff] %v1644
        %1677 = vst [vmem:[%s163 + $0x18] sm:$0xff] %v1645
        %1678 = vst [vmem:[%s163 + $0x20] sm:$0xff] %v1646
        %1679 = vst [vmem:[%s163 + $0x28] sm:$0xff] %v1647
        %1680 = vst [vmem:[%s163 + $0x30] sm:$0xff] %v1648
        %1681 = vst [vmem:[%s163 + $0x38] sm:$0xff] %v1649
        %1682 = vst [vmem:[%s163 + $0x40] sm:$0xff] %v1650
        %1683 = vst [vmem:[%s163 + $0x48] sm:$0xff] %v1651
        %1684 = vst [vmem:[%s163 + $0x50] sm:$0xff] %v1652
        %1685 = vst [vmem:[%s163 + $0x58] sm:$0xff] %v1653
        %1686 = vst [vmem:[%s163 + $0x60] sm:$0xff] %v1654
        %1687 = vst [vmem:[%s163 + $0x68] sm:$0xff] %v1655
        %1688 = vst [vmem:[%s163 + $0x70] sm:$0xff] %v1656
        %1689 = vst [vmem:[%s163 + $0x78] sm:$0xff] %v1657
        %1690 = vst [vmem:[%s163 + $0x80] sm:$0xff] %v1658
        %1691 = vst [vmem:[%s163 + $0x88] sm:$0xff] %v1659
        %1692 = vst [vmem:[%s163 + $0x90] sm:$0xff] %v1660
        %1693 = vst [vmem:[%s163 + $0x98] sm:$0xff] %v1661
        %1694 = vst [vmem:[%s163 + $0xa0] sm:$0xff] %v1662
        %1695 = vst [vmem:[%s163 + $0xa8] sm:$0xff] %v1663
        %1696 = vst [vmem:[%s163 + $0xb0] sm:$0xff] %v1664
        %1697 = vst [vmem:[%s163 + $0xb8] sm:$0xff] %v1665
        %1698 = vst [vmem:[%s163 + $0xc0] sm:$0xff] %v1666
        %1699 = vst [vmem:[%s163 + $0xc8] sm:$0xff] %v1667
        %1700 = vst [vmem:[%s163 + $0xd0] sm:$0xff] %v1668
        %1701 = vst [vmem:[%s163 + $0xd8] sm:$0xff] %v1669
        %1702 = vst [vmem:[%s163 + $0xe0] sm:$0xff] %v1670
        %1703 = vst [vmem:[%s163 + $0xe8] sm:$0xff] %v1671
        %1704 = vst [vmem:[%s163 + $0xf0] sm:$0xff] %v1672
        %1705 = vst [vmem:[%s163 + $0xf8] sm:$0xff] %v1673
        %v1706 = vld [vmem:[%s163] sm:$0xff]
        %v1707 = vld [vmem:[%s163 + $0x8] sm:$0xff]
        %v1708 = vld [vmem:[%s163 + $0x10] sm:$0xff]
        %v1709 = vld [vmem:[%s163 + $0x18] sm:$0xff]
        %v1710 = vld [vmem:[%s163 + $0x20] sm:$0xff]
        %v1711 = vld [vmem:[%s163 + $0x28] sm:$0xff]
        %v1712 = vld [vmem:[%s163 + $0x30] sm:$0xff]
        %v1713 = vld [vmem:[%s163 + $0x38] sm:$0xff]
        %v1714 = vld [vmem:[%s163 + $0x40] sm:$0xff]
        %v1715 = vld [vmem:[%s163 + $0x48] sm:$0xff]
        %v1716 = vld [vmem:[%s163 + $0x50] sm:$0xff]
        %v1717 = vld [vmem:[%s163 + $0x58] sm:$0xff]
        %v1718 = vld [vmem:[%s163 + $0x60] sm:$0xff]
        %v1719 = vld [vmem:[%s163 + $0x68] sm:$0xff]
        %v1720 = vld [vmem:[%s163 + $0x70] sm:$0xff]
        %v1721 = vld [vmem:[%s163 + $0x78] sm:$0xff]
        %v1722 = vld [vmem:[%s163 + $0x80] sm:$0xff]
        %v1723 = vld [vmem:[%s163 + $0x88] sm:$0xff]
        %v1724 = vld [vmem:[%s163 + $0x90] sm:$0xff]
        %v1725 = vld [vmem:[%s163 + $0x98] sm:$0xff]
        %v1726 = vld [vmem:[%s163 + $0xa0] sm:$0xff]
        %v1727 = vld [vmem:[%s163 + $0xa8] sm:$0xff]
        %v1728 = vld [vmem:[%s163 + $0xb0] sm:$0xff]
        %v1729 = vld [vmem:[%s163 + $0xb8] sm:$0xff]
        %v1730 = vld [vmem:[%s163 + $0xc0] sm:$0xff]
        %v1731 = vld [vmem:[%s163 + $0xc8] sm:$0xff]
        %v1732 = vld [vmem:[%s163 + $0xd0] sm:$0xff]
        %v1733 = vld [vmem:[%s163 + $0xd8] sm:$0xff]
        %v1734 = vld [vmem:[%s163 + $0xe0] sm:$0xff]
        %v1735 = vld [vmem:[%s163 + $0xe8] sm:$0xff]
        %v1736 = vld [vmem:[%s163 + $0xf0] sm:$0xff]
        %v1737 = vld [vmem:[%s163 + $0xf8] sm:$0xff]
        %s1738 = scalar_lea.vmem %s168, 96
        %v1739 = vld [vmem:[%s1738] sm:$0xf]
        %v1740 = vld [vmem:[%s1738 + $0x4] sm:$0xf]
        %v1741 = vld [vmem:[%s1738 + $0x10] sm:$0xf]
        %v1742 = vld [vmem:[%s1738 + $0x14] sm:$0xf]
        %v1743 = vld [vmem:[%s1738 + $0x20] sm:$0xf]
        %v1744 = vld [vmem:[%s1738 + $0x24] sm:$0xf]
        %v1745 = vld [vmem:[%s1738 + $0x30] sm:$0xf]
        %v1746 = vld [vmem:[%s1738 + $0x34] sm:$0xf]
        %v1747 = vld [vmem:[%s1738 + $0x40] sm:$0xf]
        %v1748 = vld [vmem:[%s1738 + $0x44] sm:$0xf]
        %v1749 = vld [vmem:[%s1738 + $0x50] sm:$0xf]
        %v1750 = vld [vmem:[%s1738 + $0x54] sm:$0xf]
        %v1751 = vld [vmem:[%s1738 + $0x60] sm:$0xf]
        %v1752 = vld [vmem:[%s1738 + $0x64] sm:$0xf]
        %v1753 = vld [vmem:[%s1738 + $0x70] sm:$0xf]
        %v1754 = vld [vmem:[%s1738 + $0x74] sm:$0xf]
        %v1755 = vld [vmem:[%s1738 + $0x80] sm:$0xf]
        %v1756 = vld [vmem:[%s1738 + $0x84] sm:$0xf]
        %v1757 = vld [vmem:[%s1738 + $0x90] sm:$0xf]
        %v1758 = vld [vmem:[%s1738 + $0x94] sm:$0xf]
        %v1759 = vld [vmem:[%s1738 + $0xa0] sm:$0xf]
        %v1760 = vld [vmem:[%s1738 + $0xa4] sm:$0xf]
        %v1761 = vld [vmem:[%s1738 + $0xb0] sm:$0xf]
        %v1762 = vld [vmem:[%s1738 + $0xb4] sm:$0xf]
        %v1763 = vld [vmem:[%s1738 + $0xc0] sm:$0xf]
        %v1764 = vld [vmem:[%s1738 + $0xc4] sm:$0xf]
        %v1765 = vld [vmem:[%s1738 + $0xd0] sm:$0xf]
        %v1766 = vld [vmem:[%s1738 + $0xd4] sm:$0xf]
        %v1767 = vld [vmem:[%s1738 + $0xe0] sm:$0xf]
        %v1768 = vld [vmem:[%s1738 + $0xe4] sm:$0xf]
        %v1769 = vld [vmem:[%s1738 + $0xf0] sm:$0xf]
        %v1770 = vld [vmem:[%s1738 + $0xf4] sm:$0xf]
        %s1771 = scalar_lea.vmem %s1, 6
        %v1772 = vld [vmem:[%s1771] sm:$0x3]
        %v1805 = vunpack.c.l.b16 %v1739
        %v1806 = vunpack.c.l.b16 %v1740
        %v1807 = vunpack.c.l.b16 %v1741
        %v1808 = vunpack.c.l.b16 %v1742
        %v1809 = vunpack.c.l.b16 %v1743
        %v1810 = vunpack.c.l.b16 %v1744
        %v1811 = vunpack.c.l.b16 %v1745
        %v1812 = vunpack.c.l.b16 %v1746
        %v1813 = vunpack.c.l.b16 %v1747
        %v1814 = vunpack.c.l.b16 %v1748
        %v1815 = vunpack.c.l.b16 %v1749
        %v1816 = vunpack.c.l.b16 %v1750
        %v1817 = vunpack.c.l.b16 %v1751
        %v1818 = vunpack.c.l.b16 %v1752
        %v1819 = vunpack.c.l.b16 %v1753
        %v1820 = vunpack.c.l.b16 %v1754
        %v1821 = vunpack.c.l.b16 %v1755
        %v1822 = vunpack.c.l.b16 %v1756
        %v1823 = vunpack.c.l.b16 %v1757
        %v1824 = vunpack.c.l.b16 %v1758
        %v1825 = vunpack.c.l.b16 %v1759
        %v1826 = vunpack.c.l.b16 %v1760
        %v1827 = vunpack.c.l.b16 %v1761
        %v1828 = vunpack.c.l.b16 %v1762
        %v1829 = vunpack.c.l.b16 %v1763
        %v1830 = vunpack.c.l.b16 %v1764
        %v1831 = vunpack.c.l.b16 %v1765
        %v1832 = vunpack.c.l.b16 %v1766
        %v1833 = vunpack.c.l.b16 %v1767
        %v1834 = vunpack.c.l.b16 %v1768
        %v1835 = vunpack.c.l.b16 %v1769
        %v1836 = vunpack.c.l.b16 %v1770
        %v1837 = vpack.c.b16 %v1806, %v1805
        %v1838 = vpack.c.b16 %v1808, %v1807
        %v1839 = vpack.c.b16 %v1810, %v1809
        %v1840 = vpack.c.b16 %v1812, %v1811
        %v1841 = vpack.c.b16 %v1814, %v1813
        %v1842 = vpack.c.b16 %v1816, %v1815
        %v1843 = vpack.c.b16 %v1818, %v1817
        %v1844 = vpack.c.b16 %v1820, %v1819
        %v1845 = vpack.c.b16 %v1822, %v1821
        %v1846 = vpack.c.b16 %v1824, %v1823
        %v1847 = vpack.c.b16 %v1826, %v1825
        %v1848 = vpack.c.b16 %v1828, %v1827
        %v1849 = vpack.c.b16 %v1830, %v1829
        %v1850 = vpack.c.b16 %v1832, %v1831
        %v1851 = vpack.c.b16 %v1834, %v1833
        %v1852 = vpack.c.b16 %v1836, %v1835
        %v1854 = vsel %vm284, %v1837, 0
        %v1857 = vsel %vm284, %v1838, 0
        %v1860 = vsel %vm284, %v1839, 0
        %v1863 = vsel %vm284, %v1840, 0
        %v1866 = vsel %vm284, %v1841, 0
        %v1869 = vsel %vm284, %v1842, 0
        %v1872 = vsel %vm284, %v1843, 0
        %v1875 = vsel %vm284, %v1844, 0
        %v1878 = vsel %vm284, %v1845, 0
        %v1881 = vsel %vm284, %v1846, 0
        %v1884 = vsel %vm284, %v1847, 0
        %v1887 = vsel %vm284, %v1848, 0
        %v1890 = vsel %vm284, %v1849, 0
        %v1893 = vsel %vm284, %v1850, 0
        %v1896 = vsel %vm284, %v1851, 0
        %v1899 = vsel %vm284, %v1852, 0
        %v1902 = vsel %vm333, %v1772, 0
        %1904 = vmatprep.subr.bf16.mxu0 0
        %1905 = vmatpush1.bf16.msra.mxu0 %v1902
        %1906 = vmatprep.subr.bf16.mxu0 0
        %1907 = vmatpush1.bf16.msra.mxu0 0
        %1908 = vmatprep.subr.bf16.mxu0 0
        %1909 = vmatpush1.bf16.msra.mxu0 0
        %1910 = vmatprep.subr.bf16.mxu0 0
        %1911 = vmatpush1.bf16.msra.mxu0 0
        %1912 = vmatprep.subr.bf16.mxu0 0
        %1913 = vmatpush1.bf16.msra.mxu0 0
        %1914 = vmatprep.subr.bf16.mxu0 0
        %1915 = vmatpush1.bf16.msra.mxu0 0
        %1916 = vmatprep.subr.bf16.mxu0 0
        %1917 = vmatpush1.bf16.msra.mxu0 0
        %1918 = vmatprep.subr.bf16.mxu0 0
        %1919 = vmatpush1.bf16.msra.mxu0 0
        %1920 = vmatprep.subr.bf16.mxu0 0
        %1921 = vmatpush1.bf16.msra.mxu0 0
        %1922 = vmatprep.subr.bf16.mxu0 0
        %1923 = vmatpush1.bf16.msra.mxu0 0
        %1924 = vmatprep.subr.bf16.mxu0 0
        %1925 = vmatpush1.bf16.msra.mxu0 0
        %1926 = vmatprep.subr.bf16.mxu0 0
        %1927 = vmatpush1.bf16.msra.mxu0 0
        %1928 = vmatprep.subr.bf16.mxu0 0
        %1929 = vmatpush1.bf16.msra.mxu0 0
        %1930 = vmatprep.subr.bf16.mxu0 0
        %1931 = vmatpush1.bf16.msra.mxu0 0
        %1932 = vmatprep.subr.bf16.mxu0 0
        %1933 = vmatpush1.bf16.msra.mxu0 0
        %1934 = vmatprep.subr.bf16.mxu0 0
        %1935 = vmatpush1.bf16.msra.mxu0 0
        %1936 = vmatprep.mubr.bf16.mxu0 0
        %1937 = vmatmul.mubr.bf16.gmra.mrb[0].mxu0 %v1854
        %v1938 = vpop.f32.mrb[0].mxu0
        %v1939 = vadd.f32 0.0, %v1938
        %v1940 = vpop.f32.mrb[0].mxu0
        %v1941 = vpop.f32.mrb[0].mxu0
        %v1942 = vadd.f32 0.0, %v1941
        %v1943 = vpop.f32.mrb[0].mxu0
        %1944 = vmatprep.mubr.bf16.mxu0 0
        %1945 = vmatmul.mubr.bf16.gmra.mrb[0].mxu0 %v1857
        %v1946 = vpop.f32.mrb[0].mxu0
        %v1947 = vadd.f32 0.0, %v1946
        %v1948 = vpop.f32.mrb[0].mxu0
        %v1949 = vpop.f32.mrb[0].mxu0
        %v1950 = vadd.f32 0.0, %v1949
        %v1951 = vpop.f32.mrb[0].mxu0
        %1952 = vmatprep.mubr.bf16.mxu0 0
        %1953 = vmatmul.mubr.bf16.gmra.mrb[0].mxu0 %v1860
        %v1954 = vpop.f32.mrb[0].mxu0
        %v1955 = vadd.f32 0.0, %v1954
        %v1956 = vpop.f32.mrb[0].mxu0
        %v1957 = vpop.f32.mrb[0].mxu0
        %v1958 = vadd.f32 0.0, %v1957
        %v1959 = vpop.f32.mrb[0].mxu0
        %1960 = vmatprep.mubr.bf16.mxu0 0
        %1961 = vmatmul.mubr.bf16.gmra.mrb[0].mxu0 %v1863
        %v1962 = vpop.f32.mrb[0].mxu0
        %v1963 = vadd.f32 0.0, %v1962
        %v1964 = vpop.f32.mrb[0].mxu0
        %v1965 = vpop.f32.mrb[0].mxu0
        %v1966 = vadd.f32 0.0, %v1965
        %v1967 = vpop.f32.mrb[0].mxu0
        %1968 = vmatprep.mubr.bf16.mxu0 0
        %1969 = vmatmul.mubr.bf16.gmra.mrb[0].mxu0 %v1866
        %v1970 = vpop.f32.mrb[0].mxu0
        %v1971 = vadd.f32 0.0, %v1970
        %v1972 = vpop.f32.mrb[0].mxu0
        %v1973 = vpop.f32.mrb[0].mxu0
        %v1974 = vadd.f32 0.0, %v1973
        %v1975 = vpop.f32.mrb[0].mxu0
        %1976 = vmatprep.mubr.bf16.mxu0 0
        %1977 = vmatmul.mubr.bf16.gmra.mrb[0].mxu0 %v1869
        %v1978 = vpop.f32.mrb[0].mxu0
        %v1979 = vadd.f32 0.0, %v1978
        %v1980 = vpop.f32.mrb[0].mxu0
        %v1981 = vpop.f32.mrb[0].mxu0
        %v1982 = vadd.f32 0.0, %v1981
        %v1983 = vpop.f32.mrb[0].mxu0
        %1984 = vmatprep.mubr.bf16.mxu0 0
        %1985 = vmatmul.mubr.bf16.gmra.mrb[0].mxu0 %v1872
        %v1986 = vpop.f32.mrb[0].mxu0
        %v1987 = vadd.f32 0.0, %v1986
        %v1988 = vpop.f32.mrb[0].mxu0
        %v1989 = vpop.f32.mrb[0].mxu0
        %v1990 = vadd.f32 0.0, %v1989
        %v1991 = vpop.f32.mrb[0].mxu0
        %1992 = vmatprep.mubr.bf16.mxu0 0
        %1993 = vmatmul.mubr.bf16.gmra.mrb[0].mxu0 %v1875
        %v1994 = vpop.f32.mrb[0].mxu0
        %v1995 = vadd.f32 0.0, %v1994
        %v1996 = vpop.f32.mrb[0].mxu0
        %v1997 = vpop.f32.mrb[0].mxu0
        %v1998 = vadd.f32 0.0, %v1997
        %v1999 = vpop.f32.mrb[0].mxu0
        %2000 = vmatprep.mubr.bf16.mxu0 0
        %2001 = vmatmul.mubr.bf16.gmra.mrb[0].mxu0 %v1878
        %v2002 = vpop.f32.mrb[0].mxu0
        %v2003 = vadd.f32 0.0, %v2002
        %v2004 = vpop.f32.mrb[0].mxu0
        %v2005 = vpop.f32.mrb[0].mxu0
        %v2006 = vadd.f32 0.0, %v2005
        %v2007 = vpop.f32.mrb[0].mxu0
        %2008 = vmatprep.mubr.bf16.mxu0 0
        %2009 = vmatmul.mubr.bf16.gmra.mrb[0].mxu0 %v1881
        %v2010 = vpop.f32.mrb[0].mxu0
        %v2011 = vadd.f32 0.0, %v2010
        %v2012 = vpop.f32.mrb[0].mxu0
        %v2013 = vpop.f32.mrb[0].mxu0
        %v2014 = vadd.f32 0.0, %v2013
        %v2015 = vpop.f32.mrb[0].mxu0
        %2016 = vmatprep.mubr.bf16.mxu0 0
        %2017 = vmatmul.mubr.bf16.gmra.mrb[0].mxu0 %v1884
        %v2018 = vpop.f32.mrb[0].mxu0
        %v2019 = vadd.f32 0.0, %v2018
        %v2020 = vpop.f32.mrb[0].mxu0
        %v2021 = vpop.f32.mrb[0].mxu0
        %v2022 = vadd.f32 0.0, %v2021
        %v2023 = vpop.f32.mrb[0].mxu0
        %2024 = vmatprep.mubr.bf16.mxu0 0
        %2025 = vmatmul.mubr.bf16.gmra.mrb[0].mxu0 %v1887
        %v2026 = vpop.f32.mrb[0].mxu0
        %v2027 = vadd.f32 0.0, %v2026
        %v2028 = vpop.f32.mrb[0].mxu0
        %v2029 = vpop.f32.mrb[0].mxu0
        %v2030 = vadd.f32 0.0, %v2029
        %v2031 = vpop.f32.mrb[0].mxu0
        %2032 = vmatprep.mubr.bf16.mxu0 0
        %2033 = vmatmul.mubr.bf16.gmra.mrb[0].mxu0 %v1890
        %v2034 = vpop.f32.mrb[0].mxu0
        %v2035 = vadd.f32 0.0, %v2034
        %v2036 = vpop.f32.mrb[0].mxu0
        %v2037 = vpop.f32.mrb[0].mxu0
        %v2038 = vadd.f32 0.0, %v2037
        %v2039 = vpop.f32.mrb[0].mxu0
        %2040 = vmatprep.mubr.bf16.mxu0 0
        %2041 = vmatmul.mubr.bf16.gmra.mrb[0].mxu0 %v1893
        %v2042 = vpop.f32.mrb[0].mxu0
        %v2043 = vadd.f32 0.0, %v2042
        %v2044 = vpop.f32.mrb[0].mxu0
        %v2045 = vpop.f32.mrb[0].mxu0
        %v2046 = vadd.f32 0.0, %v2045
        %v2047 = vpop.f32.mrb[0].mxu0
        %2048 = vmatprep.mubr.bf16.mxu0 0
        %2049 = vmatmul.mubr.bf16.gmra.mrb[0].mxu0 %v1896
        %v2050 = vpop.f32.mrb[0].mxu0
        %v2051 = vadd.f32 0.0, %v2050
        %v2052 = vpop.f32.mrb[0].mxu0
        %v2053 = vpop.f32.mrb[0].mxu0
        %v2054 = vadd.f32 0.0, %v2053
        %v2055 = vpop.f32.mrb[0].mxu0
        %2056 = vmatprep.mubr.bf16.mxu0 0
        %2057 = vmatmul.mubr.bf16.gmra.mrb[0].mxu0 %v1899
        %v2058 = vpop.f32.mrb[0].mxu0
        %v2059 = vadd.f32 0.0, %v2058
        %v2060 = vpop.f32.mrb[0].mxu0
        %v2061 = vpop.f32.mrb[0].mxu0
        %v2062 = vadd.f32 0.0, %v2061
        %v2063 = vpop.f32.mrb[0].mxu0
        %2064 = vdwg.mxu0
        %v2065 = vadd.f32 %v1706, %v1939
        %v2066 = vadd.f32 %v1707, %v1942
        %v2067 = vadd.f32 %v1708, %v1947
        %v2068 = vadd.f32 %v1709, %v1950
        %v2069 = vadd.f32 %v1710, %v1955
        %v2070 = vadd.f32 %v1711, %v1958
        %v2071 = vadd.f32 %v1712, %v1963
        %v2072 = vadd.f32 %v1713, %v1966
        %v2073 = vadd.f32 %v1714, %v1971
        %v2074 = vadd.f32 %v1715, %v1974
        %v2075 = vadd.f32 %v1716, %v1979
        %v2076 = vadd.f32 %v1717, %v1982
        %v2077 = vadd.f32 %v1718, %v1987
        %v2078 = vadd.f32 %v1719, %v1990
        %v2079 = vadd.f32 %v1720, %v1995
        %v2080 = vadd.f32 %v1721, %v1998
        %v2081 = vadd.f32 %v1722, %v2003
        %v2082 = vadd.f32 %v1723, %v2006
        %v2083 = vadd.f32 %v1724, %v2011
        %v2084 = vadd.f32 %v1725, %v2014
        %v2085 = vadd.f32 %v1726, %v2019
        %v2086 = vadd.f32 %v1727, %v2022
        %v2087 = vadd.f32 %v1728, %v2027
        %v2088 = vadd.f32 %v1729, %v2030
        %v2089 = vadd.f32 %v1730, %v2035
        %v2090 = vadd.f32 %v1731, %v2038
        %v2091 = vadd.f32 %v1732, %v2043
        %v2092 = vadd.f32 %v1733, %v2046
        %v2093 = vadd.f32 %v1734, %v2051
        %v2094 = vadd.f32 %v1735, %v2054
        %v2095 = vadd.f32 %v1736, %v2059
        %v2096 = vadd.f32 %v1737, %v2062
        %2097 = vst [vmem:[%s163] sm:$0xff] %v2065
        %2098 = vst [vmem:[%s163 + $0x8] sm:$0xff] %v2066
        %2099 = vst [vmem:[%s163 + $0x10] sm:$0xff] %v2067
        %2100 = vst [vmem:[%s163 + $0x18] sm:$0xff] %v2068
        %2101 = vst [vmem:[%s163 + $0x20] sm:$0xff] %v2069
        %2102 = vst [vmem:[%s163 + $0x28] sm:$0xff] %v2070
        %2103 = vst [vmem:[%s163 + $0x30] sm:$0xff] %v2071
        %2104 = vst [vmem:[%s163 + $0x38] sm:$0xff] %v2072
        %2105 = vst [vmem:[%s163 + $0x40] sm:$0xff] %v2073
        %2106 = vst [vmem:[%s163 + $0x48] sm:$0xff] %v2074
        %2107 = vst [vmem:[%s163 + $0x50] sm:$0xff] %v2075
        %2108 = vst [vmem:[%s163 + $0x58] sm:$0xff] %v2076
        %2109 = vst [vmem:[%s163 + $0x60] sm:$0xff] %v2077
        %2110 = vst [vmem:[%s163 + $0x68] sm:$0xff] %v2078
        %2111 = vst [vmem:[%s163 + $0x70] sm:$0xff] %v2079
        %2112 = vst [vmem:[%s163 + $0x78] sm:$0xff] %v2080
        %2113 = vst [vmem:[%s163 + $0x80] sm:$0xff] %v2081
        %2114 = vst [vmem:[%s163 + $0x88] sm:$0xff] %v2082
        %2115 = vst [vmem:[%s163 + $0x90] sm:$0xff] %v2083
        %2116 = vst [vmem:[%s163 + $0x98] sm:$0xff] %v2084
        %2117 = vst [vmem:[%s163 + $0xa0] sm:$0xff] %v2085
        %2118 = vst [vmem:[%s163 + $0xa8] sm:$0xff] %v2086
        %2119 = vst [vmem:[%s163 + $0xb0] sm:$0xff] %v2087
        %2120 = vst [vmem:[%s163 + $0xb8] sm:$0xff] %v2088
        %2121 = vst [vmem:[%s163 + $0xc0] sm:$0xff] %v2089
        %2122 = vst [vmem:[%s163 + $0xc8] sm:$0xff] %v2090
        %2123 = vst [vmem:[%s163 + $0xd0] sm:$0xff] %v2091
        %2124 = vst [vmem:[%s163 + $0xd8] sm:$0xff] %v2092
        %2125 = vst [vmem:[%s163 + $0xe0] sm:$0xff] %v2093
        %2126 = vst [vmem:[%s163 + $0xe8] sm:$0xff] %v2094
        %2127 = vst [vmem:[%s163 + $0xf0] sm:$0xff] %v2095
        %2128 = vst [vmem:[%s163 + $0xf8] sm:$0xff] %v2096
        %v2129 = vld [vmem:[%s163] sm:$0xff]
        %v2130 = vld [vmem:[%s163 + $0x8] sm:$0xff]
        %v2131 = vld [vmem:[%s163 + $0x10] sm:$0xff]
        %v2132 = vld [vmem:[%s163 + $0x18] sm:$0xff]
        %v2133 = vld [vmem:[%s163 + $0x20] sm:$0xff]
        %v2134 = vld [vmem:[%s163 + $0x28] sm:$0xff]
        %v2135 = vld [vmem:[%s163 + $0x30] sm:$0xff]
        %v2136 = vld [vmem:[%s163 + $0x38] sm:$0xff]
        %v2137 = vld [vmem:[%s163 + $0x40] sm:$0xff]
        %v2138 = vld [vmem:[%s163 + $0x48] sm:$0xff]
        %v2139 = vld [vmem:[%s163 + $0x50] sm:$0xff]
        %v2140 = vld [vmem:[%s163 + $0x58] sm:$0xff]
        %v2141 = vld [vmem:[%s163 + $0x60] sm:$0xff]
        %v2142 = vld [vmem:[%s163 + $0x68] sm:$0xff]
        %v2143 = vld [vmem:[%s163 + $0x70] sm:$0xff]
        %v2144 = vld [vmem:[%s163 + $0x78] sm:$0xff]
        %v2145 = vld [vmem:[%s163 + $0x80] sm:$0xff]
        %v2146 = vld [vmem:[%s163 + $0x88] sm:$0xff]
        %v2147 = vld [vmem:[%s163 + $0x90] sm:$0xff]
        %v2148 = vld [vmem:[%s163 + $0x98] sm:$0xff]
        %v2149 = vld [vmem:[%s163 + $0xa0] sm:$0xff]
        %v2150 = vld [vmem:[%s163 + $0xa8] sm:$0xff]
        %v2151 = vld [vmem:[%s163 + $0xb0] sm:$0xff]
        %v2152 = vld [vmem:[%s163 + $0xb8] sm:$0xff]
        %v2153 = vld [vmem:[%s163 + $0xc0] sm:$0xff]
        %v2154 = vld [vmem:[%s163 + $0xc8] sm:$0xff]
        %v2155 = vld [vmem:[%s163 + $0xd0] sm:$0xff]
        %v2156 = vld [vmem:[%s163 + $0xd8] sm:$0xff]
        %v2157 = vld [vmem:[%s163 + $0xe0] sm:$0xff]
        %v2158 = vld [vmem:[%s163 + $0xe8] sm:$0xff]
        %v2159 = vld [vmem:[%s163 + $0xf0] sm:$0xff]
        %v2160 = vld [vmem:[%s163 + $0xf8] sm:$0xff]
        %v2161 = vld [vmem:[%s1738] sm:$0x8]
        %v2162 = vld [vmem:[%s1738 + $0x4] sm:$0xf]
        %v2163 = vld [vmem:[%s1738 + $0x8] sm:$0x7]
        %v2164 = vld [vmem:[%s1738 + $0x10] sm:$0x8]
        %v2165 = vld [vmem:[%s1738 + $0x14] sm:$0xf]
        %v2166 = vld [vmem:[%s1738 + $0x18] sm:$0x7]
        %v2167 = vld [vmem:[%s1738 + $0x20] sm:$0x8]
        %v2168 = vld [vmem:[%s1738 + $0x24] sm:$0xf]
        %v2169 = vld [vmem:[%s1738 + $0x28] sm:$0x7]
        %v2170 = vld [vmem:[%s1738 + $0x30] sm:$0x8]
        %v2171 = vld [vmem:[%s1738 + $0x34] sm:$0xf]
        %v2172 = vld [vmem:[%s1738 + $0x38] sm:$0x7]
        %v2173 = vld [vmem:[%s1738 + $0x40] sm:$0x8]
        %v2174 = vld [vmem:[%s1738 + $0x44] sm:$0xf]
        %v2175 = vld [vmem:[%s1738 + $0x48] sm:$0x7]
        %v2176 = vld [vmem:[%s1738 + $0x50] sm:$0x8]
        %v2177 = vld [vmem:[%s1738 + $0x54] sm:$0xf]
        %v2178 = vld [vmem:[%s1738 + $0x58] sm:$0x7]
        %v2179 = vld [vmem:[%s1738 + $0x60] sm:$0x8]
        %v2180 = vld [vmem:[%s1738 + $0x64] sm:$0xf]
        %v2181 = vld [vmem:[%s1738 + $0x68] sm:$0x7]
        %v2182 = vld [vmem:[%s1738 + $0x70] sm:$0x8]
        %v2183 = vld [vmem:[%s1738 + $0x74] sm:$0xf]
        %v2184 = vld [vmem:[%s1738 + $0x78] sm:$0x7]
        %v2185 = vld [vmem:[%s1738 + $0x80] sm:$0x8]
        %v2186 = vld [vmem:[%s1738 + $0x84] sm:$0xf]
        %v2187 = vld [vmem:[%s1738 + $0x88] sm:$0x7]
        %v2188 = vld [vmem:[%s1738 + $0x90] sm:$0x8]
        %v2189 = vld [vmem:[%s1738 + $0x94] sm:$0xf]
        %v2190 = vld [vmem:[%s1738 + $0x98] sm:$0x7]
        %v2191 = vld [vmem:[%s1738 + $0xa0] sm:$0x8]
        %v2192 = vld [vmem:[%s1738 + $0xa4] sm:$0xf]
        %v2193 = vld [vmem:[%s1738 + $0xa8] sm:$0x7]
        %v2194 = vld [vmem:[%s1738 + $0xb0] sm:$0x8]
        %v2195 = vld [vmem:[%s1738 + $0xb4] sm:$0xf]
        %v2196 = vld [vmem:[%s1738 + $0xb8] sm:$0x7]
        %v2197 = vld [vmem:[%s1738 + $0xc0] sm:$0x8]
        %v2198 = vld [vmem:[%s1738 + $0xc4] sm:$0xf]
        %v2199 = vld [vmem:[%s1738 + $0xc8] sm:$0x7]
        %v2200 = vld [vmem:[%s1738 + $0xd0] sm:$0x8]
        %v2201 = vld [vmem:[%s1738 + $0xd4] sm:$0xf]
        %v2202 = vld [vmem:[%s1738 + $0xd8] sm:$0x7]
        %v2203 = vld [vmem:[%s1738 + $0xe0] sm:$0x8]
        %v2204 = vld [vmem:[%s1738 + $0xe4] sm:$0xf]
        %v2205 = vld [vmem:[%s1738 + $0xe8] sm:$0x7]
        %v2206 = vld [vmem:[%s1738 + $0xf0] sm:$0x8]
        %v2207 = vld [vmem:[%s1738 + $0xf4] sm:$0xf]
        %v2208 = vld [vmem:[%s1738 + $0xf8] sm:$0x7]
        %v2257 = vrot.slane %v2161, 7
        %v2258 = vrot.slane %v2257, 4
        %v2259 = vrot.slane %v2162, 7
        %v2260 = vsel %vm698, %v2258, %v2259
        %v2261 = vrot.slane %v2259, 4
        %v2262 = vrot.slane %v2163, 7
        %v2263 = vsel %vm698, %v2261, %v2262
        %v2264 = vrot.slane %v2164, 7
        %v2265 = vrot.slane %v2264, 4
        %v2266 = vrot.slane %v2165, 7
        %v2267 = vsel %vm698, %v2265, %v2266
        %v2268 = vrot.slane %v2266, 4
        %v2269 = vrot.slane %v2166, 7
        %v2270 = vsel %vm698, %v2268, %v2269
        %v2271 = vrot.slane %v2167, 7
        %v2272 = vrot.slane %v2271, 4
        %v2273 = vrot.slane %v2168, 7
        %v2274 = vsel %vm698, %v2272, %v2273
        %v2275 = vrot.slane %v2273, 4
        %v2276 = vrot.slane %v2169, 7
        %v2277 = vsel %vm698, %v2275, %v2276
        %v2278 = vrot.slane %v2170, 7
        %v2279 = vrot.slane %v2278, 4
        %v2280 = vrot.slane %v2171, 7
        %v2281 = vsel %vm698, %v2279, %v2280
        %v2282 = vrot.slane %v2280, 4
        %v2283 = vrot.slane %v2172, 7
        %v2284 = vsel %vm698, %v2282, %v2283
        %v2285 = vrot.slane %v2173, 7
        %v2286 = vrot.slane %v2285, 4
        %v2287 = vrot.slane %v2174, 7
        %v2288 = vsel %vm698, %v2286, %v2287
        %v2289 = vrot.slane %v2287, 4
        %v2290 = vrot.slane %v2175, 7
        %v2291 = vsel %vm698, %v2289, %v2290
        %v2292 = vrot.slane %v2176, 7
        %v2293 = vrot.slane %v2292, 4
        %v2294 = vrot.slane %v2177, 7
        %v2295 = vsel %vm698, %v2293, %v2294
        %v2296 = vrot.slane %v2294, 4
        %v2297 = vrot.slane %v2178, 7
        %v2298 = vsel %vm698, %v2296, %v2297
        %v2299 = vrot.slane %v2179, 7
        %v2300 = vrot.slane %v2299, 4
        %v2301 = vrot.slane %v2180, 7
        %v2302 = vsel %vm698, %v2300, %v2301
        %v2303 = vrot.slane %v2301, 4
        %v2304 = vrot.slane %v2181, 7
        %v2305 = vsel %vm698, %v2303, %v2304
        %v2306 = vrot.slane %v2182, 7
        %v2307 = vrot.slane %v2306, 4
        %v2308 = vrot.slane %v2183, 7
        %v2309 = vsel %vm698, %v2307, %v2308
        %v2310 = vrot.slane %v2308, 4
        %v2311 = vrot.slane %v2184, 7
        %v2312 = vsel %vm698, %v2310, %v2311
        %v2313 = vrot.slane %v2185, 7
        %v2314 = vrot.slane %v2313, 4
        %v2315 = vrot.slane %v2186, 7
        %v2316 = vsel %vm698, %v2314, %v2315
        %v2317 = vrot.slane %v2315, 4
        %v2318 = vrot.slane %v2187, 7
        %v2319 = vsel %vm698, %v2317, %v2318
        %v2320 = vrot.slane %v2188, 7
        %v2321 = vrot.slane %v2320, 4
        %v2322 = vrot.slane %v2189, 7
        %v2323 = vsel %vm698, %v2321, %v2322
        %v2324 = vrot.slane %v2322, 4
        %v2325 = vrot.slane %v2190, 7
        %v2326 = vsel %vm698, %v2324, %v2325
        %v2327 = vrot.slane %v2191, 7
        %v2328 = vrot.slane %v2327, 4
        %v2329 = vrot.slane %v2192, 7
        %v2330 = vsel %vm698, %v2328, %v2329
        %v2331 = vrot.slane %v2329, 4
        %v2332 = vrot.slane %v2193, 7
        %v2333 = vsel %vm698, %v2331, %v2332
        %v2334 = vrot.slane %v2194, 7
        %v2335 = vrot.slane %v2334, 4
        %v2336 = vrot.slane %v2195, 7
        %v2337 = vsel %vm698, %v2335, %v2336
        %v2338 = vrot.slane %v2336, 4
        %v2339 = vrot.slane %v2196, 7
        %v2340 = vsel %vm698, %v2338, %v2339
        %v2341 = vrot.slane %v2197, 7
        %v2342 = vrot.slane %v2341, 4
        %v2343 = vrot.slane %v2198, 7
        %v2344 = vsel %vm698, %v2342, %v2343
        %v2345 = vrot.slane %v2343, 4
        %v2346 = vrot.slane %v2199, 7
        %v2347 = vsel %vm698, %v2345, %v2346
        %v2348 = vrot.slane %v2200, 7
        %v2349 = vrot.slane %v2348, 4
        %v2350 = vrot.slane %v2201, 7
        %v2351 = vsel %vm698, %v2349, %v2350
        %v2352 = vrot.slane %v2350, 4
        %v2353 = vrot.slane %v2202, 7
        %v2354 = vsel %vm698, %v2352, %v2353
        %v2355 = vrot.slane %v2203, 7
        %v2356 = vrot.slane %v2355, 4
        %v2357 = vrot.slane %v2204, 7
        %v2358 = vsel %vm698, %v2356, %v2357
        %v2359 = vrot.slane %v2357, 4
        %v2360 = vrot.slane %v2205, 7
        %v2361 = vsel %vm698, %v2359, %v2360
        %v2362 = vrot.slane %v2206, 7
        %v2363 = vrot.slane %v2362, 4
        %v2364 = vrot.slane %v2207, 7
        %v2365 = vsel %vm698, %v2363, %v2364
        %v2366 = vrot.slane %v2364, 4
        %v2367 = vrot.slane %v2208, 7
        %v2368 = vsel %vm698, %v2366, %v2367
        %s2369 = scalar_lea.vmem %s1, 8
        %v2370 = vld [vmem:[%s2369] sm:$0x3]
        %v2371 = vunpack.c.l.b16 %v2260
        %v2372 = vunpack.c.l.b16 %v2263
        %v2373 = vunpack.c.l.b16 %v2267
        %v2374 = vunpack.c.l.b16 %v2270
        %v2375 = vunpack.c.l.b16 %v2274
        %v2376 = vunpack.c.l.b16 %v2277
        %v2377 = vunpack.c.l.b16 %v2281
        %v2378 = vunpack.c.l.b16 %v2284
        %v2379 = vunpack.c.l.b16 %v2288
        %v2380 = vunpack.c.l.b16 %v2291
        %v2381 = vunpack.c.l.b16 %v2295
        %v2382 = vunpack.c.l.b16 %v2298
        %v2383 = vunpack.c.l.b16 %v2302
        %v2384 = vunpack.c.l.b16 %v2305
        %v2385 = vunpack.c.l.b16 %v2309
        %v2386 = vunpack.c.l.b16 %v2312
        %v2387 = vunpack.c.l.b16 %v2316
        %v2388 = vunpack.c.l.b16 %v2319
        %v2389 = vunpack.c.l.b16 %v2323
        %v2390 = vunpack.c.l.b16 %v2326
        %v2391 = vunpack.c.l.b16 %v2330
        %v2392 = vunpack.c.l.b16 %v2333
        %v2393 = vunpack.c.l.b16 %v2337
        %v2394 = vunpack.c.l.b16 %v2340
        %v2395 = vunpack.c.l.b16 %v2344
        %v2396 = vunpack.c.l.b16 %v2347
        %v2397 = vunpack.c.l.b16 %v2351
        %v2398 = vunpack.c.l.b16 %v2354
        %v2399 = vunpack.c.l.b16 %v2358
        %v2400 = vunpack.c.l.b16 %v2361
        %v2401 = vunpack.c.l.b16 %v2365
        %v2402 = vunpack.c.l.b16 %v2368
        %v2403 = vpack.c.b16 %v2372, %v2371
        %v2404 = vpack.c.b16 %v2374, %v2373
        %v2405 = vpack.c.b16 %v2376, %v2375
        %v2406 = vpack.c.b16 %v2378, %v2377
        %v2407 = vpack.c.b16 %v2380, %v2379
        %v2408 = vpack.c.b16 %v2382, %v2381
        %v2409 = vpack.c.b16 %v2384, %v2383
        %v2410 = vpack.c.b16 %v2386, %v2385
        %v2411 = vpack.c.b16 %v2388, %v2387
        %v2412 = vpack.c.b16 %v2390, %v2389
        %v2413 = vpack.c.b16 %v2392, %v2391
        %v2414 = vpack.c.b16 %v2394, %v2393
        %v2415 = vpack.c.b16 %v2396, %v2395
        %v2416 = vpack.c.b16 %v2398, %v2397
        %v2417 = vpack.c.b16 %v2400, %v2399
        %v2418 = vpack.c.b16 %v2402, %v2401
        %v2420 = vsel %vm284, %v2403, 0
        %v2423 = vsel %vm284, %v2404, 0
        %v2426 = vsel %vm284, %v2405, 0
        %v2429 = vsel %vm284, %v2406, 0
        %v2432 = vsel %vm284, %v2407, 0
        %v2435 = vsel %vm284, %v2408, 0
        %v2438 = vsel %vm284, %v2409, 0
        %v2441 = vsel %vm284, %v2410, 0
        %v2444 = vsel %vm284, %v2411, 0
        %v2447 = vsel %vm284, %v2412, 0
        %v2450 = vsel %vm284, %v2413, 0
        %v2453 = vsel %vm284, %v2414, 0
        %v2456 = vsel %vm284, %v2415, 0
        %v2459 = vsel %vm284, %v2416, 0
        %v2462 = vsel %vm284, %v2417, 0
        %v2465 = vsel %vm284, %v2418, 0
        %v2468 = vsel %vm333, %v2370, 0
        %2470 = vmatprep.subr.bf16.mxu0 0
        %2471 = vmatpush1.bf16.msra.mxu0 %v2468
        %2472 = vmatprep.subr.bf16.mxu0 0
        %2473 = vmatpush1.bf16.msra.mxu0 0
        %2474 = vmatprep.subr.bf16.mxu0 0
        %2475 = vmatpush1.bf16.msra.mxu0 0
        %2476 = vmatprep.subr.bf16.mxu0 0
        %2477 = vmatpush1.bf16.msra.mxu0 0
        %2478 = vmatprep.subr.bf16.mxu0 0
        %2479 = vmatpush1.bf16.msra.mxu0 0
        %2480 = vmatprep.subr.bf16.mxu0 0
        %2481 = vmatpush1.bf16.msra.mxu0 0
        %2482 = vmatprep.subr.bf16.mxu0 0
        %2483 = vmatpush1.bf16.msra.mxu0 0
        %2484 = vmatprep.subr.bf16.mxu0 0
        %2485 = vmatpush1.bf16.msra.mxu0 0
        %2486 = vmatprep.subr.bf16.mxu0 0
        %2487 = vmatpush1.bf16.msra.mxu0 0
        %2488 = vmatprep.subr.bf16.mxu0 0
        %2489 = vmatpush1.bf16.msra.mxu0 0
        %2490 = vmatprep.subr.bf16.mxu0 0
        %2491 = vmatpush1.bf16.msra.mxu0 0
        %2492 = vmatprep.subr.bf16.mxu0 0
        %2493 = vmatpush1.bf16.msra.mxu0 0
        %2494 = vmatprep.subr.bf16.mxu0 0
        %2495 = vmatpush1.bf16.msra.mxu0 0
        %2496 = vmatprep.subr.bf16.mxu0 0
        %2497 = vmatpush1.bf16.msra.mxu0 0
        %2498 = vmatprep.subr.bf16.mxu0 0
        %2499 = vmatpush1.bf16.msra.mxu0 0
        %2500 = vmatprep.subr.bf16.mxu0 0
        %2501 = vmatpush1.bf16.msra.mxu0 0
        %2502 = vmatprep.mubr.bf16.mxu0 0
        %2503 = vmatmul.mubr.bf16.gmra.mrb[0].mxu0 %v2420
        %v2504 = vpop.f32.mrb[0].mxu0
        %v2505 = vadd.f32 0.0, %v2504
        %v2506 = vpop.f32.mrb[0].mxu0
        %v2507 = vpop.f32.mrb[0].mxu0
        %v2508 = vadd.f32 0.0, %v2507
        %v2509 = vpop.f32.mrb[0].mxu0
        %2510 = vmatprep.mubr.bf16.mxu0 0
        %2511 = vmatmul.mubr.bf16.gmra.mrb[0].mxu0 %v2423
        %v2512 = vpop.f32.mrb[0].mxu0
        %v2513 = vadd.f32 0.0, %v2512
        %v2514 = vpop.f32.mrb[0].mxu0
        %v2515 = vpop.f32.mrb[0].mxu0
        %v2516 = vadd.f32 0.0, %v2515
        %v2517 = vpop.f32.mrb[0].mxu0
        %2518 = vmatprep.mubr.bf16.mxu0 0
        %2519 = vmatmul.mubr.bf16.gmra.mrb[0].mxu0 %v2426
        %v2520 = vpop.f32.mrb[0].mxu0
        %v2521 = vadd.f32 0.0, %v2520
        %v2522 = vpop.f32.mrb[0].mxu0
        %v2523 = vpop.f32.mrb[0].mxu0
        %v2524 = vadd.f32 0.0, %v2523
        %v2525 = vpop.f32.mrb[0].mxu0
        %2526 = vmatprep.mubr.bf16.mxu0 0
        %2527 = vmatmul.mubr.bf16.gmra.mrb[0].mxu0 %v2429
        %v2528 = vpop.f32.mrb[0].mxu0
        %v2529 = vadd.f32 0.0, %v2528
        %v2530 = vpop.f32.mrb[0].mxu0
        %v2531 = vpop.f32.mrb[0].mxu0
        %v2532 = vadd.f32 0.0, %v2531
        %v2533 = vpop.f32.mrb[0].mxu0
        %2534 = vmatprep.mubr.bf16.mxu0 0
        %2535 = vmatmul.mubr.bf16.gmra.mrb[0].mxu0 %v2432
        %v2536 = vpop.f32.mrb[0].mxu0
        %v2537 = vadd.f32 0.0, %v2536
        %v2538 = vpop.f32.mrb[0].mxu0
        %v2539 = vpop.f32.mrb[0].mxu0
        %v2540 = vadd.f32 0.0, %v2539
        %v2541 = vpop.f32.mrb[0].mxu0
        %2542 = vmatprep.mubr.bf16.mxu0 0
        %2543 = vmatmul.mubr.bf16.gmra.mrb[0].mxu0 %v2435
        %v2544 = vpop.f32.mrb[0].mxu0
        %v2545 = vadd.f32 0.0, %v2544
        %v2546 = vpop.f32.mrb[0].mxu0
        %v2547 = vpop.f32.mrb[0].mxu0
        %v2548 = vadd.f32 0.0, %v2547
        %v2549 = vpop.f32.mrb[0].mxu0
        %2550 = vmatprep.mubr.bf16.mxu0 0
        %2551 = vmatmul.mubr.bf16.gmra.mrb[0].mxu0 %v2438
        %v2552 = vpop.f32.mrb[0].mxu0
        %v2553 = vadd.f32 0.0, %v2552
        %v2554 = vpop.f32.mrb[0].mxu0
        %v2555 = vpop.f32.mrb[0].mxu0
        %v2556 = vadd.f32 0.0, %v2555
        %v2557 = vpop.f32.mrb[0].mxu0
        %2558 = vmatprep.mubr.bf16.mxu0 0
        %2559 = vmatmul.mubr.bf16.gmra.mrb[0].mxu0 %v2441
        %v2560 = vpop.f32.mrb[0].mxu0
        %v2561 = vadd.f32 0.0, %v2560
        %v2562 = vpop.f32.mrb[0].mxu0
        %v2563 = vpop.f32.mrb[0].mxu0
        %v2564 = vadd.f32 0.0, %v2563
        %v2565 = vpop.f32.mrb[0].mxu0
        %2566 = vmatprep.mubr.bf16.mxu0 0
        %2567 = vmatmul.mubr.bf16.gmra.mrb[0].mxu0 %v2444
        %v2568 = vpop.f32.mrb[0].mxu0
        %v2569 = vadd.f32 0.0, %v2568
        %v2570 = vpop.f32.mrb[0].mxu0
        %v2571 = vpop.f32.mrb[0].mxu0
        %v2572 = vadd.f32 0.0, %v2571
        %v2573 = vpop.f32.mrb[0].mxu0
        %2574 = vmatprep.mubr.bf16.mxu0 0
        %2575 = vmatmul.mubr.bf16.gmra.mrb[0].mxu0 %v2447
        %v2576 = vpop.f32.mrb[0].mxu0
        %v2577 = vadd.f32 0.0, %v2576
        %v2578 = vpop.f32.mrb[0].mxu0
        %v2579 = vpop.f32.mrb[0].mxu0
        %v2580 = vadd.f32 0.0, %v2579
        %v2581 = vpop.f32.mrb[0].mxu0
        %2582 = vmatprep.mubr.bf16.mxu0 0
        %2583 = vmatmul.mubr.bf16.gmra.mrb[0].mxu0 %v2450
        %v2584 = vpop.f32.mrb[0].mxu0
        %v2585 = vadd.f32 0.0, %v2584
        %v2586 = vpop.f32.mrb[0].mxu0
        %v2587 = vpop.f32.mrb[0].mxu0
        %v2588 = vadd.f32 0.0, %v2587
        %v2589 = vpop.f32.mrb[0].mxu0
        %2590 = vmatprep.mubr.bf16.mxu0 0
        %2591 = vmatmul.mubr.bf16.gmra.mrb[0].mxu0 %v2453
        %v2592 = vpop.f32.mrb[0].mxu0
        %v2593 = vadd.f32 0.0, %v2592
        %v2594 = vpop.f32.mrb[0].mxu0
        %v2595 = vpop.f32.mrb[0].mxu0
        %v2596 = vadd.f32 0.0, %v2595
        %v2597 = vpop.f32.mrb[0].mxu0
        %2598 = vmatprep.mubr.bf16.mxu0 0
        %2599 = vmatmul.mubr.bf16.gmra.mrb[0].mxu0 %v2456
        %v2600 = vpop.f32.mrb[0].mxu0
        %v2601 = vadd.f32 0.0, %v2600
        %v2602 = vpop.f32.mrb[0].mxu0
        %v2603 = vpop.f32.mrb[0].mxu0
        %v2604 = vadd.f32 0.0, %v2603
        %v2605 = vpop.f32.mrb[0].mxu0
        %2606 = vmatprep.mubr.bf16.mxu0 0
        %2607 = vmatmul.mubr.bf16.gmra.mrb[0].mxu0 %v2459
        %v2608 = vpop.f32.mrb[0].mxu0
        %v2609 = vadd.f32 0.0, %v2608
        %v2610 = vpop.f32.mrb[0].mxu0
        %v2611 = vpop.f32.mrb[0].mxu0
        %v2612 = vadd.f32 0.0, %v2611
        %v2613 = vpop.f32.mrb[0].mxu0
        %2614 = vmatprep.mubr.bf16.mxu0 0
        %2615 = vmatmul.mubr.bf16.gmra.mrb[0].mxu0 %v2462
        %v2616 = vpop.f32.mrb[0].mxu0
        %v2617 = vadd.f32 0.0, %v2616
        %v2618 = vpop.f32.mrb[0].mxu0
        %v2619 = vpop.f32.mrb[0].mxu0
        %v2620 = vadd.f32 0.0, %v2619
        %v2621 = vpop.f32.mrb[0].mxu0
        %2622 = vmatprep.mubr.bf16.mxu0 0
        %2623 = vmatmul.mubr.bf16.gmra.mrb[0].mxu0 %v2465
        %v2624 = vpop.f32.mrb[0].mxu0
        %v2625 = vadd.f32 0.0, %v2624
        %v2626 = vpop.f32.mrb[0].mxu0
        %v2627 = vpop.f32.mrb[0].mxu0
        %v2628 = vadd.f32 0.0, %v2627
        %v2629 = vpop.f32.mrb[0].mxu0
        %2630 = vdwg.mxu0
        %v2631 = vadd.f32 %v2129, %v2505
        %v2632 = vadd.f32 %v2130, %v2508
        %v2633 = vadd.f32 %v2131, %v2513
        %v2634 = vadd.f32 %v2132, %v2516
        %v2635 = vadd.f32 %v2133, %v2521
        %v2636 = vadd.f32 %v2134, %v2524
        %v2637 = vadd.f32 %v2135, %v2529
        %v2638 = vadd.f32 %v2136, %v2532
        %v2639 = vadd.f32 %v2137, %v2537
        %v2640 = vadd.f32 %v2138, %v2540
        %v2641 = vadd.f32 %v2139, %v2545
        %v2642 = vadd.f32 %v2140, %v2548
        %v2643 = vadd.f32 %v2141, %v2553
        %v2644 = vadd.f32 %v2142, %v2556
        %v2645 = vadd.f32 %v2143, %v2561
        %v2646 = vadd.f32 %v2144, %v2564
        %v2647 = vadd.f32 %v2145, %v2569
        %v2648 = vadd.f32 %v2146, %v2572
        %v2649 = vadd.f32 %v2147, %v2577
        %v2650 = vadd.f32 %v2148, %v2580
        %v2651 = vadd.f32 %v2149, %v2585
        %v2652 = vadd.f32 %v2150, %v2588
        %v2653 = vadd.f32 %v2151, %v2593
        %v2654 = vadd.f32 %v2152, %v2596
        %v2655 = vadd.f32 %v2153, %v2601
        %v2656 = vadd.f32 %v2154, %v2604
        %v2657 = vadd.f32 %v2155, %v2609
        %v2658 = vadd.f32 %v2156, %v2612
        %v2659 = vadd.f32 %v2157, %v2617
        %v2660 = vadd.f32 %v2158, %v2620
        %v2661 = vadd.f32 %v2159, %v2625
        %v2662 = vadd.f32 %v2160, %v2628
        %2663 = vst [vmem:[%s163] sm:$0xff] %v2631
        %2664 = vst [vmem:[%s163 + $0x8] sm:$0xff] %v2632
        %2665 = vst [vmem:[%s163 + $0x10] sm:$0xff] %v2633
        %2666 = vst [vmem:[%s163 + $0x18] sm:$0xff] %v2634
        %2667 = vst [vmem:[%s163 + $0x20] sm:$0xff] %v2635
        %2668 = vst [vmem:[%s163 + $0x28] sm:$0xff] %v2636
        %2669 = vst [vmem:[%s163 + $0x30] sm:$0xff] %v2637
        %2670 = vst [vmem:[%s163 + $0x38] sm:$0xff] %v2638
        %2671 = vst [vmem:[%s163 + $0x40] sm:$0xff] %v2639
        %2672 = vst [vmem:[%s163 + $0x48] sm:$0xff] %v2640
        %2673 = vst [vmem:[%s163 + $0x50] sm:$0xff] %v2641
        %2674 = vst [vmem:[%s163 + $0x58] sm:$0xff] %v2642
        %2675 = vst [vmem:[%s163 + $0x60] sm:$0xff] %v2643
        %2676 = vst [vmem:[%s163 + $0x68] sm:$0xff] %v2644
        %2677 = vst [vmem:[%s163 + $0x70] sm:$0xff] %v2645
        %2678 = vst [vmem:[%s163 + $0x78] sm:$0xff] %v2646
        %2679 = vst [vmem:[%s163 + $0x80] sm:$0xff] %v2647
        %2680 = vst [vmem:[%s163 + $0x88] sm:$0xff] %v2648
        %2681 = vst [vmem:[%s163 + $0x90] sm:$0xff] %v2649
        %2682 = vst [vmem:[%s163 + $0x98] sm:$0xff] %v2650
        %2683 = vst [vmem:[%s163 + $0xa0] sm:$0xff] %v2651
        %2684 = vst [vmem:[%s163 + $0xa8] sm:$0xff] %v2652
        %2685 = vst [vmem:[%s163 + $0xb0] sm:$0xff] %v2653
        %2686 = vst [vmem:[%s163 + $0xb8] sm:$0xff] %v2654
        %2687 = vst [vmem:[%s163 + $0xc0] sm:$0xff] %v2655
        %2688 = vst [vmem:[%s163 + $0xc8] sm:$0xff] %v2656
        %2689 = vst [vmem:[%s163 + $0xd0] sm:$0xff] %v2657
        %2690 = vst [vmem:[%s163 + $0xd8] sm:$0xff] %v2658
        %2691 = vst [vmem:[%s163 + $0xe0] sm:$0xff] %v2659
        %2692 = vst [vmem:[%s163 + $0xe8] sm:$0xff] %v2660
        %2693 = vst [vmem:[%s163 + $0xf0] sm:$0xff] %v2661
        %2694 = vst [vmem:[%s163 + $0xf8] sm:$0xff] %v2662
        %v2695 = vld [vmem:[%s163] sm:$0xff]
        %v2696 = vld [vmem:[%s163 + $0x8] sm:$0xff]
        %v2697 = vld [vmem:[%s163 + $0x10] sm:$0xff]
        %v2698 = vld [vmem:[%s163 + $0x18] sm:$0xff]
        %v2699 = vld [vmem:[%s163 + $0x20] sm:$0xff]
        %v2700 = vld [vmem:[%s163 + $0x28] sm:$0xff]
        %v2701 = vld [vmem:[%s163 + $0x30] sm:$0xff]
        %v2702 = vld [vmem:[%s163 + $0x38] sm:$0xff]
        %v2703 = vld [vmem:[%s163 + $0x40] sm:$0xff]
        %v2704 = vld [vmem:[%s163 + $0x48] sm:$0xff]
        %v2705 = vld [vmem:[%s163 + $0x50] sm:$0xff]
        %v2706 = vld [vmem:[%s163 + $0x58] sm:$0xff]
        %v2707 = vld [vmem:[%s163 + $0x60] sm:$0xff]
        %v2708 = vld [vmem:[%s163 + $0x68] sm:$0xff]
        %v2709 = vld [vmem:[%s163 + $0x70] sm:$0xff]
        %v2710 = vld [vmem:[%s163 + $0x78] sm:$0xff]
        %v2711 = vld [vmem:[%s163 + $0x80] sm:$0xff]
        %v2712 = vld [vmem:[%s163 + $0x88] sm:$0xff]
        %v2713 = vld [vmem:[%s163 + $0x90] sm:$0xff]
        %v2714 = vld [vmem:[%s163 + $0x98] sm:$0xff]
        %v2715 = vld [vmem:[%s163 + $0xa0] sm:$0xff]
        %v2716 = vld [vmem:[%s163 + $0xa8] sm:$0xff]
        %v2717 = vld [vmem:[%s163 + $0xb0] sm:$0xff]
        %v2718 = vld [vmem:[%s163 + $0xb8] sm:$0xff]
        %v2719 = vld [vmem:[%s163 + $0xc0] sm:$0xff]
        %v2720 = vld [vmem:[%s163 + $0xc8] sm:$0xff]
        %v2721 = vld [vmem:[%s163 + $0xd0] sm:$0xff]
        %v2722 = vld [vmem:[%s163 + $0xd8] sm:$0xff]
        %v2723 = vld [vmem:[%s163 + $0xe0] sm:$0xff]
        %v2724 = vld [vmem:[%s163 + $0xe8] sm:$0xff]
        %v2725 = vld [vmem:[%s163 + $0xf0] sm:$0xff]
        %v2726 = vld [vmem:[%s163 + $0xf8] sm:$0xff]
        %v2727 = vld [vmem:[%s1738 + $0x4] sm:$0xc]
        %v2728 = vld [vmem:[%s1738 + $0x8] sm:$0xf]
        %v2729 = vld [vmem:[%s1738 + $0xc] sm:$0x3]
        %v2730 = vld [vmem:[%s1738 + $0x14] sm:$0xc]
        %v2731 = vld [vmem:[%s1738 + $0x18] sm:$0xf]
        %v2732 = vld [vmem:[%s1738 + $0x1c] sm:$0x3]
        %v2733 = vld [vmem:[%s1738 + $0x24] sm:$0xc]
        %v2734 = vld [vmem:[%s1738 + $0x28] sm:$0xf]
        %v2735 = vld [vmem:[%s1738 + $0x2c] sm:$0x3]
        %v2736 = vld [vmem:[%s1738 + $0x34] sm:$0xc]
        %v2737 = vld [vmem:[%s1738 + $0x38] sm:$0xf]
        %v2738 = vld [vmem:[%s1738 + $0x3c] sm:$0x3]
        %v2739 = vld [vmem:[%s1738 + $0x44] sm:$0xc]
        %v2740 = vld [vmem:[%s1738 + $0x48] sm:$0xf]
        %v2741 = vld [vmem:[%s1738 + $0x4c] sm:$0x3]
        %v2742 = vld [vmem:[%s1738 + $0x54] sm:$0xc]
        %v2743 = vld [vmem:[%s1738 + $0x58] sm:$0xf]
        %v2744 = vld [vmem:[%s1738 + $0x5c] sm:$0x3]
        %v2745 = vld [vmem:[%s1738 + $0x64] sm:$0xc]
        %v2746 = vld [vmem:[%s1738 + $0x68] sm:$0xf]
        %v2747 = vld [vmem:[%s1738 + $0x6c] sm:$0x3]
        %v2748 = vld [vmem:[%s1738 + $0x74] sm:$0xc]
        %v2749 = vld [vmem:[%s1738 + $0x78] sm:$0xf]
        %v2750 = vld [vmem:[%s1738 + $0x7c] sm:$0x3]
        %v2751 = vld [vmem:[%s1738 + $0x84] sm:$0xc]
        %v2752 = vld [vmem:[%s1738 + $0x88] sm:$0xf]
        %v2753 = vld [vmem:[%s1738 + $0x8c] sm:$0x3]
        %v2754 = vld [vmem:[%s1738 + $0x94] sm:$0xc]
        %v2755 = vld [vmem:[%s1738 + $0x98] sm:$0xf]
        %v2756 = vld [vmem:[%s1738 + $0x9c] sm:$0x3]
        %v2757 = vld [vmem:[%s1738 + $0xa4] sm:$0xc]
        %v2758 = vld [vmem:[%s1738 + $0xa8] sm:$0xf]
        %v2759 = vld [vmem:[%s1738 + $0xac] sm:$0x3]
        %v2760 = vld [vmem:[%s1738 + $0xb4] sm:$0xc]
        %v2761 = vld [vmem:[%s1738 + $0xb8] sm:$0xf]
        %v2762 = vld [vmem:[%s1738 + $0xbc] sm:$0x3]
        %v2763 = vld [vmem:[%s1738 + $0xc4] sm:$0xc]
        %v2764 = vld [vmem:[%s1738 + $0xc8] sm:$0xf]
        %v2765 = vld [vmem:[%s1738 + $0xcc] sm:$0x3]
        %v2766 = vld [vmem:[%s1738 + $0xd4] sm:$0xc]
        %v2767 = vld [vmem:[%s1738 + $0xd8] sm:$0xf]
        %v2768 = vld [vmem:[%s1738 + $0xdc] sm:$0x3]
        %v2769 = vld [vmem:[%s1738 + $0xe4] sm:$0xc]
        %v2770 = vld [vmem:[%s1738 + $0xe8] sm:$0xf]
        %v2771 = vld [vmem:[%s1738 + $0xec] sm:$0x3]
        %v2772 = vld [vmem:[%s1738 + $0xf4] sm:$0xc]
        %v2773 = vld [vmem:[%s1738 + $0xf8] sm:$0xf]
        %v2774 = vld [vmem:[%s1738 + $0xfc] sm:$0x3]
        %v2823 = vrot.slane %v2727, 6
        %v2824 = vrot.slane %v2823, 4
        %v2825 = vrot.slane %v2728, 6
        %v2826 = vsel %vm1267, %v2824, %v2825
        %v2827 = vrot.slane %v2825, 4
        %v2828 = vrot.slane %v2729, 6
        %v2829 = vsel %vm1267, %v2827, %v2828
        %v2830 = vrot.slane %v2730, 6
        %v2831 = vrot.slane %v2830, 4
        %v2832 = vrot.slane %v2731, 6
        %v2833 = vsel %vm1267, %v2831, %v2832
        %v2834 = vrot.slane %v2832, 4
        %v2835 = vrot.slane %v2732, 6
        %v2836 = vsel %vm1267, %v2834, %v2835
        %v2837 = vrot.slane %v2733, 6
        %v2838 = vrot.slane %v2837, 4
        %v2839 = vrot.slane %v2734, 6
        %v2840 = vsel %vm1267, %v2838, %v2839
        %v2841 = vrot.slane %v2839, 4
        %v2842 = vrot.slane %v2735, 6
        %v2843 = vsel %vm1267, %v2841, %v2842
        %v2844 = vrot.slane %v2736, 6
        %v2845 = vrot.slane %v2844, 4
        %v2846 = vrot.slane %v2737, 6
        %v2847 = vsel %vm1267, %v2845, %v2846
        %v2848 = vrot.slane %v2846, 4
        %v2849 = vrot.slane %v2738, 6
        %v2850 = vsel %vm1267, %v2848, %v2849
        %v2851 = vrot.slane %v2739, 6
        %v2852 = vrot.slane %v2851, 4
        %v2853 = vrot.slane %v2740, 6
        %v2854 = vsel %vm1267, %v2852, %v2853
        %v2855 = vrot.slane %v2853, 4
        %v2856 = vrot.slane %v2741, 6
        %v2857 = vsel %vm1267, %v2855, %v2856
        %v2858 = vrot.slane %v2742, 6
        %v2859 = vrot.slane %v2858, 4
        %v2860 = vrot.slane %v2743, 6
        %v2861 = vsel %vm1267, %v2859, %v2860
        %v2862 = vrot.slane %v2860, 4
        %v2863 = vrot.slane %v2744, 6
        %v2864 = vsel %vm1267, %v2862, %v2863
        %v2865 = vrot.slane %v2745, 6
        %v2866 = vrot.slane %v2865, 4
        %v2867 = vrot.slane %v2746, 6
        %v2868 = vsel %vm1267, %v2866, %v2867
        %v2869 = vrot.slane %v2867, 4
        %v2870 = vrot.slane %v2747, 6
        %v2871 = vsel %vm1267, %v2869, %v2870
        %v2872 = vrot.slane %v2748, 6
        %v2873 = vrot.slane %v2872, 4
        %v2874 = vrot.slane %v2749, 6
        %v2875 = vsel %vm1267, %v2873, %v2874
        %v2876 = vrot.slane %v2874, 4
        %v2877 = vrot.slane %v2750, 6
        %v2878 = vsel %vm1267, %v2876, %v2877
        %v2879 = vrot.slane %v2751, 6
        %v2880 = vrot.slane %v2879, 4
        %v2881 = vrot.slane %v2752, 6
        %v2882 = vsel %vm1267, %v2880, %v2881
        %v2883 = vrot.slane %v2881, 4
        %v2884 = vrot.slane %v2753, 6
        %v2885 = vsel %vm1267, %v2883, %v2884
        %v2886 = vrot.slane %v2754, 6
        %v2887 = vrot.slane %v2886, 4
        %v2888 = vrot.slane %v2755, 6
        %v2889 = vsel %vm1267, %v2887, %v2888
        %v2890 = vrot.slane %v2888, 4
        %v2891 = vrot.slane %v2756, 6
        %v2892 = vsel %vm1267, %v2890, %v2891
        %v2893 = vrot.slane %v2757, 6
        %v2894 = vrot.slane %v2893, 4
        %v2895 = vrot.slane %v2758, 6
        %v2896 = vsel %vm1267, %v2894, %v2895
        %v2897 = vrot.slane %v2895, 4
        %v2898 = vrot.slane %v2759, 6
        %v2899 = vsel %vm1267, %v2897, %v2898
        %v2900 = vrot.slane %v2760, 6
        %v2901 = vrot.slane %v2900, 4
        %v2902 = vrot.slane %v2761, 6
        %v2903 = vsel %vm1267, %v2901, %v2902
        %v2904 = vrot.slane %v2902, 4
        %v2905 = vrot.slane %v2762, 6
        %v2906 = vsel %vm1267, %v2904, %v2905
        %v2907 = vrot.slane %v2763, 6
        %v2908 = vrot.slane %v2907, 4
        %v2909 = vrot.slane %v2764, 6
        %v2910 = vsel %vm1267, %v2908, %v2909
        %v2911 = vrot.slane %v2909, 4
        %v2912 = vrot.slane %v2765, 6
        %v2913 = vsel %vm1267, %v2911, %v2912
        %v2914 = vrot.slane %v2766, 6
        %v2915 = vrot.slane %v2914, 4
        %v2916 = vrot.slane %v2767, 6
        %v2917 = vsel %vm1267, %v2915, %v2916
        %v2918 = vrot.slane %v2916, 4
        %v2919 = vrot.slane %v2768, 6
        %v2920 = vsel %vm1267, %v2918, %v2919
        %v2921 = vrot.slane %v2769, 6
        %v2922 = vrot.slane %v2921, 4
        %v2923 = vrot.slane %v2770, 6
        %v2924 = vsel %vm1267, %v2922, %v2923
        %v2925 = vrot.slane %v2923, 4
        %v2926 = vrot.slane %v2771, 6
        %v2927 = vsel %vm1267, %v2925, %v2926
        %v2928 = vrot.slane %v2772, 6
        %v2929 = vrot.slane %v2928, 4
        %v2930 = vrot.slane %v2773, 6
        %v2931 = vsel %vm1267, %v2929, %v2930
        %v2932 = vrot.slane %v2930, 4
        %v2933 = vrot.slane %v2774, 6
        %v2934 = vsel %vm1267, %v2932, %v2933
        %s2935 = scalar_lea.vmem %s1, 10
        %v2936 = vld [vmem:[%s2935] sm:$0x3]
        %v2937 = vunpack.c.l.b16 %v2826
        %v2938 = vunpack.c.l.b16 %v2829
        %v2939 = vunpack.c.l.b16 %v2833
        %v2940 = vunpack.c.l.b16 %v2836
        %v2941 = vunpack.c.l.b16 %v2840
        %v2942 = vunpack.c.l.b16 %v2843
        %v2943 = vunpack.c.l.b16 %v2847
        %v2944 = vunpack.c.l.b16 %v2850
        %v2945 = vunpack.c.l.b16 %v2854
        %v2946 = vunpack.c.l.b16 %v2857
        %v2947 = vunpack.c.l.b16 %v2861
        %v2948 = vunpack.c.l.b16 %v2864
        %v2949 = vunpack.c.l.b16 %v2868
        %v2950 = vunpack.c.l.b16 %v2871
        %v2951 = vunpack.c.l.b16 %v2875
        %v2952 = vunpack.c.l.b16 %v2878
        %v2953 = vunpack.c.l.b16 %v2882
        %v2954 = vunpack.c.l.b16 %v2885
        %v2955 = vunpack.c.l.b16 %v2889
        %v2956 = vunpack.c.l.b16 %v2892
        %v2957 = vunpack.c.l.b16 %v2896
        %v2958 = vunpack.c.l.b16 %v2899
        %v2959 = vunpack.c.l.b16 %v2903
        %v2960 = vunpack.c.l.b16 %v2906
        %v2961 = vunpack.c.l.b16 %v2910
        %v2962 = vunpack.c.l.b16 %v2913
        %v2963 = vunpack.c.l.b16 %v2917
        %v2964 = vunpack.c.l.b16 %v2920
        %v2965 = vunpack.c.l.b16 %v2924
        %v2966 = vunpack.c.l.b16 %v2927
        %v2967 = vunpack.c.l.b16 %v2931
        %v2968 = vunpack.c.l.b16 %v2934
        %v2969 = vpack.c.b16 %v2938, %v2937
        %v2970 = vpack.c.b16 %v2940, %v2939
        %v2971 = vpack.c.b16 %v2942, %v2941
        %v2972 = vpack.c.b16 %v2944, %v2943
        %v2973 = vpack.c.b16 %v2946, %v2945
        %v2974 = vpack.c.b16 %v2948, %v2947
        %v2975 = vpack.c.b16 %v2950, %v2949
        %v2976 = vpack.c.b16 %v2952, %v2951
        %v2977 = vpack.c.b16 %v2954, %v2953
        %v2978 = vpack.c.b16 %v2956, %v2955
        %v2979 = vpack.c.b16 %v2958, %v2957
        %v2980 = vpack.c.b16 %v2960, %v2959
        %v2981 = vpack.c.b16 %v2962, %v2961
        %v2982 = vpack.c.b16 %v2964, %v2963
        %v2983 = vpack.c.b16 %v2966, %v2965
        %v2984 = vpack.c.b16 %v2968, %v2967
        %v2986 = vsel %vm284, %v2969, 0
        %v2989 = vsel %vm284, %v2970, 0
        %v2992 = vsel %vm284, %v2971, 0
        %v2995 = vsel %vm284, %v2972, 0
        %v2998 = vsel %vm284, %v2973, 0
        %v3001 = vsel %vm284, %v2974, 0
        %v3004 = vsel %vm284, %v2975, 0
        %v3007 = vsel %vm284, %v2976, 0
        %v3010 = vsel %vm284, %v2977, 0
        %v3013 = vsel %vm284, %v2978, 0
        %v3016 = vsel %vm284, %v2979, 0
        %v3019 = vsel %vm284, %v2980, 0
        %v3022 = vsel %vm284, %v2981, 0
        %v3025 = vsel %vm284, %v2982, 0
        %v3028 = vsel %vm284, %v2983, 0
        %v3031 = vsel %vm284, %v2984, 0
        %v3034 = vsel %vm333, %v2936, 0
        %3036 = vmatprep.subr.bf16.mxu0 0
        %3037 = vmatpush1.bf16.msra.mxu0 %v3034
        %3038 = vmatprep.subr.bf16.mxu0 0
        %3039 = vmatpush1.bf16.msra.mxu0 0
        %3040 = vmatprep.subr.bf16.mxu0 0
        %3041 = vmatpush1.bf16.msra.mxu0 0
        %3042 = vmatprep.subr.bf16.mxu0 0
        %3043 = vmatpush1.bf16.msra.mxu0 0
        %3044 = vmatprep.subr.bf16.mxu0 0
        %3045 = vmatpush1.bf16.msra.mxu0 0
        %3046 = vmatprep.subr.bf16.mxu0 0
        %3047 = vmatpush1.bf16.msra.mxu0 0
        %3048 = vmatprep.subr.bf16.mxu0 0
        %3049 = vmatpush1.bf16.msra.mxu0 0
        %3050 = vmatprep.subr.bf16.mxu0 0
        %3051 = vmatpush1.bf16.msra.mxu0 0
        %3052 = vmatprep.subr.bf16.mxu0 0
        %3053 = vmatpush1.bf16.msra.mxu0 0
        %3054 = vmatprep.subr.bf16.mxu0 0
        %3055 = vmatpush1.bf16.msra.mxu0 0
        %3056 = vmatprep.subr.bf16.mxu0 0
        %3057 = vmatpush1.bf16.msra.mxu0 0
        %3058 = vmatprep.subr.bf16.mxu0 0
        %3059 = vmatpush1.bf16.msra.mxu0 0
        %3060 = vmatprep.subr.bf16.mxu0 0
        %3061 = vmatpush1.bf16.msra.mxu0 0
        %3062 = vmatprep.subr.bf16.mxu0 0
        %3063 = vmatpush1.bf16.msra.mxu0 0
        %3064 = vmatprep.subr.bf16.mxu0 0
        %3065 = vmatpush1.bf16.msra.mxu0 0
        %3066 = vmatprep.subr.bf16.mxu0 0
        %3067 = vmatpush1.bf16.msra.mxu0 0
        %3068 = vmatprep.mubr.bf16.mxu0 0
        %3069 = vmatmul.mubr.bf16.gmra.mrb[0].mxu0 %v2986
        %v3070 = vpop.f32.mrb[0].mxu0
        %v3071 = vadd.f32 0.0, %v3070
        %v3072 = vpop.f32.mrb[0].mxu0
        %v3073 = vpop.f32.mrb[0].mxu0
        %v3074 = vadd.f32 0.0, %v3073
        %v3075 = vpop.f32.mrb[0].mxu0
        %3076 = vmatprep.mubr.bf16.mxu0 0
        %3077 = vmatmul.mubr.bf16.gmra.mrb[0].mxu0 %v2989
        %v3078 = vpop.f32.mrb[0].mxu0
        %v3079 = vadd.f32 0.0, %v3078
        %v3080 = vpop.f32.mrb[0].mxu0
        %v3081 = vpop.f32.mrb[0].mxu0
        %v3082 = vadd.f32 0.0, %v3081
        %v3083 = vpop.f32.mrb[0].mxu0
        %3084 = vmatprep.mubr.bf16.mxu0 0
        %3085 = vmatmul.mubr.bf16.gmra.mrb[0].mxu0 %v2992
        %v3086 = vpop.f32.mrb[0].mxu0
        %v3087 = vadd.f32 0.0, %v3086
        %v3088 = vpop.f32.mrb[0].mxu0
        %v3089 = vpop.f32.mrb[0].mxu0
        %v3090 = vadd.f32 0.0, %v3089
        %v3091 = vpop.f32.mrb[0].mxu0
        %3092 = vmatprep.mubr.bf16.mxu0 0
        %3093 = vmatmul.mubr.bf16.gmra.mrb[0].mxu0 %v2995
        %v3094 = vpop.f32.mrb[0].mxu0
        %v3095 = vadd.f32 0.0, %v3094
        %v3096 = vpop.f32.mrb[0].mxu0
        %v3097 = vpop.f32.mrb[0].mxu0
        %v3098 = vadd.f32 0.0, %v3097
        %v3099 = vpop.f32.mrb[0].mxu0
        %3100 = vmatprep.mubr.bf16.mxu0 0
        %3101 = vmatmul.mubr.bf16.gmra.mrb[0].mxu0 %v2998
        %v3102 = vpop.f32.mrb[0].mxu0
        %v3103 = vadd.f32 0.0, %v3102
        %v3104 = vpop.f32.mrb[0].mxu0
        %v3105 = vpop.f32.mrb[0].mxu0
        %v3106 = vadd.f32 0.0, %v3105
        %v3107 = vpop.f32.mrb[0].mxu0
        %3108 = vmatprep.mubr.bf16.mxu0 0
        %3109 = vmatmul.mubr.bf16.gmra.mrb[0].mxu0 %v3001
        %v3110 = vpop.f32.mrb[0].mxu0
        %v3111 = vadd.f32 0.0, %v3110
        %v3112 = vpop.f32.mrb[0].mxu0
        %v3113 = vpop.f32.mrb[0].mxu0
        %v3114 = vadd.f32 0.0, %v3113
        %v3115 = vpop.f32.mrb[0].mxu0
        %3116 = vmatprep.mubr.bf16.mxu0 0
        %3117 = vmatmul.mubr.bf16.gmra.mrb[0].mxu0 %v3004
        %v3118 = vpop.f32.mrb[0].mxu0
        %v3119 = vadd.f32 0.0, %v3118
        %v3120 = vpop.f32.mrb[0].mxu0
        %v3121 = vpop.f32.mrb[0].mxu0
        %v3122 = vadd.f32 0.0, %v3121
        %v3123 = vpop.f32.mrb[0].mxu0
        %3124 = vmatprep.mubr.bf16.mxu0 0
        %3125 = vmatmul.mubr.bf16.gmra.mrb[0].mxu0 %v3007
        %v3126 = vpop.f32.mrb[0].mxu0
        %v3127 = vadd.f32 0.0, %v3126
        %v3128 = vpop.f32.mrb[0].mxu0
        %v3129 = vpop.f32.mrb[0].mxu0
        %v3130 = vadd.f32 0.0, %v3129
        %v3131 = vpop.f32.mrb[0].mxu0
        %3132 = vmatprep.mubr.bf16.mxu0 0
        %3133 = vmatmul.mubr.bf16.gmra.mrb[0].mxu0 %v3010
        %v3134 = vpop.f32.mrb[0].mxu0
        %v3135 = vadd.f32 0.0, %v3134
        %v3136 = vpop.f32.mrb[0].mxu0
        %v3137 = vpop.f32.mrb[0].mxu0
        %v3138 = vadd.f32 0.0, %v3137
        %v3139 = vpop.f32.mrb[0].mxu0
        %3140 = vmatprep.mubr.bf16.mxu0 0
        %3141 = vmatmul.mubr.bf16.gmra.mrb[0].mxu0 %v3013
        %v3142 = vpop.f32.mrb[0].mxu0
        %v3143 = vadd.f32 0.0, %v3142
        %v3144 = vpop.f32.mrb[0].mxu0
        %v3145 = vpop.f32.mrb[0].mxu0
        %v3146 = vadd.f32 0.0, %v3145
        %v3147 = vpop.f32.mrb[0].mxu0
        %3148 = vmatprep.mubr.bf16.mxu0 0
        %3149 = vmatmul.mubr.bf16.gmra.mrb[0].mxu0 %v3016
        %v3150 = vpop.f32.mrb[0].mxu0
        %v3151 = vadd.f32 0.0, %v3150
        %v3152 = vpop.f32.mrb[0].mxu0
        %v3153 = vpop.f32.mrb[0].mxu0
        %v3154 = vadd.f32 0.0, %v3153
        %v3155 = vpop.f32.mrb[0].mxu0
        %3156 = vmatprep.mubr.bf16.mxu0 0
        %3157 = vmatmul.mubr.bf16.gmra.mrb[0].mxu0 %v3019
        %v3158 = vpop.f32.mrb[0].mxu0
        %v3159 = vadd.f32 0.0, %v3158
        %v3160 = vpop.f32.mrb[0].mxu0
        %v3161 = vpop.f32.mrb[0].mxu0
        %v3162 = vadd.f32 0.0, %v3161
        %v3163 = vpop.f32.mrb[0].mxu0
        %3164 = vmatprep.mubr.bf16.mxu0 0
        %3165 = vmatmul.mubr.bf16.gmra.mrb[0].mxu0 %v3022
        %v3166 = vpop.f32.mrb[0].mxu0
        %v3167 = vadd.f32 0.0, %v3166
        %v3168 = vpop.f32.mrb[0].mxu0
        %v3169 = vpop.f32.mrb[0].mxu0
        %v3170 = vadd.f32 0.0, %v3169
        %v3171 = vpop.f32.mrb[0].mxu0
        %3172 = vmatprep.mubr.bf16.mxu0 0
        %3173 = vmatmul.mubr.bf16.gmra.mrb[0].mxu0 %v3025
        %v3174 = vpop.f32.mrb[0].mxu0
        %v3175 = vadd.f32 0.0, %v3174
        %v3176 = vpop.f32.mrb[0].mxu0
        %v3177 = vpop.f32.mrb[0].mxu0
        %v3178 = vadd.f32 0.0, %v3177
        %v3179 = vpop.f32.mrb[0].mxu0
        %3180 = vmatprep.mubr.bf16.mxu0 0
        %3181 = vmatmul.mubr.bf16.gmra.mrb[0].mxu0 %v3028
        %v3182 = vpop.f32.mrb[0].mxu0
        %v3183 = vadd.f32 0.0, %v3182
        %v3184 = vpop.f32.mrb[0].mxu0
        %v3185 = vpop.f32.mrb[0].mxu0
        %v3186 = vadd.f32 0.0, %v3185
        %v3187 = vpop.f32.mrb[0].mxu0
        %3188 = vmatprep.mubr.bf16.mxu0 0
        %3189 = vmatmul.mubr.bf16.gmra.mrb[0].mxu0 %v3031
        %v3190 = vpop.f32.mrb[0].mxu0
        %v3191 = vadd.f32 0.0, %v3190
        %v3192 = vpop.f32.mrb[0].mxu0
        %v3193 = vpop.f32.mrb[0].mxu0
        %v3194 = vadd.f32 0.0, %v3193
        %v3195 = vpop.f32.mrb[0].mxu0
        %3196 = vdwg.mxu0
        %v3197 = vadd.f32 %v2695, %v3071
        %v3198 = vadd.f32 %v2696, %v3074
        %v3199 = vadd.f32 %v2697, %v3079
        %v3200 = vadd.f32 %v2698, %v3082
        %v3201 = vadd.f32 %v2699, %v3087
        %v3202 = vadd.f32 %v2700, %v3090
        %v3203 = vadd.f32 %v2701, %v3095
        %v3204 = vadd.f32 %v2702, %v3098
        %v3205 = vadd.f32 %v2703, %v3103
        %v3206 = vadd.f32 %v2704, %v3106
        %v3207 = vadd.f32 %v2705, %v3111
        %v3208 = vadd.f32 %v2706, %v3114
        %v3209 = vadd.f32 %v2707, %v3119
        %v3210 = vadd.f32 %v2708, %v3122
        %v3211 = vadd.f32 %v2709, %v3127
        %v3212 = vadd.f32 %v2710, %v3130
        %v3213 = vadd.f32 %v2711, %v3135
        %v3214 = vadd.f32 %v2712, %v3138
        %v3215 = vadd.f32 %v2713, %v3143
        %v3216 = vadd.f32 %v2714, %v3146
        %v3217 = vadd.f32 %v2715, %v3151
        %v3218 = vadd.f32 %v2716, %v3154
        %v3219 = vadd.f32 %v2717, %v3159
        %v3220 = vadd.f32 %v2718, %v3162
        %v3221 = vadd.f32 %v2719, %v3167
        %v3222 = vadd.f32 %v2720, %v3170
        %v3223 = vadd.f32 %v2721, %v3175
        %v3224 = vadd.f32 %v2722, %v3178
        %v3225 = vadd.f32 %v2723, %v3183
        %v3226 = vadd.f32 %v2724, %v3186
        %v3227 = vadd.f32 %v2725, %v3191
        %v3228 = vadd.f32 %v2726, %v3194
        %3229 = vst [vmem:[%s163] sm:$0xff] %v3197
        %3230 = vst [vmem:[%s163 + $0x8] sm:$0xff] %v3198
        %3231 = vst [vmem:[%s163 + $0x10] sm:$0xff] %v3199
        %3232 = vst [vmem:[%s163 + $0x18] sm:$0xff] %v3200
        %3233 = vst [vmem:[%s163 + $0x20] sm:$0xff] %v3201
        %3234 = vst [vmem:[%s163 + $0x28] sm:$0xff] %v3202
        %3235 = vst [vmem:[%s163 + $0x30] sm:$0xff] %v3203
        %3236 = vst [vmem:[%s163 + $0x38] sm:$0xff] %v3204
        %3237 = vst [vmem:[%s163 + $0x40] sm:$0xff] %v3205
        %3238 = vst [vmem:[%s163 + $0x48] sm:$0xff] %v3206
        %3239 = vst [vmem:[%s163 + $0x50] sm:$0xff] %v3207
        %3240 = vst [vmem:[%s163 + $0x58] sm:$0xff] %v3208
        %3241 = vst [vmem:[%s163 + $0x60] sm:$0xff] %v3209
        %3242 = vst [vmem:[%s163 + $0x68] sm:$0xff] %v3210
        %3243 = vst [vmem:[%s163 + $0x70] sm:$0xff] %v3211
        %3244 = vst [vmem:[%s163 + $0x78] sm:$0xff] %v3212
        %3245 = vst [vmem:[%s163 + $0x80] sm:$0xff] %v3213
        %3246 = vst [vmem:[%s163 + $0x88] sm:$0xff] %v3214
        %3247 = vst [vmem:[%s163 + $0x90] sm:$0xff] %v3215
        %3248 = vst [vmem:[%s163 + $0x98] sm:$0xff] %v3216
        %3249 = vst [vmem:[%s163 + $0xa0] sm:$0xff] %v3217
        %3250 = vst [vmem:[%s163 + $0xa8] sm:$0xff] %v3218
        %3251 = vst [vmem:[%s163 + $0xb0] sm:$0xff] %v3219
        %3252 = vst [vmem:[%s163 + $0xb8] sm:$0xff] %v3220
        %3253 = vst [vmem:[%s163 + $0xc0] sm:$0xff] %v3221
        %3254 = vst [vmem:[%s163 + $0xc8] sm:$0xff] %v3222
        %3255 = vst [vmem:[%s163 + $0xd0] sm:$0xff] %v3223
        %3256 = vst [vmem:[%s163 + $0xd8] sm:$0xff] %v3224
        %3257 = vst [vmem:[%s163 + $0xe0] sm:$0xff] %v3225
        %3258 = vst [vmem:[%s163 + $0xe8] sm:$0xff] %v3226
        %3259 = vst [vmem:[%s163 + $0xf0] sm:$0xff] %v3227
        %3260 = vst [vmem:[%s163 + $0xf8] sm:$0xff] %v3228
        %v3261 = vld [vmem:[%s163] sm:$0xff]
        %v3262 = vld [vmem:[%s163 + $0x8] sm:$0xff]
        %v3263 = vld [vmem:[%s163 + $0x10] sm:$0xff]
        %v3264 = vld [vmem:[%s163 + $0x18] sm:$0xff]
        %v3265 = vld [vmem:[%s163 + $0x20] sm:$0xff]
        %v3266 = vld [vmem:[%s163 + $0x28] sm:$0xff]
        %v3267 = vld [vmem:[%s163 + $0x30] sm:$0xff]
        %v3268 = vld [vmem:[%s163 + $0x38] sm:$0xff]
        %v3269 = vld [vmem:[%s163 + $0x40] sm:$0xff]
        %v3270 = vld [vmem:[%s163 + $0x48] sm:$0xff]
        %v3271 = vld [vmem:[%s163 + $0x50] sm:$0xff]
        %v3272 = vld [vmem:[%s163 + $0x58] sm:$0xff]
        %v3273 = vld [vmem:[%s163 + $0x60] sm:$0xff]
        %v3274 = vld [vmem:[%s163 + $0x68] sm:$0xff]
        %v3275 = vld [vmem:[%s163 + $0x70] sm:$0xff]
        %v3276 = vld [vmem:[%s163 + $0x78] sm:$0xff]
        %v3277 = vld [vmem:[%s163 + $0x80] sm:$0xff]
        %v3278 = vld [vmem:[%s163 + $0x88] sm:$0xff]
        %v3279 = vld [vmem:[%s163 + $0x90] sm:$0xff]
        %v3280 = vld [vmem:[%s163 + $0x98] sm:$0xff]
        %v3281 = vld [vmem:[%s163 + $0xa0] sm:$0xff]
        %v3282 = vld [vmem:[%s163 + $0xa8] sm:$0xff]
        %v3283 = vld [vmem:[%s163 + $0xb0] sm:$0xff]
        %v3284 = vld [vmem:[%s163 + $0xb8] sm:$0xff]
        %v3285 = vld [vmem:[%s163 + $0xc0] sm:$0xff]
        %v3286 = vld [vmem:[%s163 + $0xc8] sm:$0xff]
        %v3287 = vld [vmem:[%s163 + $0xd0] sm:$0xff]
        %v3288 = vld [vmem:[%s163 + $0xd8] sm:$0xff]
        %v3289 = vld [vmem:[%s163 + $0xe0] sm:$0xff]
        %v3290 = vld [vmem:[%s163 + $0xe8] sm:$0xff]
        %v3291 = vld [vmem:[%s163 + $0xf0] sm:$0xff]
        %v3292 = vld [vmem:[%s163 + $0xf8] sm:$0xff]
        %s3293 = scalar_lea.vmem %s168, 192
        %v3294 = vld [vmem:[%s3293] sm:$0xf]
        %v3295 = vld [vmem:[%s3293 + $0x4] sm:$0xf]
        %v3296 = vld [vmem:[%s3293 + $0x10] sm:$0xf]
        %v3297 = vld [vmem:[%s3293 + $0x14] sm:$0xf]
        %v3298 = vld [vmem:[%s3293 + $0x20] sm:$0xf]
        %v3299 = vld [vmem:[%s3293 + $0x24] sm:$0xf]
        %v3300 = vld [vmem:[%s3293 + $0x30] sm:$0xf]
        %v3301 = vld [vmem:[%s3293 + $0x34] sm:$0xf]
        %v3302 = vld [vmem:[%s3293 + $0x40] sm:$0xf]
        %v3303 = vld [vmem:[%s3293 + $0x44] sm:$0xf]
        %v3304 = vld [vmem:[%s3293 + $0x50] sm:$0xf]
        %v3305 = vld [vmem:[%s3293 + $0x54] sm:$0xf]
        %v3306 = vld [vmem:[%s3293 + $0x60] sm:$0xf]
        %v3307 = vld [vmem:[%s3293 + $0x64] sm:$0xf]
        %v3308 = vld [vmem:[%s3293 + $0x70] sm:$0xf]
        %v3309 = vld [vmem:[%s3293 + $0x74] sm:$0xf]
        %v3310 = vld [vmem:[%s3293 + $0x80] sm:$0xf]
        %v3311 = vld [vmem:[%s3293 + $0x84] sm:$0xf]
        %v3312 = vld [vmem:[%s3293 + $0x90] sm:$0xf]
        %v3313 = vld [vmem:[%s3293 + $0x94] sm:$0xf]
        %v3314 = vld [vmem:[%s3293 + $0xa0] sm:$0xf]
        %v3315 = vld [vmem:[%s3293 + $0xa4] sm:$0xf]
        %v3316 = vld [vmem:[%s3293 + $0xb0] sm:$0xf]
        %v3317 = vld [vmem:[%s3293 + $0xb4] sm:$0xf]
        %v3318 = vld [vmem:[%s3293 + $0xc0] sm:$0xf]
        %v3319 = vld [vmem:[%s3293 + $0xc4] sm:$0xf]
        %v3320 = vld [vmem:[%s3293 + $0xd0] sm:$0xf]
        %v3321 = vld [vmem:[%s3293 + $0xd4] sm:$0xf]
        %v3322 = vld [vmem:[%s3293 + $0xe0] sm:$0xf]
        %v3323 = vld [vmem:[%s3293 + $0xe4] sm:$0xf]
        %v3324 = vld [vmem:[%s3293 + $0xf0] sm:$0xf]
        %v3325 = vld [vmem:[%s3293 + $0xf4] sm:$0xf]
        %s3326 = scalar_lea.vmem %s1, 12
        %v3327 = vld [vmem:[%s3326] sm:$0x3]
        %v3360 = vunpack.c.l.b16 %v3294
        %v3361 = vunpack.c.l.b16 %v3295
        %v3362 = vunpack.c.l.b16 %v3296
        %v3363 = vunpack.c.l.b16 %v3297
        %v3364 = vunpack.c.l.b16 %v3298
        %v3365 = vunpack.c.l.b16 %v3299
        %v3366 = vunpack.c.l.b16 %v3300
        %v3367 = vunpack.c.l.b16 %v3301
        %v3368 = vunpack.c.l.b16 %v3302
        %v3369 = vunpack.c.l.b16 %v3303
        %v3370 = vunpack.c.l.b16 %v3304
        %v3371 = vunpack.c.l.b16 %v3305
        %v3372 = vunpack.c.l.b16 %v3306
        %v3373 = vunpack.c.l.b16 %v3307
        %v3374 = vunpack.c.l.b16 %v3308
        %v3375 = vunpack.c.l.b16 %v3309
        %v3376 = vunpack.c.l.b16 %v3310
        %v3377 = vunpack.c.l.b16 %v3311
        %v3378 = vunpack.c.l.b16 %v3312
        %v3379 = vunpack.c.l.b16 %v3313
        %v3380 = vunpack.c.l.b16 %v3314
        %v3381 = vunpack.c.l.b16 %v3315
        %v3382 = vunpack.c.l.b16 %v3316
        %v3383 = vunpack.c.l.b16 %v3317
        %v3384 = vunpack.c.l.b16 %v3318
        %v3385 = vunpack.c.l.b16 %v3319
        %v3386 = vunpack.c.l.b16 %v3320
        %v3387 = vunpack.c.l.b16 %v3321
        %v3388 = vunpack.c.l.b16 %v3322
        %v3389 = vunpack.c.l.b16 %v3323
        %v3390 = vunpack.c.l.b16 %v3324
        %v3391 = vunpack.c.l.b16 %v3325
        %v3392 = vpack.c.b16 %v3361, %v3360
        %v3393 = vpack.c.b16 %v3363, %v3362
        %v3394 = vpack.c.b16 %v3365, %v3364
        %v3395 = vpack.c.b16 %v3367, %v3366
        %v3396 = vpack.c.b16 %v3369, %v3368
        %v3397 = vpack.c.b16 %v3371, %v3370
        %v3398 = vpack.c.b16 %v3373, %v3372
        %v3399 = vpack.c.b16 %v3375, %v3374
        %v3400 = vpack.c.b16 %v3377, %v3376
        %v3401 = vpack.c.b16 %v3379, %v3378
        %v3402 = vpack.c.b16 %v3381, %v3380
        %v3403 = vpack.c.b16 %v3383, %v3382
        %v3404 = vpack.c.b16 %v3385, %v3384
        %v3405 = vpack.c.b16 %v3387, %v3386
        %v3406 = vpack.c.b16 %v3389, %v3388
        %v3407 = vpack.c.b16 %v3391, %v3390
        %v3409 = vsel %vm284, %v3392, 0
        %v3412 = vsel %vm284, %v3393, 0
        %v3415 = vsel %vm284, %v3394, 0
        %v3418 = vsel %vm284, %v3395, 0
        %v3421 = vsel %vm284, %v3396, 0
        %v3424 = vsel %vm284, %v3397, 0
        %v3427 = vsel %vm284, %v3398, 0
        %v3430 = vsel %vm284, %v3399, 0
        %v3433 = vsel %vm284, %v3400, 0
        %v3436 = vsel %vm284, %v3401, 0
        %v3439 = vsel %vm284, %v3402, 0
        %v3442 = vsel %vm284, %v3403, 0
        %v3445 = vsel %vm284, %v3404, 0
        %v3448 = vsel %vm284, %v3405, 0
        %v3451 = vsel %vm284, %v3406, 0
        %v3454 = vsel %vm284, %v3407, 0
        %v3457 = vsel %vm333, %v3327, 0
        %3459 = vmatprep.subr.bf16.mxu0 0
        %3460 = vmatpush1.bf16.msra.mxu0 %v3457
        %3461 = vmatprep.subr.bf16.mxu0 0
        %3462 = vmatpush1.bf16.msra.mxu0 0
        %3463 = vmatprep.subr.bf16.mxu0 0
        %3464 = vmatpush1.bf16.msra.mxu0 0
        %3465 = vmatprep.subr.bf16.mxu0 0
        %3466 = vmatpush1.bf16.msra.mxu0 0
        %3467 = vmatprep.subr.bf16.mxu0 0
        %3468 = vmatpush1.bf16.msra.mxu0 0
        %3469 = vmatprep.subr.bf16.mxu0 0
        %3470 = vmatpush1.bf16.msra.mxu0 0
        %3471 = vmatprep.subr.bf16.mxu0 0
        %3472 = vmatpush1.bf16.msra.mxu0 0
        %3473 = vmatprep.subr.bf16.mxu0 0
        %3474 = vmatpush1.bf16.msra.mxu0 0
        %3475 = vmatprep.subr.bf16.mxu0 0
        %3476 = vmatpush1.bf16.msra.mxu0 0
        %3477 = vmatprep.subr.bf16.mxu0 0
        %3478 = vmatpush1.bf16.msra.mxu0 0
        %3479 = vmatprep.subr.bf16.mxu0 0
        %3480 = vmatpush1.bf16.msra.mxu0 0
        %3481 = vmatprep.subr.bf16.mxu0 0
        %3482 = vmatpush1.bf16.msra.mxu0 0
        %3483 = vmatprep.subr.bf16.mxu0 0
        %3484 = vmatpush1.bf16.msra.mxu0 0
        %3485 = vmatprep.subr.bf16.mxu0 0
        %3486 = vmatpush1.bf16.msra.mxu0 0
        %3487 = vmatprep.subr.bf16.mxu0 0
        %3488 = vmatpush1.bf16.msra.mxu0 0
        %3489 = vmatprep.subr.bf16.mxu0 0
        %3490 = vmatpush1.bf16.msra.mxu0 0
        %3491 = vmatprep.mubr.bf16.mxu0 0
        %3492 = vmatmul.mubr.bf16.gmra.mrb[0].mxu0 %v3409
        %v3493 = vpop.f32.mrb[0].mxu0
        %v3494 = vadd.f32 0.0, %v3493
        %v3495 = vpop.f32.mrb[0].mxu0
        %v3496 = vpop.f32.mrb[0].mxu0
        %v3497 = vadd.f32 0.0, %v3496
        %v3498 = vpop.f32.mrb[0].mxu0
        %3499 = vmatprep.mubr.bf16.mxu0 0
        %3500 = vmatmul.mubr.bf16.gmra.mrb[0].mxu0 %v3412
        %v3501 = vpop.f32.mrb[0].mxu0
        %v3502 = vadd.f32 0.0, %v3501
        %v3503 = vpop.f32.mrb[0].mxu0
        %v3504 = vpop.f32.mrb[0].mxu0
        %v3505 = vadd.f32 0.0, %v3504
        %v3506 = vpop.f32.mrb[0].mxu0
        %3507 = vmatprep.mubr.bf16.mxu0 0
        %3508 = vmatmul.mubr.bf16.gmra.mrb[0].mxu0 %v3415
        %v3509 = vpop.f32.mrb[0].mxu0
        %v3510 = vadd.f32 0.0, %v3509
        %v3511 = vpop.f32.mrb[0].mxu0
        %v3512 = vpop.f32.mrb[0].mxu0
        %v3513 = vadd.f32 0.0, %v3512
        %v3514 = vpop.f32.mrb[0].mxu0
        %3515 = vmatprep.mubr.bf16.mxu0 0
        %3516 = vmatmul.mubr.bf16.gmra.mrb[0].mxu0 %v3418
        %v3517 = vpop.f32.mrb[0].mxu0
        %v3518 = vadd.f32 0.0, %v3517
        %v3519 = vpop.f32.mrb[0].mxu0
        %v3520 = vpop.f32.mrb[0].mxu0
        %v3521 = vadd.f32 0.0, %v3520
        %v3522 = vpop.f32.mrb[0].mxu0
        %3523 = vmatprep.mubr.bf16.mxu0 0
        %3524 = vmatmul.mubr.bf16.gmra.mrb[0].mxu0 %v3421
        %v3525 = vpop.f32.mrb[0].mxu0
        %v3526 = vadd.f32 0.0, %v3525
        %v3527 = vpop.f32.mrb[0].mxu0
        %v3528 = vpop.f32.mrb[0].mxu0
        %v3529 = vadd.f32 0.0, %v3528
        %v3530 = vpop.f32.mrb[0].mxu0
        %3531 = vmatprep.mubr.bf16.mxu0 0
        %3532 = vmatmul.mubr.bf16.gmra.mrb[0].mxu0 %v3424
        %v3533 = vpop.f32.mrb[0].mxu0
        %v3534 = vadd.f32 0.0, %v3533
        %v3535 = vpop.f32.mrb[0].mxu0
        %v3536 = vpop.f32.mrb[0].mxu0
        %v3537 = vadd.f32 0.0, %v3536
        %v3538 = vpop.f32.mrb[0].mxu0
        %3539 = vmatprep.mubr.bf16.mxu0 0
        %3540 = vmatmul.mubr.bf16.gmra.mrb[0].mxu0 %v3427
        %v3541 = vpop.f32.mrb[0].mxu0
        %v3542 = vadd.f32 0.0, %v3541
        %v3543 = vpop.f32.mrb[0].mxu0
        %v3544 = vpop.f32.mrb[0].mxu0
        %v3545 = vadd.f32 0.0, %v3544
        %v3546 = vpop.f32.mrb[0].mxu0
        %3547 = vmatprep.mubr.bf16.mxu0 0
        %3548 = vmatmul.mubr.bf16.gmra.mrb[0].mxu0 %v3430
        %v3549 = vpop.f32.mrb[0].mxu0
        %v3550 = vadd.f32 0.0, %v3549
        %v3551 = vpop.f32.mrb[0].mxu0
        %v3552 = vpop.f32.mrb[0].mxu0
        %v3553 = vadd.f32 0.0, %v3552
        %v3554 = vpop.f32.mrb[0].mxu0
        %3555 = vmatprep.mubr.bf16.mxu0 0
        %3556 = vmatmul.mubr.bf16.gmra.mrb[0].mxu0 %v3433
        %v3557 = vpop.f32.mrb[0].mxu0
        %v3558 = vadd.f32 0.0, %v3557
        %v3559 = vpop.f32.mrb[0].mxu0
        %v3560 = vpop.f32.mrb[0].mxu0
        %v3561 = vadd.f32 0.0, %v3560
        %v3562 = vpop.f32.mrb[0].mxu0
        %3563 = vmatprep.mubr.bf16.mxu0 0
        %3564 = vmatmul.mubr.bf16.gmra.mrb[0].mxu0 %v3436
        %v3565 = vpop.f32.mrb[0].mxu0
        %v3566 = vadd.f32 0.0, %v3565
        %v3567 = vpop.f32.mrb[0].mxu0
        %v3568 = vpop.f32.mrb[0].mxu0
        %v3569 = vadd.f32 0.0, %v3568
        %v3570 = vpop.f32.mrb[0].mxu0
        %3571 = vmatprep.mubr.bf16.mxu0 0
        %3572 = vmatmul.mubr.bf16.gmra.mrb[0].mxu0 %v3439
        %v3573 = vpop.f32.mrb[0].mxu0
        %v3574 = vadd.f32 0.0, %v3573
        %v3575 = vpop.f32.mrb[0].mxu0
        %v3576 = vpop.f32.mrb[0].mxu0
        %v3577 = vadd.f32 0.0, %v3576
        %v3578 = vpop.f32.mrb[0].mxu0
        %3579 = vmatprep.mubr.bf16.mxu0 0
        %3580 = vmatmul.mubr.bf16.gmra.mrb[0].mxu0 %v3442
        %v3581 = vpop.f32.mrb[0].mxu0
        %v3582 = vadd.f32 0.0, %v3581
        %v3583 = vpop.f32.mrb[0].mxu0
        %v3584 = vpop.f32.mrb[0].mxu0
        %v3585 = vadd.f32 0.0, %v3584
        %v3586 = vpop.f32.mrb[0].mxu0
        %3587 = vmatprep.mubr.bf16.mxu0 0
        %3588 = vmatmul.mubr.bf16.gmra.mrb[0].mxu0 %v3445
        %v3589 = vpop.f32.mrb[0].mxu0
        %v3590 = vadd.f32 0.0, %v3589
        %v3591 = vpop.f32.mrb[0].mxu0
        %v3592 = vpop.f32.mrb[0].mxu0
        %v3593 = vadd.f32 0.0, %v3592
        %v3594 = vpop.f32.mrb[0].mxu0
        %3595 = vmatprep.mubr.bf16.mxu0 0
        %3596 = vmatmul.mubr.bf16.gmra.mrb[0].mxu0 %v3448
        %v3597 = vpop.f32.mrb[0].mxu0
        %v3598 = vadd.f32 0.0, %v3597
        %v3599 = vpop.f32.mrb[0].mxu0
        %v3600 = vpop.f32.mrb[0].mxu0
        %v3601 = vadd.f32 0.0, %v3600
        %v3602 = vpop.f32.mrb[0].mxu0
        %3603 = vmatprep.mubr.bf16.mxu0 0
        %3604 = vmatmul.mubr.bf16.gmra.mrb[0].mxu0 %v3451
        %v3605 = vpop.f32.mrb[0].mxu0
        %v3606 = vadd.f32 0.0, %v3605
        %v3607 = vpop.f32.mrb[0].mxu0
        %v3608 = vpop.f32.mrb[0].mxu0
        %v3609 = vadd.f32 0.0, %v3608
        %v3610 = vpop.f32.mrb[0].mxu0
        %3611 = vmatprep.mubr.bf16.mxu0 0
        %3612 = vmatmul.mubr.bf16.gmra.mrb[0].mxu0 %v3454
        %v3613 = vpop.f32.mrb[0].mxu0
        %v3614 = vadd.f32 0.0, %v3613
        %v3615 = vpop.f32.mrb[0].mxu0
        %v3616 = vpop.f32.mrb[0].mxu0
        %v3617 = vadd.f32 0.0, %v3616
        %v3618 = vpop.f32.mrb[0].mxu0
        %3619 = vdwg.mxu0
        %v3620 = vadd.f32 %v3261, %v3494
        %v3621 = vadd.f32 %v3262, %v3497
        %v3622 = vadd.f32 %v3263, %v3502
        %v3623 = vadd.f32 %v3264, %v3505
        %v3624 = vadd.f32 %v3265, %v3510
        %v3625 = vadd.f32 %v3266, %v3513
        %v3626 = vadd.f32 %v3267, %v3518
        %v3627 = vadd.f32 %v3268, %v3521
        %v3628 = vadd.f32 %v3269, %v3526
        %v3629 = vadd.f32 %v3270, %v3529
        %v3630 = vadd.f32 %v3271, %v3534
        %v3631 = vadd.f32 %v3272, %v3537
        %v3632 = vadd.f32 %v3273, %v3542
        %v3633 = vadd.f32 %v3274, %v3545
        %v3634 = vadd.f32 %v3275, %v3550
        %v3635 = vadd.f32 %v3276, %v3553
        %v3636 = vadd.f32 %v3277, %v3558
        %v3637 = vadd.f32 %v3278, %v3561
        %v3638 = vadd.f32 %v3279, %v3566
        %v3639 = vadd.f32 %v3280, %v3569
        %v3640 = vadd.f32 %v3281, %v3574
        %v3641 = vadd.f32 %v3282, %v3577
        %v3642 = vadd.f32 %v3283, %v3582
        %v3643 = vadd.f32 %v3284, %v3585
        %v3644 = vadd.f32 %v3285, %v3590
        %v3645 = vadd.f32 %v3286, %v3593
        %v3646 = vadd.f32 %v3287, %v3598
        %v3647 = vadd.f32 %v3288, %v3601
        %v3648 = vadd.f32 %v3289, %v3606
        %v3649 = vadd.f32 %v3290, %v3609
        %v3650 = vadd.f32 %v3291, %v3614
        %v3651 = vadd.f32 %v3292, %v3617
        %3652 = vst [vmem:[%s163] sm:$0xff] %v3620
        %3653 = vst [vmem:[%s163 + $0x8] sm:$0xff] %v3621
        %3654 = vst [vmem:[%s163 + $0x10] sm:$0xff] %v3622
        %3655 = vst [vmem:[%s163 + $0x18] sm:$0xff] %v3623
        %3656 = vst [vmem:[%s163 + $0x20] sm:$0xff] %v3624
        %3657 = vst [vmem:[%s163 + $0x28] sm:$0xff] %v3625
        %3658 = vst [vmem:[%s163 + $0x30] sm:$0xff] %v3626
        %3659 = vst [vmem:[%s163 + $0x38] sm:$0xff] %v3627
        %3660 = vst [vmem:[%s163 + $0x40] sm:$0xff] %v3628
        %3661 = vst [vmem:[%s163 + $0x48] sm:$0xff] %v3629
        %3662 = vst [vmem:[%s163 + $0x50] sm:$0xff] %v3630
        %3663 = vst [vmem:[%s163 + $0x58] sm:$0xff] %v3631
        %3664 = vst [vmem:[%s163 + $0x60] sm:$0xff] %v3632
        %3665 = vst [vmem:[%s163 + $0x68] sm:$0xff] %v3633
        %3666 = vst [vmem:[%s163 + $0x70] sm:$0xff] %v3634
        %3667 = vst [vmem:[%s163 + $0x78] sm:$0xff] %v3635
        %3668 = vst [vmem:[%s163 + $0x80] sm:$0xff] %v3636
        %3669 = vst [vmem:[%s163 + $0x88] sm:$0xff] %v3637
        %3670 = vst [vmem:[%s163 + $0x90] sm:$0xff] %v3638
        %3671 = vst [vmem:[%s163 + $0x98] sm:$0xff] %v3639
        %3672 = vst [vmem:[%s163 + $0xa0] sm:$0xff] %v3640
        %3673 = vst [vmem:[%s163 + $0xa8] sm:$0xff] %v3641
        %3674 = vst [vmem:[%s163 + $0xb0] sm:$0xff] %v3642
        %3675 = vst [vmem:[%s163 + $0xb8] sm:$0xff] %v3643
        %3676 = vst [vmem:[%s163 + $0xc0] sm:$0xff] %v3644
        %3677 = vst [vmem:[%s163 + $0xc8] sm:$0xff] %v3645
        %3678 = vst [vmem:[%s163 + $0xd0] sm:$0xff] %v3646
        %3679 = vst [vmem:[%s163 + $0xd8] sm:$0xff] %v3647
        %3680 = vst [vmem:[%s163 + $0xe0] sm:$0xff] %v3648
        %3681 = vst [vmem:[%s163 + $0xe8] sm:$0xff] %v3649
        %3682 = vst [vmem:[%s163 + $0xf0] sm:$0xff] %v3650
        %3683 = vst [vmem:[%s163 + $0xf8] sm:$0xff] %v3651
        %v3684 = vld [vmem:[%s163] sm:$0xff]
        %v3685 = vld [vmem:[%s163 + $0x8] sm:$0xff]
        %v3686 = vld [vmem:[%s163 + $0x10] sm:$0xff]
        %v3687 = vld [vmem:[%s163 + $0x18] sm:$0xff]
        %v3688 = vld [vmem:[%s163 + $0x20] sm:$0xff]
        %v3689 = vld [vmem:[%s163 + $0x28] sm:$0xff]
        %v3690 = vld [vmem:[%s163 + $0x30] sm:$0xff]
        %v3691 = vld [vmem:[%s163 + $0x38] sm:$0xff]
        %v3692 = vld [vmem:[%s163 + $0x40] sm:$0xff]
        %v3693 = vld [vmem:[%s163 + $0x48] sm:$0xff]
        %v3694 = vld [vmem:[%s163 + $0x50] sm:$0xff]
        %v3695 = vld [vmem:[%s163 + $0x58] sm:$0xff]
        %v3696 = vld [vmem:[%s163 + $0x60] sm:$0xff]
        %v3697 = vld [vmem:[%s163 + $0x68] sm:$0xff]
        %v3698 = vld [vmem:[%s163 + $0x70] sm:$0xff]
        %v3699 = vld [vmem:[%s163 + $0x78] sm:$0xff]
        %v3700 = vld [vmem:[%s163 + $0x80] sm:$0xff]
        %v3701 = vld [vmem:[%s163 + $0x88] sm:$0xff]
        %v3702 = vld [vmem:[%s163 + $0x90] sm:$0xff]
        %v3703 = vld [vmem:[%s163 + $0x98] sm:$0xff]
        %v3704 = vld [vmem:[%s163 + $0xa0] sm:$0xff]
        %v3705 = vld [vmem:[%s163 + $0xa8] sm:$0xff]
        %v3706 = vld [vmem:[%s163 + $0xb0] sm:$0xff]
        %v3707 = vld [vmem:[%s163 + $0xb8] sm:$0xff]
        %v3708 = vld [vmem:[%s163 + $0xc0] sm:$0xff]
        %v3709 = vld [vmem:[%s163 + $0xc8] sm:$0xff]
        %v3710 = vld [vmem:[%s163 + $0xd0] sm:$0xff]
        %v3711 = vld [vmem:[%s163 + $0xd8] sm:$0xff]
        %v3712 = vld [vmem:[%s163 + $0xe0] sm:$0xff]
        %v3713 = vld [vmem:[%s163 + $0xe8] sm:$0xff]
        %v3714 = vld [vmem:[%s163 + $0xf0] sm:$0xff]
        %v3715 = vld [vmem:[%s163 + $0xf8] sm:$0xff]
        %v3716 = vld [vmem:[%s3293] sm:$0x8]
        %v3717 = vld [vmem:[%s3293 + $0x4] sm:$0xf]
        %v3718 = vld [vmem:[%s3293 + $0x8] sm:$0x7]
        %v3719 = vld [vmem:[%s3293 + $0x10] sm:$0x8]
        %v3720 = vld [vmem:[%s3293 + $0x14] sm:$0xf]
        %v3721 = vld [vmem:[%s3293 + $0x18] sm:$0x7]
        %v3722 = vld [vmem:[%s3293 + $0x20] sm:$0x8]
        %v3723 = vld [vmem:[%s3293 + $0x24] sm:$0xf]
        %v3724 = vld [vmem:[%s3293 + $0x28] sm:$0x7]
        %v3725 = vld [vmem:[%s3293 + $0x30] sm:$0x8]
        %v3726 = vld [vmem:[%s3293 + $0x34] sm:$0xf]
        %v3727 = vld [vmem:[%s3293 + $0x38] sm:$0x7]
        %v3728 = vld [vmem:[%s3293 + $0x40] sm:$0x8]
        %v3729 = vld [vmem:[%s3293 + $0x44] sm:$0xf]
        %v3730 = vld [vmem:[%s3293 + $0x48] sm:$0x7]
        %v3731 = vld [vmem:[%s3293 + $0x50] sm:$0x8]
        %v3732 = vld [vmem:[%s3293 + $0x54] sm:$0xf]
        %v3733 = vld [vmem:[%s3293 + $0x58] sm:$0x7]
        %v3734 = vld [vmem:[%s3293 + $0x60] sm:$0x8]
        %v3735 = vld [vmem:[%s3293 + $0x64] sm:$0xf]
        %v3736 = vld [vmem:[%s3293 + $0x68] sm:$0x7]
        %v3737 = vld [vmem:[%s3293 + $0x70] sm:$0x8]
        %v3738 = vld [vmem:[%s3293 + $0x74] sm:$0xf]
        %v3739 = vld [vmem:[%s3293 + $0x78] sm:$0x7]
        %v3740 = vld [vmem:[%s3293 + $0x80] sm:$0x8]
        %v3741 = vld [vmem:[%s3293 + $0x84] sm:$0xf]
        %v3742 = vld [vmem:[%s3293 + $0x88] sm:$0x7]
        %v3743 = vld [vmem:[%s3293 + $0x90] sm:$0x8]
        %v3744 = vld [vmem:[%s3293 + $0x94] sm:$0xf]
        %v3745 = vld [vmem:[%s3293 + $0x98] sm:$0x7]
        %v3746 = vld [vmem:[%s3293 + $0xa0] sm:$0x8]
        %v3747 = vld [vmem:[%s3293 + $0xa4] sm:$0xf]
        %v3748 = vld [vmem:[%s3293 + $0xa8] sm:$0x7]
        %v3749 = vld [vmem:[%s3293 + $0xb0] sm:$0x8]
        %v3750 = vld [vmem:[%s3293 + $0xb4] sm:$0xf]
        %v3751 = vld [vmem:[%s3293 + $0xb8] sm:$0x7]
        %v3752 = vld [vmem:[%s3293 + $0xc0] sm:$0x8]
        %v3753 = vld [vmem:[%s3293 + $0xc4] sm:$0xf]
        %v3754 = vld [vmem:[%s3293 + $0xc8] sm:$0x7]
        %v3755 = vld [vmem:[%s3293 + $0xd0] sm:$0x8]
        %v3756 = vld [vmem:[%s3293 + $0xd4] sm:$0xf]
        %v3757 = vld [vmem:[%s3293 + $0xd8] sm:$0x7]
        %v3758 = vld [vmem:[%s3293 + $0xe0] sm:$0x8]
        %v3759 = vld [vmem:[%s3293 + $0xe4] sm:$0xf]
        %v3760 = vld [vmem:[%s3293 + $0xe8] sm:$0x7]
        %v3761 = vld [vmem:[%s3293 + $0xf0] sm:$0x8]
        %v3762 = vld [vmem:[%s3293 + $0xf4] sm:$0xf]
        %v3763 = vld [vmem:[%s3293 + $0xf8] sm:$0x7]
        %v3812 = vrot.slane %v3716, 7
        %v3813 = vrot.slane %v3812, 4
        %v3814 = vrot.slane %v3717, 7
        %v3815 = vsel %vm698, %v3813, %v3814
        %v3816 = vrot.slane %v3814, 4
        %v3817 = vrot.slane %v3718, 7
        %v3818 = vsel %vm698, %v3816, %v3817
        %v3819 = vrot.slane %v3719, 7
        %v3820 = vrot.slane %v3819, 4
        %v3821 = vrot.slane %v3720, 7
        %v3822 = vsel %vm698, %v3820, %v3821
        %v3823 = vrot.slane %v3821, 4
        %v3824 = vrot.slane %v3721, 7
        %v3825 = vsel %vm698, %v3823, %v3824
        %v3826 = vrot.slane %v3722, 7
        %v3827 = vrot.slane %v3826, 4
        %v3828 = vrot.slane %v3723, 7
        %v3829 = vsel %vm698, %v3827, %v3828
        %v3830 = vrot.slane %v3828, 4
        %v3831 = vrot.slane %v3724, 7
        %v3832 = vsel %vm698, %v3830, %v3831
        %v3833 = vrot.slane %v3725, 7
        %v3834 = vrot.slane %v3833, 4
        %v3835 = vrot.slane %v3726, 7
        %v3836 = vsel %vm698, %v3834, %v3835
        %v3837 = vrot.slane %v3835, 4
        %v3838 = vrot.slane %v3727, 7
        %v3839 = vsel %vm698, %v3837, %v3838
        %v3840 = vrot.slane %v3728, 7
        %v3841 = vrot.slane %v3840, 4
        %v3842 = vrot.slane %v3729, 7
        %v3843 = vsel %vm698, %v3841, %v3842
        %v3844 = vrot.slane %v3842, 4
        %v3845 = vrot.slane %v3730, 7
        %v3846 = vsel %vm698, %v3844, %v3845
        %v3847 = vrot.slane %v3731, 7
        %v3848 = vrot.slane %v3847, 4
        %v3849 = vrot.slane %v3732, 7
        %v3850 = vsel %vm698, %v3848, %v3849
        %v3851 = vrot.slane %v3849, 4
        %v3852 = vrot.slane %v3733, 7
        %v3853 = vsel %vm698, %v3851, %v3852
        %v3854 = vrot.slane %v3734, 7
        %v3855 = vrot.slane %v3854, 4
        %v3856 = vrot.slane %v3735, 7
        %v3857 = vsel %vm698, %v3855, %v3856
        %v3858 = vrot.slane %v3856, 4
        %v3859 = vrot.slane %v3736, 7
        %v3860 = vsel %vm698, %v3858, %v3859
        %v3861 = vrot.slane %v3737, 7
        %v3862 = vrot.slane %v3861, 4
        %v3863 = vrot.slane %v3738, 7
        %v3864 = vsel %vm698, %v3862, %v3863
        %v3865 = vrot.slane %v3863, 4
        %v3866 = vrot.slane %v3739, 7
        %v3867 = vsel %vm698, %v3865, %v3866
        %v3868 = vrot.slane %v3740, 7
        %v3869 = vrot.slane %v3868, 4
        %v3870 = vrot.slane %v3741, 7
        %v3871 = vsel %vm698, %v3869, %v3870
        %v3872 = vrot.slane %v3870, 4
        %v3873 = vrot.slane %v3742, 7
        %v3874 = vsel %vm698, %v3872, %v3873
        %v3875 = vrot.slane %v3743, 7
        %v3876 = vrot.slane %v3875, 4
        %v3877 = vrot.slane %v3744, 7
        %v3878 = vsel %vm698, %v3876, %v3877
        %v3879 = vrot.slane %v3877, 4
        %v3880 = vrot.slane %v3745, 7
        %v3881 = vsel %vm698, %v3879, %v3880
        %v3882 = vrot.slane %v3746, 7
        %v3883 = vrot.slane %v3882, 4
        %v3884 = vrot.slane %v3747, 7
        %v3885 = vsel %vm698, %v3883, %v3884
        %v3886 = vrot.slane %v3884, 4
        %v3887 = vrot.slane %v3748, 7
        %v3888 = vsel %vm698, %v3886, %v3887
        %v3889 = vrot.slane %v3749, 7
        %v3890 = vrot.slane %v3889, 4
        %v3891 = vrot.slane %v3750, 7
        %v3892 = vsel %vm698, %v3890, %v3891
        %v3893 = vrot.slane %v3891, 4
        %v3894 = vrot.slane %v3751, 7
        %v3895 = vsel %vm698, %v3893, %v3894
        %v3896 = vrot.slane %v3752, 7
        %v3897 = vrot.slane %v3896, 4
        %v3898 = vrot.slane %v3753, 7
        %v3899 = vsel %vm698, %v3897, %v3898
        %v3900 = vrot.slane %v3898, 4
        %v3901 = vrot.slane %v3754, 7
        %v3902 = vsel %vm698, %v3900, %v3901
        %v3903 = vrot.slane %v3755, 7
        %v3904 = vrot.slane %v3903, 4
        %v3905 = vrot.slane %v3756, 7
        %v3906 = vsel %vm698, %v3904, %v3905
        %v3907 = vrot.slane %v3905, 4
        %v3908 = vrot.slane %v3757, 7
        %v3909 = vsel %vm698, %v3907, %v3908
        %v3910 = vrot.slane %v3758, 7
        %v3911 = vrot.slane %v3910, 4
        %v3912 = vrot.slane %v3759, 7
        %v3913 = vsel %vm698, %v3911, %v3912
        %v3914 = vrot.slane %v3912, 4
        %v3915 = vrot.slane %v3760, 7
        %v3916 = vsel %vm698, %v3914, %v3915
        %v3917 = vrot.slane %v3761, 7
        %v3918 = vrot.slane %v3917, 4
        %v3919 = vrot.slane %v3762, 7
        %v3920 = vsel %vm698, %v3918, %v3919
        %v3921 = vrot.slane %v3919, 4
        %v3922 = vrot.slane %v3763, 7
        %v3923 = vsel %vm698, %v3921, %v3922
        %s3924 = scalar_lea.vmem %s1, 14
        %v3925 = vld [vmem:[%s3924] sm:$0x3]
        %v3926 = vunpack.c.l.b16 %v3815
        %v3927 = vunpack.c.l.b16 %v3818
        %v3928 = vunpack.c.l.b16 %v3822
        %v3929 = vunpack.c.l.b16 %v3825
        %v3930 = vunpack.c.l.b16 %v3829
        %v3931 = vunpack.c.l.b16 %v3832
        %v3932 = vunpack.c.l.b16 %v3836
        %v3933 = vunpack.c.l.b16 %v3839
        %v3934 = vunpack.c.l.b16 %v3843
        %v3935 = vunpack.c.l.b16 %v3846
        %v3936 = vunpack.c.l.b16 %v3850
        %v3937 = vunpack.c.l.b16 %v3853
        %v3938 = vunpack.c.l.b16 %v3857
        %v3939 = vunpack.c.l.b16 %v3860
        %v3940 = vunpack.c.l.b16 %v3864
        %v3941 = vunpack.c.l.b16 %v3867
        %v3942 = vunpack.c.l.b16 %v3871
        %v3943 = vunpack.c.l.b16 %v3874
        %v3944 = vunpack.c.l.b16 %v3878
        %v3945 = vunpack.c.l.b16 %v3881
        %v3946 = vunpack.c.l.b16 %v3885
        %v3947 = vunpack.c.l.b16 %v3888
        %v3948 = vunpack.c.l.b16 %v3892
        %v3949 = vunpack.c.l.b16 %v3895
        %v3950 = vunpack.c.l.b16 %v3899
        %v3951 = vunpack.c.l.b16 %v3902
        %v3952 = vunpack.c.l.b16 %v3906
        %v3953 = vunpack.c.l.b16 %v3909
        %v3954 = vunpack.c.l.b16 %v3913
        %v3955 = vunpack.c.l.b16 %v3916
        %v3956 = vunpack.c.l.b16 %v3920
        %v3957 = vunpack.c.l.b16 %v3923
        %v3958 = vpack.c.b16 %v3927, %v3926
        %v3959 = vpack.c.b16 %v3929, %v3928
        %v3960 = vpack.c.b16 %v3931, %v3930
        %v3961 = vpack.c.b16 %v3933, %v3932
        %v3962 = vpack.c.b16 %v3935, %v3934
        %v3963 = vpack.c.b16 %v3937, %v3936
        %v3964 = vpack.c.b16 %v3939, %v3938
        %v3965 = vpack.c.b16 %v3941, %v3940
        %v3966 = vpack.c.b16 %v3943, %v3942
        %v3967 = vpack.c.b16 %v3945, %v3944
        %v3968 = vpack.c.b16 %v3947, %v3946
        %v3969 = vpack.c.b16 %v3949, %v3948
        %v3970 = vpack.c.b16 %v3951, %v3950
        %v3971 = vpack.c.b16 %v3953, %v3952
        %v3972 = vpack.c.b16 %v3955, %v3954
        %v3973 = vpack.c.b16 %v3957, %v3956
        %v3975 = vsel %vm284, %v3958, 0
        %v3978 = vsel %vm284, %v3959, 0
        %v3981 = vsel %vm284, %v3960, 0
        %v3984 = vsel %vm284, %v3961, 0
        %v3987 = vsel %vm284, %v3962, 0
        %v3990 = vsel %vm284, %v3963, 0
        %v3993 = vsel %vm284, %v3964, 0
        %v3996 = vsel %vm284, %v3965, 0
        %v3999 = vsel %vm284, %v3966, 0
        %v4002 = vsel %vm284, %v3967, 0
        %v4005 = vsel %vm284, %v3968, 0
        %v4008 = vsel %vm284, %v3969, 0
        %v4011 = vsel %vm284, %v3970, 0
        %v4014 = vsel %vm284, %v3971, 0
        %v4017 = vsel %vm284, %v3972, 0
        %v4020 = vsel %vm284, %v3973, 0
        %v4023 = vsel %vm333, %v3925, 0
        %4025 = vmatprep.subr.bf16.mxu0 0
        %4026 = vmatpush1.bf16.msra.mxu0 %v4023
        %4027 = vmatprep.subr.bf16.mxu0 0
        %4028 = vmatpush1.bf16.msra.mxu0 0
        %4029 = vmatprep.subr.bf16.mxu0 0
        %4030 = vmatpush1.bf16.msra.mxu0 0
        %4031 = vmatprep.subr.bf16.mxu0 0
        %4032 = vmatpush1.bf16.msra.mxu0 0
        %4033 = vmatprep.subr.bf16.mxu0 0
        %4034 = vmatpush1.bf16.msra.mxu0 0
        %4035 = vmatprep.subr.bf16.mxu0 0
        %4036 = vmatpush1.bf16.msra.mxu0 0
        %4037 = vmatprep.subr.bf16.mxu0 0
        %4038 = vmatpush1.bf16.msra.mxu0 0
        %4039 = vmatprep.subr.bf16.mxu0 0
        %4040 = vmatpush1.bf16.msra.mxu0 0
        %4041 = vmatprep.subr.bf16.mxu0 0
        %4042 = vmatpush1.bf16.msra.mxu0 0
        %4043 = vmatprep.subr.bf16.mxu0 0
        %4044 = vmatpush1.bf16.msra.mxu0 0
        %4045 = vmatprep.subr.bf16.mxu0 0
        %4046 = vmatpush1.bf16.msra.mxu0 0
        %4047 = vmatprep.subr.bf16.mxu0 0
        %4048 = vmatpush1.bf16.msra.mxu0 0
        %4049 = vmatprep.subr.bf16.mxu0 0
        %4050 = vmatpush1.bf16.msra.mxu0 0
        %4051 = vmatprep.subr.bf16.mxu0 0
        %4052 = vmatpush1.bf16.msra.mxu0 0
        %4053 = vmatprep.subr.bf16.mxu0 0
        %4054 = vmatpush1.bf16.msra.mxu0 0
        %4055 = vmatprep.subr.bf16.mxu0 0
        %4056 = vmatpush1.bf16.msra.mxu0 0
        %4057 = vmatprep.mubr.bf16.mxu0 0
        %4058 = vmatmul.mubr.bf16.gmra.mrb[0].mxu0 %v3975
        %v4059 = vpop.f32.mrb[0].mxu0
        %v4060 = vadd.f32 0.0, %v4059
        %v4061 = vpop.f32.mrb[0].mxu0
        %v4062 = vpop.f32.mrb[0].mxu0
        %v4063 = vadd.f32 0.0, %v4062
        %v4064 = vpop.f32.mrb[0].mxu0
        %4065 = vmatprep.mubr.bf16.mxu0 0
        %4066 = vmatmul.mubr.bf16.gmra.mrb[0].mxu0 %v3978
        %v4067 = vpop.f32.mrb[0].mxu0
        %v4068 = vadd.f32 0.0, %v4067
        %v4069 = vpop.f32.mrb[0].mxu0
        %v4070 = vpop.f32.mrb[0].mxu0
        %v4071 = vadd.f32 0.0, %v4070
        %v4072 = vpop.f32.mrb[0].mxu0
        %4073 = vmatprep.mubr.bf16.mxu0 0
        %4074 = vmatmul.mubr.bf16.gmra.mrb[0].mxu0 %v3981
        %v4075 = vpop.f32.mrb[0].mxu0
        %v4076 = vadd.f32 0.0, %v4075
        %v4077 = vpop.f32.mrb[0].mxu0
        %v4078 = vpop.f32.mrb[0].mxu0
        %v4079 = vadd.f32 0.0, %v4078
        %v4080 = vpop.f32.mrb[0].mxu0
        %4081 = vmatprep.mubr.bf16.mxu0 0
        %4082 = vmatmul.mubr.bf16.gmra.mrb[0].mxu0 %v3984
        %v4083 = vpop.f32.mrb[0].mxu0
        %v4084 = vadd.f32 0.0, %v4083
        %v4085 = vpop.f32.mrb[0].mxu0
        %v4086 = vpop.f32.mrb[0].mxu0
        %v4087 = vadd.f32 0.0, %v4086
        %v4088 = vpop.f32.mrb[0].mxu0
        %4089 = vmatprep.mubr.bf16.mxu0 0
        %4090 = vmatmul.mubr.bf16.gmra.mrb[0].mxu0 %v3987
        %v4091 = vpop.f32.mrb[0].mxu0
        %v4092 = vadd.f32 0.0, %v4091
        %v4093 = vpop.f32.mrb[0].mxu0
        %v4094 = vpop.f32.mrb[0].mxu0
        %v4095 = vadd.f32 0.0, %v4094
        %v4096 = vpop.f32.mrb[0].mxu0
        %4097 = vmatprep.mubr.bf16.mxu0 0
        %4098 = vmatmul.mubr.bf16.gmra.mrb[0].mxu0 %v3990
        %v4099 = vpop.f32.mrb[0].mxu0
        %v4100 = vadd.f32 0.0, %v4099
        %v4101 = vpop.f32.mrb[0].mxu0
        %v4102 = vpop.f32.mrb[0].mxu0
        %v4103 = vadd.f32 0.0, %v4102
        %v4104 = vpop.f32.mrb[0].mxu0
        %4105 = vmatprep.mubr.bf16.mxu0 0
        %4106 = vmatmul.mubr.bf16.gmra.mrb[0].mxu0 %v3993
        %v4107 = vpop.f32.mrb[0].mxu0
        %v4108 = vadd.f32 0.0, %v4107
        %v4109 = vpop.f32.mrb[0].mxu0
        %v4110 = vpop.f32.mrb[0].mxu0
        %v4111 = vadd.f32 0.0, %v4110
        %v4112 = vpop.f32.mrb[0].mxu0
        %4113 = vmatprep.mubr.bf16.mxu0 0
        %4114 = vmatmul.mubr.bf16.gmra.mrb[0].mxu0 %v3996
        %v4115 = vpop.f32.mrb[0].mxu0
        %v4116 = vadd.f32 0.0, %v4115
        %v4117 = vpop.f32.mrb[0].mxu0
        %v4118 = vpop.f32.mrb[0].mxu0
        %v4119 = vadd.f32 0.0, %v4118
        %v4120 = vpop.f32.mrb[0].mxu0
        %4121 = vmatprep.mubr.bf16.mxu0 0
        %4122 = vmatmul.mubr.bf16.gmra.mrb[0].mxu0 %v3999
        %v4123 = vpop.f32.mrb[0].mxu0
        %v4124 = vadd.f32 0.0, %v4123
        %v4125 = vpop.f32.mrb[0].mxu0
        %v4126 = vpop.f32.mrb[0].mxu0
        %v4127 = vadd.f32 0.0, %v4126
        %v4128 = vpop.f32.mrb[0].mxu0
        %4129 = vmatprep.mubr.bf16.mxu0 0
        %4130 = vmatmul.mubr.bf16.gmra.mrb[0].mxu0 %v4002
        %v4131 = vpop.f32.mrb[0].mxu0
        %v4132 = vadd.f32 0.0, %v4131
        %v4133 = vpop.f32.mrb[0].mxu0
        %v4134 = vpop.f32.mrb[0].mxu0
        %v4135 = vadd.f32 0.0, %v4134
        %v4136 = vpop.f32.mrb[0].mxu0
        %4137 = vmatprep.mubr.bf16.mxu0 0
        %4138 = vmatmul.mubr.bf16.gmra.mrb[0].mxu0 %v4005
        %v4139 = vpop.f32.mrb[0].mxu0
        %v4140 = vadd.f32 0.0, %v4139
        %v4141 = vpop.f32.mrb[0].mxu0
        %v4142 = vpop.f32.mrb[0].mxu0
        %v4143 = vadd.f32 0.0, %v4142
        %v4144 = vpop.f32.mrb[0].mxu0
        %4145 = vmatprep.mubr.bf16.mxu0 0
        %4146 = vmatmul.mubr.bf16.gmra.mrb[0].mxu0 %v4008
        %v4147 = vpop.f32.mrb[0].mxu0
        %v4148 = vadd.f32 0.0, %v4147
        %v4149 = vpop.f32.mrb[0].mxu0
        %v4150 = vpop.f32.mrb[0].mxu0
        %v4151 = vadd.f32 0.0, %v4150
        %v4152 = vpop.f32.mrb[0].mxu0
        %4153 = vmatprep.mubr.bf16.mxu0 0
        %4154 = vmatmul.mubr.bf16.gmra.mrb[0].mxu0 %v4011
        %v4155 = vpop.f32.mrb[0].mxu0
        %v4156 = vadd.f32 0.0, %v4155
        %v4157 = vpop.f32.mrb[0].mxu0
        %v4158 = vpop.f32.mrb[0].mxu0
        %v4159 = vadd.f32 0.0, %v4158
        %v4160 = vpop.f32.mrb[0].mxu0
        %4161 = vmatprep.mubr.bf16.mxu0 0
        %4162 = vmatmul.mubr.bf16.gmra.mrb[0].mxu0 %v4014
        %v4163 = vpop.f32.mrb[0].mxu0
        %v4164 = vadd.f32 0.0, %v4163
        %v4165 = vpop.f32.mrb[0].mxu0
        %v4166 = vpop.f32.mrb[0].mxu0
        %v4167 = vadd.f32 0.0, %v4166
        %v4168 = vpop.f32.mrb[0].mxu0
        %4169 = vmatprep.mubr.bf16.mxu0 0
        %4170 = vmatmul.mubr.bf16.gmra.mrb[0].mxu0 %v4017
        %v4171 = vpop.f32.mrb[0].mxu0
        %v4172 = vadd.f32 0.0, %v4171
        %v4173 = vpop.f32.mrb[0].mxu0
        %v4174 = vpop.f32.mrb[0].mxu0
        %v4175 = vadd.f32 0.0, %v4174
        %v4176 = vpop.f32.mrb[0].mxu0
        %4177 = vmatprep.mubr.bf16.mxu0 0
        %4178 = vmatmul.mubr.bf16.gmra.mrb[0].mxu0 %v4020
        %v4179 = vpop.f32.mrb[0].mxu0
        %v4180 = vadd.f32 0.0, %v4179
        %v4181 = vpop.f32.mrb[0].mxu0
        %v4182 = vpop.f32.mrb[0].mxu0
        %v4183 = vadd.f32 0.0, %v4182
        %v4184 = vpop.f32.mrb[0].mxu0
        %4185 = vdwg.mxu0
        %v4186 = vadd.f32 %v3684, %v4060
        %v4187 = vadd.f32 %v3685, %v4063
        %v4188 = vadd.f32 %v3686, %v4068
        %v4189 = vadd.f32 %v3687, %v4071
        %v4190 = vadd.f32 %v3688, %v4076
        %v4191 = vadd.f32 %v3689, %v4079
        %v4192 = vadd.f32 %v3690, %v4084
        %v4193 = vadd.f32 %v3691, %v4087
        %v4194 = vadd.f32 %v3692, %v4092
        %v4195 = vadd.f32 %v3693, %v4095
        %v4196 = vadd.f32 %v3694, %v4100
        %v4197 = vadd.f32 %v3695, %v4103
        %v4198 = vadd.f32 %v3696, %v4108
        %v4199 = vadd.f32 %v3697, %v4111
        %v4200 = vadd.f32 %v3698, %v4116
        %v4201 = vadd.f32 %v3699, %v4119
        %v4202 = vadd.f32 %v3700, %v4124
        %v4203 = vadd.f32 %v3701, %v4127
        %v4204 = vadd.f32 %v3702, %v4132
        %v4205 = vadd.f32 %v3703, %v4135
        %v4206 = vadd.f32 %v3704, %v4140
        %v4207 = vadd.f32 %v3705, %v4143
        %v4208 = vadd.f32 %v3706, %v4148
        %v4209 = vadd.f32 %v3707, %v4151
        %v4210 = vadd.f32 %v3708, %v4156
        %v4211 = vadd.f32 %v3709, %v4159
        %v4212 = vadd.f32 %v3710, %v4164
        %v4213 = vadd.f32 %v3711, %v4167
        %v4214 = vadd.f32 %v3712, %v4172
        %v4215 = vadd.f32 %v3713, %v4175
        %v4216 = vadd.f32 %v3714, %v4180
        %v4217 = vadd.f32 %v3715, %v4183
        %4218 = vst [vmem:[%s163] sm:$0xff] %v4186
        %4219 = vst [vmem:[%s163 + $0x8] sm:$0xff] %v4187
        %4220 = vst [vmem:[%s163 + $0x10] sm:$0xff] %v4188
        %4221 = vst [vmem:[%s163 + $0x18] sm:$0xff] %v4189
        %4222 = vst [vmem:[%s163 + $0x20] sm:$0xff] %v4190
        %4223 = vst [vmem:[%s163 + $0x28] sm:$0xff] %v4191
        %4224 = vst [vmem:[%s163 + $0x30] sm:$0xff] %v4192
        %4225 = vst [vmem:[%s163 + $0x38] sm:$0xff] %v4193
        %4226 = vst [vmem:[%s163 + $0x40] sm:$0xff] %v4194
        %4227 = vst [vmem:[%s163 + $0x48] sm:$0xff] %v4195
        %4228 = vst [vmem:[%s163 + $0x50] sm:$0xff] %v4196
        %4229 = vst [vmem:[%s163 + $0x58] sm:$0xff] %v4197
        %4230 = vst [vmem:[%s163 + $0x60] sm:$0xff] %v4198
        %4231 = vst [vmem:[%s163 + $0x68] sm:$0xff] %v4199
        %4232 = vst [vmem:[%s163 + $0x70] sm:$0xff] %v4200
        %4233 = vst [vmem:[%s163 + $0x78] sm:$0xff] %v4201
        %4234 = vst [vmem:[%s163 + $0x80] sm:$0xff] %v4202
        %4235 = vst [vmem:[%s163 + $0x88] sm:$0xff] %v4203
        %4236 = vst [vmem:[%s163 + $0x90] sm:$0xff] %v4204
        %4237 = vst [vmem:[%s163 + $0x98] sm:$0xff] %v4205
        %4238 = vst [vmem:[%s163 + $0xa0] sm:$0xff] %v4206
        %4239 = vst [vmem:[%s163 + $0xa8] sm:$0xff] %v4207
        %4240 = vst [vmem:[%s163 + $0xb0] sm:$0xff] %v4208
        %4241 = vst [vmem:[%s163 + $0xb8] sm:$0xff] %v4209
        %4242 = vst [vmem:[%s163 + $0xc0] sm:$0xff] %v4210
        %4243 = vst [vmem:[%s163 + $0xc8] sm:$0xff] %v4211
        %4244 = vst [vmem:[%s163 + $0xd0] sm:$0xff] %v4212
        %4245 = vst [vmem:[%s163 + $0xd8] sm:$0xff] %v4213
        %4246 = vst [vmem:[%s163 + $0xe0] sm:$0xff] %v4214
        %4247 = vst [vmem:[%s163 + $0xe8] sm:$0xff] %v4215
        %4248 = vst [vmem:[%s163 + $0xf0] sm:$0xff] %v4216
        %4249 = vst [vmem:[%s163 + $0xf8] sm:$0xff] %v4217
        %v4250 = vld [vmem:[%s163] sm:$0xff]
        %v4251 = vld [vmem:[%s163 + $0x8] sm:$0xff]
        %v4252 = vld [vmem:[%s163 + $0x10] sm:$0xff]
        %v4253 = vld [vmem:[%s163 + $0x18] sm:$0xff]
        %v4254 = vld [vmem:[%s163 + $0x20] sm:$0xff]
        %v4255 = vld [vmem:[%s163 + $0x28] sm:$0xff]
        %v4256 = vld [vmem:[%s163 + $0x30] sm:$0xff]
        %v4257 = vld [vmem:[%s163 + $0x38] sm:$0xff]
        %v4258 = vld [vmem:[%s163 + $0x40] sm:$0xff]
        %v4259 = vld [vmem:[%s163 + $0x48] sm:$0xff]
        %v4260 = vld [vmem:[%s163 + $0x50] sm:$0xff]
        %v4261 = vld [vmem:[%s163 + $0x58] sm:$0xff]
        %v4262 = vld [vmem:[%s163 + $0x60] sm:$0xff]
        %v4263 = vld [vmem:[%s163 + $0x68] sm:$0xff]
        %v4264 = vld [vmem:[%s163 + $0x70] sm:$0xff]
        %v4265 = vld [vmem:[%s163 + $0x78] sm:$0xff]
        %v4266 = vld [vmem:[%s163 + $0x80] sm:$0xff]
        %v4267 = vld [vmem:[%s163 + $0x88] sm:$0xff]
        %v4268 = vld [vmem:[%s163 + $0x90] sm:$0xff]
        %v4269 = vld [vmem:[%s163 + $0x98] sm:$0xff]
        %v4270 = vld [vmem:[%s163 + $0xa0] sm:$0xff]
        %v4271 = vld [vmem:[%s163 + $0xa8] sm:$0xff]
        %v4272 = vld [vmem:[%s163 + $0xb0] sm:$0xff]
        %v4273 = vld [vmem:[%s163 + $0xb8] sm:$0xff]
        %v4274 = vld [vmem:[%s163 + $0xc0] sm:$0xff]
        %v4275 = vld [vmem:[%s163 + $0xc8] sm:$0xff]
        %v4276 = vld [vmem:[%s163 + $0xd0] sm:$0xff]
        %v4277 = vld [vmem:[%s163 + $0xd8] sm:$0xff]
        %v4278 = vld [vmem:[%s163 + $0xe0] sm:$0xff]
        %v4279 = vld [vmem:[%s163 + $0xe8] sm:$0xff]
        %v4280 = vld [vmem:[%s163 + $0xf0] sm:$0xff]
        %v4281 = vld [vmem:[%s163 + $0xf8] sm:$0xff]
        %v4282 = vld [vmem:[%s3293 + $0x4] sm:$0xc]
        %v4283 = vld [vmem:[%s3293 + $0x8] sm:$0xf]
        %v4284 = vld [vmem:[%s3293 + $0xc] sm:$0x3]
        %v4285 = vld [vmem:[%s3293 + $0x14] sm:$0xc]
        %v4286 = vld [vmem:[%s3293 + $0x18] sm:$0xf]
        %v4287 = vld [vmem:[%s3293 + $0x1c] sm:$0x3]
        %v4288 = vld [vmem:[%s3293 + $0x24] sm:$0xc]
        %v4289 = vld [vmem:[%s3293 + $0x28] sm:$0xf]
        %v4290 = vld [vmem:[%s3293 + $0x2c] sm:$0x3]
        %v4291 = vld [vmem:[%s3293 + $0x34] sm:$0xc]
        %v4292 = vld [vmem:[%s3293 + $0x38] sm:$0xf]
        %v4293 = vld [vmem:[%s3293 + $0x3c] sm:$0x3]
        %v4294 = vld [vmem:[%s3293 + $0x44] sm:$0xc]
        %v4295 = vld [vmem:[%s3293 + $0x48] sm:$0xf]
        %v4296 = vld [vmem:[%s3293 + $0x4c] sm:$0x3]
        %v4297 = vld [vmem:[%s3293 + $0x54] sm:$0xc]
        %v4298 = vld [vmem:[%s3293 + $0x58] sm:$0xf]
        %v4299 = vld [vmem:[%s3293 + $0x5c] sm:$0x3]
        %v4300 = vld [vmem:[%s3293 + $0x64] sm:$0xc]
        %v4301 = vld [vmem:[%s3293 + $0x68] sm:$0xf]
        %v4302 = vld [vmem:[%s3293 + $0x6c] sm:$0x3]
        %v4303 = vld [vmem:[%s3293 + $0x74] sm:$0xc]
        %v4304 = vld [vmem:[%s3293 + $0x78] sm:$0xf]
        %v4305 = vld [vmem:[%s3293 + $0x7c] sm:$0x3]
        %v4306 = vld [vmem:[%s3293 + $0x84] sm:$0xc]
        %v4307 = vld [vmem:[%s3293 + $0x88] sm:$0xf]
        %v4308 = vld [vmem:[%s3293 + $0x8c] sm:$0x3]
        %v4309 = vld [vmem:[%s3293 + $0x94] sm:$0xc]
        %v4310 = vld [vmem:[%s3293 + $0x98] sm:$0xf]
        %v4311 = vld [vmem:[%s3293 + $0x9c] sm:$0x3]
        %v4312 = vld [vmem:[%s3293 + $0xa4] sm:$0xc]
        %v4313 = vld [vmem:[%s3293 + $0xa8] sm:$0xf]
        %v4314 = vld [vmem:[%s3293 + $0xac] sm:$0x3]
        %v4315 = vld [vmem:[%s3293 + $0xb4] sm:$0xc]
        %v4316 = vld [vmem:[%s3293 + $0xb8] sm:$0xf]
        %v4317 = vld [vmem:[%s3293 + $0xbc] sm:$0x3]
        %v4318 = vld [vmem:[%s3293 + $0xc4] sm:$0xc]
        %v4319 = vld [vmem:[%s3293 + $0xc8] sm:$0xf]
        %v4320 = vld [vmem:[%s3293 + $0xcc] sm:$0x3]
        %v4321 = vld [vmem:[%s3293 + $0xd4] sm:$0xc]
        %v4322 = vld [vmem:[%s3293 + $0xd8] sm:$0xf]
        %v4323 = vld [vmem:[%s3293 + $0xdc] sm:$0x3]
        %v4324 = vld [vmem:[%s3293 + $0xe4] sm:$0xc]
        %v4325 = vld [vmem:[%s3293 + $0xe8] sm:$0xf]
        %v4326 = vld [vmem:[%s3293 + $0xec] sm:$0x3]
        %v4327 = vld [vmem:[%s3293 + $0xf4] sm:$0xc]
        %v4328 = vld [vmem:[%s3293 + $0xf8] sm:$0xf]
        %v4329 = vld [vmem:[%s3293 + $0xfc] sm:$0x3]
        %v4378 = vrot.slane %v4282, 6
        %v4379 = vrot.slane %v4378, 4
        %v4380 = vrot.slane %v4283, 6
        %v4381 = vsel %vm1267, %v4379, %v4380
        %v4382 = vrot.slane %v4380, 4
        %v4383 = vrot.slane %v4284, 6
        %v4384 = vsel %vm1267, %v4382, %v4383
        %v4385 = vrot.slane %v4285, 6
        %v4386 = vrot.slane %v4385, 4
        %v4387 = vrot.slane %v4286, 6
        %v4388 = vsel %vm1267, %v4386, %v4387
        %v4389 = vrot.slane %v4387, 4
        %v4390 = vrot.slane %v4287, 6
        %v4391 = vsel %vm1267, %v4389, %v4390
        %v4392 = vrot.slane %v4288, 6
        %v4393 = vrot.slane %v4392, 4
        %v4394 = vrot.slane %v4289, 6
        %v4395 = vsel %vm1267, %v4393, %v4394
        %v4396 = vrot.slane %v4394, 4
        %v4397 = vrot.slane %v4290, 6
        %v4398 = vsel %vm1267, %v4396, %v4397
        %v4399 = vrot.slane %v4291, 6
        %v4400 = vrot.slane %v4399, 4
        %v4401 = vrot.slane %v4292, 6
        %v4402 = vsel %vm1267, %v4400, %v4401
        %v4403 = vrot.slane %v4401, 4
        %v4404 = vrot.slane %v4293, 6
        %v4405 = vsel %vm1267, %v4403, %v4404
        %v4406 = vrot.slane %v4294, 6
        %v4407 = vrot.slane %v4406, 4
        %v4408 = vrot.slane %v4295, 6
        %v4409 = vsel %vm1267, %v4407, %v4408
        %v4410 = vrot.slane %v4408, 4
        %v4411 = vrot.slane %v4296, 6
        %v4412 = vsel %vm1267, %v4410, %v4411
        %v4413 = vrot.slane %v4297, 6
        %v4414 = vrot.slane %v4413, 4
        %v4415 = vrot.slane %v4298, 6
        %v4416 = vsel %vm1267, %v4414, %v4415
        %v4417 = vrot.slane %v4415, 4
        %v4418 = vrot.slane %v4299, 6
        %v4419 = vsel %vm1267, %v4417, %v4418
        %v4420 = vrot.slane %v4300, 6
        %v4421 = vrot.slane %v4420, 4
        %v4422 = vrot.slane %v4301, 6
        %v4423 = vsel %vm1267, %v4421, %v4422
        %v4424 = vrot.slane %v4422, 4
        %v4425 = vrot.slane %v4302, 6
        %v4426 = vsel %vm1267, %v4424, %v4425
        %v4427 = vrot.slane %v4303, 6
        %v4428 = vrot.slane %v4427, 4
        %v4429 = vrot.slane %v4304, 6
        %v4430 = vsel %vm1267, %v4428, %v4429
        %v4431 = vrot.slane %v4429, 4
        %v4432 = vrot.slane %v4305, 6
        %v4433 = vsel %vm1267, %v4431, %v4432
        %v4434 = vrot.slane %v4306, 6
        %v4435 = vrot.slane %v4434, 4
        %v4436 = vrot.slane %v4307, 6
        %v4437 = vsel %vm1267, %v4435, %v4436
        %v4438 = vrot.slane %v4436, 4
        %v4439 = vrot.slane %v4308, 6
        %v4440 = vsel %vm1267, %v4438, %v4439
        %v4441 = vrot.slane %v4309, 6
        %v4442 = vrot.slane %v4441, 4
        %v4443 = vrot.slane %v4310, 6
        %v4444 = vsel %vm1267, %v4442, %v4443
        %v4445 = vrot.slane %v4443, 4
        %v4446 = vrot.slane %v4311, 6
        %v4447 = vsel %vm1267, %v4445, %v4446
        %v4448 = vrot.slane %v4312, 6
        %v4449 = vrot.slane %v4448, 4
        %v4450 = vrot.slane %v4313, 6
        %v4451 = vsel %vm1267, %v4449, %v4450
        %v4452 = vrot.slane %v4450, 4
        %v4453 = vrot.slane %v4314, 6
        %v4454 = vsel %vm1267, %v4452, %v4453
        %v4455 = vrot.slane %v4315, 6
        %v4456 = vrot.slane %v4455, 4
        %v4457 = vrot.slane %v4316, 6
        %v4458 = vsel %vm1267, %v4456, %v4457
        %v4459 = vrot.slane %v4457, 4
        %v4460 = vrot.slane %v4317, 6
        %v4461 = vsel %vm1267, %v4459, %v4460
        %v4462 = vrot.slane %v4318, 6
        %v4463 = vrot.slane %v4462, 4
        %v4464 = vrot.slane %v4319, 6
        %v4465 = vsel %vm1267, %v4463, %v4464
        %v4466 = vrot.slane %v4464, 4
        %v4467 = vrot.slane %v4320, 6
        %v4468 = vsel %vm1267, %v4466, %v4467
        %v4469 = vrot.slane %v4321, 6
        %v4470 = vrot.slane %v4469, 4
        %v4471 = vrot.slane %v4322, 6
        %v4472 = vsel %vm1267, %v4470, %v4471
        %v4473 = vrot.slane %v4471, 4
        %v4474 = vrot.slane %v4323, 6
        %v4475 = vsel %vm1267, %v4473, %v4474
        %v4476 = vrot.slane %v4324, 6
        %v4477 = vrot.slane %v4476, 4
        %v4478 = vrot.slane %v4325, 6
        %v4479 = vsel %vm1267, %v4477, %v4478
        %v4480 = vrot.slane %v4478, 4
        %v4481 = vrot.slane %v4326, 6
        %v4482 = vsel %vm1267, %v4480, %v4481
        %v4483 = vrot.slane %v4327, 6
        %v4484 = vrot.slane %v4483, 4
        %v4485 = vrot.slane %v4328, 6
        %v4486 = vsel %vm1267, %v4484, %v4485
        %v4487 = vrot.slane %v4485, 4
        %v4488 = vrot.slane %v4329, 6
        %v4489 = vsel %vm1267, %v4487, %v4488
        %s4490 = scalar_lea.vmem %s1, 16
        %v4491 = vld [vmem:[%s4490] sm:$0x3]
        %v4492 = vunpack.c.l.b16 %v4381
        %v4493 = vunpack.c.l.b16 %v4384
        %v4494 = vunpack.c.l.b16 %v4388
        %v4495 = vunpack.c.l.b16 %v4391
        %v4496 = vunpack.c.l.b16 %v4395
        %v4497 = vunpack.c.l.b16 %v4398
        %v4498 = vunpack.c.l.b16 %v4402
        %v4499 = vunpack.c.l.b16 %v4405
        %v4500 = vunpack.c.l.b16 %v4409
        %v4501 = vunpack.c.l.b16 %v4412
        %v4502 = vunpack.c.l.b16 %v4416
        %v4503 = vunpack.c.l.b16 %v4419
        %v4504 = vunpack.c.l.b16 %v4423
        %v4505 = vunpack.c.l.b16 %v4426
        %v4506 = vunpack.c.l.b16 %v4430
        %v4507 = vunpack.c.l.b16 %v4433
        %v4508 = vunpack.c.l.b16 %v4437
        %v4509 = vunpack.c.l.b16 %v4440
        %v4510 = vunpack.c.l.b16 %v4444
        %v4511 = vunpack.c.l.b16 %v4447
        %v4512 = vunpack.c.l.b16 %v4451
        %v4513 = vunpack.c.l.b16 %v4454
        %v4514 = vunpack.c.l.b16 %v4458
        %v4515 = vunpack.c.l.b16 %v4461
        %v4516 = vunpack.c.l.b16 %v4465
        %v4517 = vunpack.c.l.b16 %v4468
        %v4518 = vunpack.c.l.b16 %v4472
        %v4519 = vunpack.c.l.b16 %v4475
        %v4520 = vunpack.c.l.b16 %v4479
        %v4521 = vunpack.c.l.b16 %v4482
        %v4522 = vunpack.c.l.b16 %v4486
        %v4523 = vunpack.c.l.b16 %v4489
        %v4524 = vpack.c.b16 %v4493, %v4492
        %v4525 = vpack.c.b16 %v4495, %v4494
        %v4526 = vpack.c.b16 %v4497, %v4496
        %v4527 = vpack.c.b16 %v4499, %v4498
        %v4528 = vpack.c.b16 %v4501, %v4500
        %v4529 = vpack.c.b16 %v4503, %v4502
        %v4530 = vpack.c.b16 %v4505, %v4504
        %v4531 = vpack.c.b16 %v4507, %v4506
        %v4532 = vpack.c.b16 %v4509, %v4508
        %v4533 = vpack.c.b16 %v4511, %v4510
        %v4534 = vpack.c.b16 %v4513, %v4512
        %v4535 = vpack.c.b16 %v4515, %v4514
        %v4536 = vpack.c.b16 %v4517, %v4516
        %v4537 = vpack.c.b16 %v4519, %v4518
        %v4538 = vpack.c.b16 %v4521, %v4520
        %v4539 = vpack.c.b16 %v4523, %v4522
        %v4541 = vsel %vm284, %v4524, 0
        %v4544 = vsel %vm284, %v4525, 0
        %v4547 = vsel %vm284, %v4526, 0
        %v4550 = vsel %vm284, %v4527, 0
        %v4553 = vsel %vm284, %v4528, 0
        %v4556 = vsel %vm284, %v4529, 0
        %v4559 = vsel %vm284, %v4530, 0
        %v4562 = vsel %vm284, %v4531, 0
        %v4565 = vsel %vm284, %v4532, 0
        %v4568 = vsel %vm284, %v4533, 0
        %v4571 = vsel %vm284, %v4534, 0
        %v4574 = vsel %vm284, %v4535, 0
        %v4577 = vsel %vm284, %v4536, 0
        %v4580 = vsel %vm284, %v4537, 0
        %v4583 = vsel %vm284, %v4538, 0
        %v4586 = vsel %vm284, %v4539, 0
        %v4589 = vsel %vm333, %v4491, 0
        %4591 = vmatprep.subr.bf16.mxu0 0
        %4592 = vmatpush1.bf16.msra.mxu0 %v4589
        %4593 = vmatprep.subr.bf16.mxu0 0
        %4594 = vmatpush1.bf16.msra.mxu0 0
        %4595 = vmatprep.subr.bf16.mxu0 0
        %4596 = vmatpush1.bf16.msra.mxu0 0
        %4597 = vmatprep.subr.bf16.mxu0 0
        %4598 = vmatpush1.bf16.msra.mxu0 0
        %4599 = vmatprep.subr.bf16.mxu0 0
        %4600 = vmatpush1.bf16.msra.mxu0 0
        %4601 = vmatprep.subr.bf16.mxu0 0
        %4602 = vmatpush1.bf16.msra.mxu0 0
        %4603 = vmatprep.subr.bf16.mxu0 0
        %4604 = vmatpush1.bf16.msra.mxu0 0
        %4605 = vmatprep.subr.bf16.mxu0 0
        %4606 = vmatpush1.bf16.msra.mxu0 0
        %4607 = vmatprep.subr.bf16.mxu0 0
        %4608 = vmatpush1.bf16.msra.mxu0 0
        %4609 = vmatprep.subr.bf16.mxu0 0
        %4610 = vmatpush1.bf16.msra.mxu0 0
        %4611 = vmatprep.subr.bf16.mxu0 0
        %4612 = vmatpush1.bf16.msra.mxu0 0
        %4613 = vmatprep.subr.bf16.mxu0 0
        %4614 = vmatpush1.bf16.msra.mxu0 0
        %4615 = vmatprep.subr.bf16.mxu0 0
        %4616 = vmatpush1.bf16.msra.mxu0 0
        %4617 = vmatprep.subr.bf16.mxu0 0
        %4618 = vmatpush1.bf16.msra.mxu0 0
        %4619 = vmatprep.subr.bf16.mxu0 0
        %4620 = vmatpush1.bf16.msra.mxu0 0
        %4621 = vmatprep.subr.bf16.mxu0 0
        %4622 = vmatpush1.bf16.msra.mxu0 0
        %4623 = vmatprep.mubr.bf16.mxu0 0
        %4624 = vmatmul.mubr.bf16.gmra.mrb[0].mxu0 %v4541
        %v4625 = vpop.f32.mrb[0].mxu0
        %v4626 = vadd.f32 0.0, %v4625
        %v4627 = vpop.f32.mrb[0].mxu0
        %v4628 = vpop.f32.mrb[0].mxu0
        %v4629 = vadd.f32 0.0, %v4628
        %v4630 = vpop.f32.mrb[0].mxu0
        %4631 = vmatprep.mubr.bf16.mxu0 0
        %4632 = vmatmul.mubr.bf16.gmra.mrb[0].mxu0 %v4544
        %v4633 = vpop.f32.mrb[0].mxu0
        %v4634 = vadd.f32 0.0, %v4633
        %v4635 = vpop.f32.mrb[0].mxu0
        %v4636 = vpop.f32.mrb[0].mxu0
        %v4637 = vadd.f32 0.0, %v4636
        %v4638 = vpop.f32.mrb[0].mxu0
        %4639 = vmatprep.mubr.bf16.mxu0 0
        %4640 = vmatmul.mubr.bf16.gmra.mrb[0].mxu0 %v4547
        %v4641 = vpop.f32.mrb[0].mxu0
        %v4642 = vadd.f32 0.0, %v4641
        %v4643 = vpop.f32.mrb[0].mxu0
        %v4644 = vpop.f32.mrb[0].mxu0
        %v4645 = vadd.f32 0.0, %v4644
        %v4646 = vpop.f32.mrb[0].mxu0
        %4647 = vmatprep.mubr.bf16.mxu0 0
        %4648 = vmatmul.mubr.bf16.gmra.mrb[0].mxu0 %v4550
        %v4649 = vpop.f32.mrb[0].mxu0
        %v4650 = vadd.f32 0.0, %v4649
        %v4651 = vpop.f32.mrb[0].mxu0
        %v4652 = vpop.f32.mrb[0].mxu0
        %v4653 = vadd.f32 0.0, %v4652
        %v4654 = vpop.f32.mrb[0].mxu0
        %4655 = vmatprep.mubr.bf16.mxu0 0
        %4656 = vmatmul.mubr.bf16.gmra.mrb[0].mxu0 %v4553
        %v4657 = vpop.f32.mrb[0].mxu0
        %v4658 = vadd.f32 0.0, %v4657
        %v4659 = vpop.f32.mrb[0].mxu0
        %v4660 = vpop.f32.mrb[0].mxu0
        %v4661 = vadd.f32 0.0, %v4660
        %v4662 = vpop.f32.mrb[0].mxu0
        %4663 = vmatprep.mubr.bf16.mxu0 0
        %4664 = vmatmul.mubr.bf16.gmra.mrb[0].mxu0 %v4556
        %v4665 = vpop.f32.mrb[0].mxu0
        %v4666 = vadd.f32 0.0, %v4665
        %v4667 = vpop.f32.mrb[0].mxu0
        %v4668 = vpop.f32.mrb[0].mxu0
        %v4669 = vadd.f32 0.0, %v4668
        %v4670 = vpop.f32.mrb[0].mxu0
        %4671 = vmatprep.mubr.bf16.mxu0 0
        %4672 = vmatmul.mubr.bf16.gmra.mrb[0].mxu0 %v4559
        %v4673 = vpop.f32.mrb[0].mxu0
        %v4674 = vadd.f32 0.0, %v4673
        %v4675 = vpop.f32.mrb[0].mxu0
        %v4676 = vpop.f32.mrb[0].mxu0
        %v4677 = vadd.f32 0.0, %v4676
        %v4678 = vpop.f32.mrb[0].mxu0
        %4679 = vmatprep.mubr.bf16.mxu0 0
        %4680 = vmatmul.mubr.bf16.gmra.mrb[0].mxu0 %v4562
        %v4681 = vpop.f32.mrb[0].mxu0
        %v4682 = vadd.f32 0.0, %v4681
        %v4683 = vpop.f32.mrb[0].mxu0
        %v4684 = vpop.f32.mrb[0].mxu0
        %v4685 = vadd.f32 0.0, %v4684
        %v4686 = vpop.f32.mrb[0].mxu0
        %4687 = vmatprep.mubr.bf16.mxu0 0
        %4688 = vmatmul.mubr.bf16.gmra.mrb[0].mxu0 %v4565
        %v4689 = vpop.f32.mrb[0].mxu0
        %v4690 = vadd.f32 0.0, %v4689
        %v4691 = vpop.f32.mrb[0].mxu0
        %v4692 = vpop.f32.mrb[0].mxu0
        %v4693 = vadd.f32 0.0, %v4692
        %v4694 = vpop.f32.mrb[0].mxu0
        %4695 = vmatprep.mubr.bf16.mxu0 0
        %4696 = vmatmul.mubr.bf16.gmra.mrb[0].mxu0 %v4568
        %v4697 = vpop.f32.mrb[0].mxu0
        %v4698 = vadd.f32 0.0, %v4697
        %v4699 = vpop.f32.mrb[0].mxu0
        %v4700 = vpop.f32.mrb[0].mxu0
        %v4701 = vadd.f32 0.0, %v4700
        %v4702 = vpop.f32.mrb[0].mxu0
        %4703 = vmatprep.mubr.bf16.mxu0 0
        %4704 = vmatmul.mubr.bf16.gmra.mrb[0].mxu0 %v4571
        %v4705 = vpop.f32.mrb[0].mxu0
        %v4706 = vadd.f32 0.0, %v4705
        %v4707 = vpop.f32.mrb[0].mxu0
        %v4708 = vpop.f32.mrb[0].mxu0
        %v4709 = vadd.f32 0.0, %v4708
        %v4710 = vpop.f32.mrb[0].mxu0
        %4711 = vmatprep.mubr.bf16.mxu0 0
        %4712 = vmatmul.mubr.bf16.gmra.mrb[0].mxu0 %v4574
        %v4713 = vpop.f32.mrb[0].mxu0
        %v4714 = vadd.f32 0.0, %v4713
        %v4715 = vpop.f32.mrb[0].mxu0
        %v4716 = vpop.f32.mrb[0].mxu0
        %v4717 = vadd.f32 0.0, %v4716
        %v4718 = vpop.f32.mrb[0].mxu0
        %4719 = vmatprep.mubr.bf16.mxu0 0
        %4720 = vmatmul.mubr.bf16.gmra.mrb[0].mxu0 %v4577
        %v4721 = vpop.f32.mrb[0].mxu0
        %v4722 = vadd.f32 0.0, %v4721
        %v4723 = vpop.f32.mrb[0].mxu0
        %v4724 = vpop.f32.mrb[0].mxu0
        %v4725 = vadd.f32 0.0, %v4724
        %v4726 = vpop.f32.mrb[0].mxu0
        %4727 = vmatprep.mubr.bf16.mxu0 0
        %4728 = vmatmul.mubr.bf16.gmra.mrb[0].mxu0 %v4580
        %v4729 = vpop.f32.mrb[0].mxu0
        %v4730 = vadd.f32 0.0, %v4729
        %v4731 = vpop.f32.mrb[0].mxu0
        %v4732 = vpop.f32.mrb[0].mxu0
        %v4733 = vadd.f32 0.0, %v4732
        %v4734 = vpop.f32.mrb[0].mxu0
        %4735 = vmatprep.mubr.bf16.mxu0 0
        %4736 = vmatmul.mubr.bf16.gmra.mrb[0].mxu0 %v4583
        %v4737 = vpop.f32.mrb[0].mxu0
        %v4738 = vadd.f32 0.0, %v4737
        %v4739 = vpop.f32.mrb[0].mxu0
        %v4740 = vpop.f32.mrb[0].mxu0
        %v4741 = vadd.f32 0.0, %v4740
        %v4742 = vpop.f32.mrb[0].mxu0
        %4743 = vmatprep.mubr.bf16.mxu0 0
        %4744 = vmatmul.mubr.bf16.gmra.mrb[0].mxu0 %v4586
        %v4745 = vpop.f32.mrb[0].mxu0
        %v4746 = vadd.f32 0.0, %v4745
        %v4747 = vpop.f32.mrb[0].mxu0
        %v4748 = vpop.f32.mrb[0].mxu0
        %v4749 = vadd.f32 0.0, %v4748
        %v4750 = vpop.f32.mrb[0].mxu0
        %4751 = vdwg.mxu0
        %v4752 = vadd.f32 %v4250, %v4626
        %v4753 = vadd.f32 %v4251, %v4629
        %v4754 = vadd.f32 %v4252, %v4634
        %v4755 = vadd.f32 %v4253, %v4637
        %v4756 = vadd.f32 %v4254, %v4642
        %v4757 = vadd.f32 %v4255, %v4645
        %v4758 = vadd.f32 %v4256, %v4650
        %v4759 = vadd.f32 %v4257, %v4653
        %v4760 = vadd.f32 %v4258, %v4658
        %v4761 = vadd.f32 %v4259, %v4661
        %v4762 = vadd.f32 %v4260, %v4666
        %v4763 = vadd.f32 %v4261, %v4669
        %v4764 = vadd.f32 %v4262, %v4674
        %v4765 = vadd.f32 %v4263, %v4677
        %v4766 = vadd.f32 %v4264, %v4682
        %v4767 = vadd.f32 %v4265, %v4685
        %v4768 = vadd.f32 %v4266, %v4690
        %v4769 = vadd.f32 %v4267, %v4693
        %v4770 = vadd.f32 %v4268, %v4698
        %v4771 = vadd.f32 %v4269, %v4701
        %v4772 = vadd.f32 %v4270, %v4706
        %v4773 = vadd.f32 %v4271, %v4709
        %v4774 = vadd.f32 %v4272, %v4714
        %v4775 = vadd.f32 %v4273, %v4717
        %v4776 = vadd.f32 %v4274, %v4722
        %v4777 = vadd.f32 %v4275, %v4725
        %v4778 = vadd.f32 %v4276, %v4730
        %v4779 = vadd.f32 %v4277, %v4733
        %v4780 = vadd.f32 %v4278, %v4738
        %v4781 = vadd.f32 %v4279, %v4741
        %v4782 = vadd.f32 %v4280, %v4746
        %v4783 = vadd.f32 %v4281, %v4749
        %4784 = vst [vmem:[%s163] sm:$0xff] %v4752
        %4785 = vst [vmem:[%s163 + $0x8] sm:$0xff] %v4753
        %4786 = vst [vmem:[%s163 + $0x10] sm:$0xff] %v4754
        %4787 = vst [vmem:[%s163 + $0x18] sm:$0xff] %v4755
        %4788 = vst [vmem:[%s163 + $0x20] sm:$0xff] %v4756
        %4789 = vst [vmem:[%s163 + $0x28] sm:$0xff] %v4757
        %4790 = vst [vmem:[%s163 + $0x30] sm:$0xff] %v4758
        %4791 = vst [vmem:[%s163 + $0x38] sm:$0xff] %v4759
        %4792 = vst [vmem:[%s163 + $0x40] sm:$0xff] %v4760
        %4793 = vst [vmem:[%s163 + $0x48] sm:$0xff] %v4761
        %4794 = vst [vmem:[%s163 + $0x50] sm:$0xff] %v4762
        %4795 = vst [vmem:[%s163 + $0x58] sm:$0xff] %v4763
        %4796 = vst [vmem:[%s163 + $0x60] sm:$0xff] %v4764
        %4797 = vst [vmem:[%s163 + $0x68] sm:$0xff] %v4765
        %4798 = vst [vmem:[%s163 + $0x70] sm:$0xff] %v4766
        %4799 = vst [vmem:[%s163 + $0x78] sm:$0xff] %v4767
        %4800 = vst [vmem:[%s163 + $0x80] sm:$0xff] %v4768
        %4801 = vst [vmem:[%s163 + $0x88] sm:$0xff] %v4769
        %4802 = vst [vmem:[%s163 + $0x90] sm:$0xff] %v4770
        %4803 = vst [vmem:[%s163 + $0x98] sm:$0xff] %v4771
        %4804 = vst [vmem:[%s163 + $0xa0] sm:$0xff] %v4772
        %4805 = vst [vmem:[%s163 + $0xa8] sm:$0xff] %v4773
        %4806 = vst [vmem:[%s163 + $0xb0] sm:$0xff] %v4774
        %4807 = vst [vmem:[%s163 + $0xb8] sm:$0xff] %v4775
        %4808 = vst [vmem:[%s163 + $0xc0] sm:$0xff] %v4776
        %4809 = vst [vmem:[%s163 + $0xc8] sm:$0xff] %v4777
        %4810 = vst [vmem:[%s163 + $0xd0] sm:$0xff] %v4778
        %4811 = vst [vmem:[%s163 + $0xd8] sm:$0xff] %v4779
        %4812 = vst [vmem:[%s163 + $0xe0] sm:$0xff] %v4780
        %4813 = vst [vmem:[%s163 + $0xe8] sm:$0xff] %v4781
        %4814 = vst [vmem:[%s163 + $0xf0] sm:$0xff] %v4782
        %4815 = vst [vmem:[%s163 + $0xf8] sm:$0xff] %v4783
        %s4816 = sand.u32 %s93, 1
        %s4817 = scalar_lea.sflag [#allocation3], %s4816
        %s4818 = sand.u32 %s93, 1
        %s4819 = smul.addr %s4818, 256
        %s4820 = scalar_lea.vmem [#allocation2], %s4819
        // Predicated region
        $region33: #{tpu_custom_call.1} parent=31 // pred_check
          %p4821 = pneg %p103
        $region34: #{tpu_custom_call.1} parent=31 // pred_check_branch
          %4823 = sbr.rel (%p4821) target = $region36
        $region35: #{tpu_custom_call.1} parent=31 // pred_region
          %s4825 = ssub.s32 4096, 4096
          %4826 = vsyncadd %s4817, %s4825
          %s4827 = smul.addr %s17, 32
          %s4828 = smul.addr %s4827, 128
          %s4829 = scalar_lea.hbm %s3, %s4828
          %s4830 = sshll.u32 %s4820, 4
          %s4831 = int_to_ptr.vmem [resolvable:$true] %s4830
          %4836 = dma.vmem_to_hbm [thread:$0]  %s4831, 4096, %s4829, %s4817, 128, 128, 8
        $region36: #{tpu_custom_call.1} parent=31 // pred_fallthru
          _
      $region32: #{tpu_custom_call.1} parent=5 // pred_fallthru
        _
      %p4837 = scmp.le.s32.totalorder 2, %s12
      // Predicated region
      $region37: #{tpu_custom_call.1} parent=5 // pred_check
        %p4838 = pneg %p4837
      $region38: #{tpu_custom_call.1} parent=5 // pred_check_branch
        %4840 = sbr.rel (%p4838) target = $region40
      $region39: #{tpu_custom_call.1} parent=5 // pred_region
        %s4841 = ssub.s32 %s12, 2
        // Predicated region
        $region41: #{tpu_custom_call.1} parent=39 // pred_check
          %p4842 = pneg %p109
        $region42: #{tpu_custom_call.1} parent=39 // pred_check_branch
          %4844 = sbr.rel (%p4842) target = $region44
        $region43: #{tpu_custom_call.1} parent=39 // pred_region
          %s4845 = sand.u32 %s94, 1
          %s4846 = scalar_lea.sflag [#allocation3], %s4845
          %s4847 = sand.u32 %s94, 1
          %s4848 = smul.addr %s4847, 256
          %s4849 = scalar_lea.vmem [#allocation2], %s4848
          %4850 = dma.done %s4846, 4096
        $region44: #{tpu_custom_call.1} parent=39 // pred_fallthru
          _
      $region40: #{tpu_custom_call.1} parent=5 // pred_fallthru
        _
    $region6: #{tpu_custom_call.1} parent=1 // loop_footer
      %s16 = sadd.s32 1, %s12
    $region7: #{tpu_custom_call.1} parent=1 // loop_footer_branch
      %11 = sbr.rel target = $region3
    $region8: #{tpu_custom_call.1} parent=1 // loop_exit
      _
    %4851 = vsyncpa [#allocation3], 1
    %s4852 = scalar_lea.sflag [#allocation3], 1
    %4853 = vsyncpa %s4852, 1

</llo_original>
